<compile_context>
chip_gen: v6e
topology: v6e:2x2x1
jax: 0.10.0
libtpu: 0.0.40
codegen_flags: <defaults>
</compile_context>

<pallas_src>
import functools

import numpy as np
import jax
import jax.numpy as jnp
from jax import lax
from jax.experimental import pallas as pl
from jax.experimental.pallas import tpu as pltpu


# ---------------------------------------------------------------------------
# Small helpers
# ---------------------------------------------------------------------------
def _round_up(v, m):
    return ((v + m - 1) // m) * m


def _nbytes(a):
    return int(np.prod(a.shape)) * jnp.dtype(a.dtype).itemsize


def _unroll_for(n, cap=8):
    """Largest divisor of n that is <= cap (the chain is serial; moderate unroll)."""
    u = max(1, min(cap, int(n)))
    while u > 1 and n % u:
        u -= 1
    return u


def _vmem_capacity_bytes():
    try:
        return int(pltpu.get_tpu_info().vmem_capacity_bytes)
    except Exception:
        return 64 * 1024 * 1024      # conservative default (v7x per-TC VMEM)


def _pick_chunk(seq_len, requested, batch_pad, row_bytes, budget_bytes):
    """Largest time chunk whose chunk-proportional VMEM stays under budget."""
    rows = max(1, budget_bytes // max(row_bytes * batch_pad, 1))
    return int(max(1, min(seq_len, requested, rows)))


def _vmem_limit(bytes_needed, cap):
    return int(max(16 * 1024 * 1024,
                   min(int(1.3 * bytes_needed), int(0.9 * cap))))


def _pad_gate_rows(w, H, Hp):
    """(4H, ...) -> (4*Hp, ...): zero-pad each of the 4 (i,f,g,o) gate blocks."""
    pads = ((0, Hp - H),) + ((0, 0),) * (w.ndim - 1)
    return jnp.concatenate(
        [jnp.pad(w[g * H:(g + 1) * H], pads) for g in range(4)], axis=0)


def _lstm_step(gates, c, Hp):
    """PyTorch LSTM cell update, gate order (i, f, g, o); slices lane-aligned."""
    i_g = jax.nn.sigmoid(gates[:, 0 * Hp:1 * Hp])
    f_g = jax.nn.sigmoid(gates[:, 1 * Hp:2 * Hp])
    g_g = jnp.tanh(gates[:, 2 * Hp:3 * Hp])
    o_g = jax.nn.sigmoid(gates[:, 3 * Hp:4 * Hp])
    c_new = f_g * c + i_g * g_g
    h_new = o_g * jnp.tanh(c_new)
    return h_new, c_new


# ---------------------------------------------------------------------------
# Encoder: fused L-layer LSTM + Lambda.hidden_to_mean, time-chunked grid.
# x is flattened to (T_pad*B_pad, F) rows ordered (t, b).
# ---------------------------------------------------------------------------
def _encoder_kernel(x_ref, wih0_ref, wihr_ref, whh_ref, b_ref, wm_ref, bm_ref,
                    h_end_ref, latent_ref,
                    h_sc, c_sc, seq_sc, gx_sc,
                    *, hidden_pad, depth, chunk, seq_len, batch, mm_dtype,
                    needs_mask, unroll):
    Hp, L, tt, B = hidden_pad, depth, chunk, batch
    c_idx = pl.program_id(0)
    t0 = c_idx * tt

    @pl.when(c_idx == 0)
    def _init():
        h_sc[...] = jnp.zeros_like(h_sc)
        c_sc[...] = jnp.zeros_like(c_sc)

    for l in range(L):
        # Hoisted input projection for the whole chunk: one well-shaped MXU
        # matmul (bias folded in) instead of `tt` tiny matmuls on the chain.
        if l == 0:
            xin = x_ref[...]                        # (tt*B, F), already mm_dtype
            w_in = wih0_ref[...]
        else:
            xin = seq_sc[...].astype(mm_dtype)      # (tt*B, Hp)
            w_in = wihr_ref[l - 1]
        gx_sc[...] = (jnp.dot(xin, w_in, preferred_element_type=jnp.float32)
                      + b_ref[l])
        whh_l = whh_ref[l]
        last_layer = (l == L - 1)

        def step(t, carry, _l=l, _whh=whh_l, _last=last_layer):
            row = pl.multiple_of(t * B, B)
            h = h_sc[_l]
            c = c_sc[_l]
            gates = gx_sc[pl.ds(row, B), :] + jnp.dot(
                h.astype(mm_dtype), _whh, preferred_element_type=jnp.float32)
            h_new, c_new = _lstm_step(gates, c, Hp)
            if needs_mask:
                # branch-free tail masking (only traced when padding exists)
                valid = (t0 + t) < seq_len
                h_new = jnp.where(valid, h_new, h)
                c_new = jnp.where(valid, c_new, c)
            h_sc[_l] = h_new
            c_sc[_l] = c_new
            if not _last:
                # last layer's per-step sequence is never consumed -> skip
                seq_sc[pl.ds(row, B), :] = h_new
            return carry

        lax.fori_loop(0, tt, step, 0, unroll=unroll)

    @pl.when(c_idx == pl.num_programs(0) - 1)
    def _finalize():
        h_end = h_sc[L - 1]
        h_end_ref[...] = h_end
        # fused Lambda.hidden_to_mean (eval mode: latent == latent_mean)
        latent_ref[...] = (jnp.dot(h_end.astype(mm_dtype), wm_ref[...],
                                   preferred_element_type=jnp.float32)
                           + bm_ref[...])


def _encoder_pallas(x, params, *, hidden_size, hidden_pad, depth, latent_length,
                    mm_dtype, time_chunk):
    B, T, F = x.shape                 # batch_first=True: dim0 batch, dim1 time
    H, Hp, L, Z = hidden_size, hidden_pad, depth, latent_length
    B_pad = _round_up(B, 8)           # sublane-aligned batch
    mm_isz = jnp.dtype(mm_dtype).itemsize

    cap = _vmem_capacity_bytes()
    # chunk-proportional VMEM per timestep-row: gx (4Hp f32) + inter-layer seq
    # (Hp f32) + double-buffered streamed x block (F, mm dtype)
    row_bytes = (4 * Hp + Hp) * 4 + 2 * F * mm_isz
    chunk = _pick_chunk(T, time_chunk, B_pad, row_bytes, int(cap * 0.45))
    num_chunks = -(-T // chunk)
    T_pad = num_chunks * chunk

    # time-major, cast to matmul dtype before the transpose/pad pass, flatten
    x_tm = jnp.transpose(x.astype(mm_dtype), (1, 0, 2))
    x_tm = jnp.pad(x_tm, ((0, T_pad - T), (0, B_pad - B), (0, 0)))
    x_flat = x_tm.reshape(T_pad * B_pad, F)

    weight_keys = ('enc_wih0', 'enc_wihr', 'enc_whh', 'enc_b',
                   'lmbd_wm', 'lmbd_bm')
    weight_bytes = sum(_nbytes(params[kk]) for kk in weight_keys)
    scratch_bytes = (2 * L * B_pad * Hp + chunk * B_pad * (Hp + 4 * Hp)) * 4
    io_bytes = 2 * chunk * B_pad * F * mm_isz + 2 * B_pad * (Hp + Z) * 4
    vlim = _vmem_limit(weight_bytes + scratch_bytes + io_bytes, cap)

    kernel = functools.partial(
        _encoder_kernel, hidden_pad=Hp, depth=L, chunk=chunk, seq_len=T,
        batch=B_pad, mm_dtype=mm_dtype, needs_mask=(T_pad != T),
        unroll=_unroll_for(chunk))
    vmem = pl.BlockSpec(memory_space=pltpu.MemorySpace.VMEM)  # resident weights
    grid_spec = pltpu.PrefetchScalarGridSpec(
        num_scalar_prefetch=0,
        grid=(num_chunks,),
        in_specs=[pl.BlockSpec((chunk * B_pad, F), lambda c: (c, 0))]  # streamed x
                 + [vmem] * 6,
        out_specs=(pl.BlockSpec((B_pad, Hp), lambda c: (0, 0)),
                   pl.BlockSpec((B_pad, Z), lambda c: (0, 0))),
        scratch_shapes=[
            pltpu.VMEM((L, B_pad, Hp), jnp.float32),           # h per layer
            pltpu.VMEM((L, B_pad, Hp), jnp.float32),           # c per layer
            pltpu.VMEM((chunk * B_pad, Hp), jnp.float32),      # inter-layer seq
            pltpu.VMEM((chunk * B_pad, 4 * Hp), jnp.float32),  # hoisted gates_x
        ])
    # TODO(synk): add a leading batch-"parallel" grid axis for v7x megacore.
    h_end_pad, latent_pad = pl.pallas_call(
        kernel,
        out_shape=(jax.ShapeDtypeStruct((B_pad, Hp), jnp.float32),
                   jax.ShapeDtypeStruct((B_pad, Z), jnp.float32)),
        grid_spec=grid_spec,
        compiler_params=pltpu.CompilerParams(
            dimension_semantics=("arbitrary",),   # recurrence carries state
            vmem_limit_bytes=vlim),
    )(x_flat, params['enc_wih0'], params['enc_wihr'], params['enc_whh'],
      params['enc_b'], params['lmbd_wm'], params['lmbd_bm'])
    return h_end_pad[:B, :H], latent_pad[:B]


# ---------------------------------------------------------------------------
# Decoder: latent_to_hidden + L-layer LSTM (zero inputs) + hidden_to_output,
# time-chunked grid, per-layer h/c carried in VMEM scratch across chunks,
# per-chunk lane-dense output streaming.
# ---------------------------------------------------------------------------
def _decoder_kernel(latent_ref, wl2h_ref, bl2h_ref, wihr_ref, whh_ref, b_ref,
                    wh2o_ref, bh2o_ref, out_ref,
                    h_sc, c_sc, seq_sc, gx_sc,
                    *, hidden_pad, depth, chunk, batch, mm_dtype, unroll):
    Hp, L, tt, B = hidden_pad, depth, chunk, batch
    c_idx = pl.program_id(0)

    @pl.when(c_idx == 0)
    def _init():
        # latent -> shared initial hidden state for every layer, c_0 = 0
        h0 = (jnp.dot(latent_ref[...].astype(mm_dtype), wl2h_ref[...],
                      preferred_element_type=jnp.float32) + bl2h_ref[...])
        for l in range(L):
            h_sc[l] = h0
        c_sc[...] = jnp.zeros_like(c_sc)

    for l in range(L):
        whh_l = whh_ref[l]
        if l == 0:
            # decoder inputs are all-zero -> input projection reduces to bias
            gx0 = jnp.broadcast_to(b_ref[0], (B, 4 * Hp))
        else:
            gx_sc[...] = (jnp.dot(seq_sc[...].astype(mm_dtype), wihr_ref[l - 1],
                                  preferred_element_type=jnp.float32)
                          + b_ref[l])
            gx0 = None

        def step(t, carry, _l=l, _whh=whh_l, _gx0=gx0):
            row = pl.multiple_of(t * B, B)
            gx_t = _gx0 if _l == 0 else gx_sc[pl.ds(row, B), :]
            h = h_sc[_l]
            c = c_sc[_l]
            gates = gx_t + jnp.dot(h.astype(mm_dtype), _whh,
                                   preferred_element_type=jnp.float32)
            h_new, c_new = _lstm_step(gates, c, Hp)
            h_sc[_l] = h_new
            c_sc[_l] = c_new
            seq_sc[pl.ds(row, B), :] = h_new
            return carry

        lax.fori_loop(0, tt, step, 0, unroll=unroll)

    # fused hidden_to_output over this chunk, lane-dense (Op % 128 == 0) store
    out_ref[...] = (jnp.dot(seq_sc[...].astype(mm_dtype), wh2o_ref[...],
                            preferred_element_type=jnp.float32)
                    + bh2o_ref[...])


def _decoder_pallas(latent, params, *, hidden_pad, depth, seq_len, out_size,
                    out_pad, mm_dtype, time_chunk):
    B, _ = latent.shape
    Hp, L, T, Op = hidden_pad, depth, seq_len, out_pad
    B_pad = _round_up(B, 8)
    latent_pad = jnp.pad(latent.astype(jnp.float32), ((0, B_pad - B), (0, 0)))

    cap = _vmem_capacity_bytes()
    row_bytes = (4 * Hp + Hp) * 4 + 2 * Op * 4
    chunk = _pick_chunk(T, time_chunk, B_pad, row_bytes, int(cap * 0.45))
    num_chunks = -(-T // chunk)
    T_pad = num_chunks * chunk

    weight_keys = ('dec_wl2h', 'dec_bl2h', 'dec_wih', 'dec_whh', 'dec_b',
                   'dec_wh2o', 'dec_bh2o')
    weight_bytes = (sum(_nbytes(params[kk]) for kk in weight_keys)
                    + _nbytes(latent_pad))
    scratch_bytes = (2 * L * B_pad * Hp + chunk * B_pad * (Hp + 4 * Hp)) * 4
    io_bytes = 2 * chunk * B_pad * Op * 4
    vlim = _vmem_limit(weight_bytes + scratch_bytes + io_bytes, cap)

    kernel = functools.partial(
        _decoder_kernel, hidden_pad=Hp, depth=L, chunk=chunk, batch=B_pad,
        mm_dtype=mm_dtype, unroll=_unroll_for(chunk))
    vmem = pl.BlockSpec(memory_space=pltpu.MemorySpace.VMEM)
    grid_spec = pltpu.PrefetchScalarGridSpec(
        num_scalar_prefetch=0,
        grid=(num_chunks,),
        in_specs=[vmem] * 8,
        out_specs=pl.BlockSpec((chunk * B_pad, Op), lambda c: (c, 0)),
        scratch_shapes=[
            pltpu.VMEM((L, B_pad, Hp), jnp.float32),           # h per layer
            pltpu.VMEM((L, B_pad, Hp), jnp.float32),           # c per layer
            pltpu.VMEM((chunk * B_pad, Hp), jnp.float32),      # inter-layer seq
            pltpu.VMEM((chunk * B_pad, 4 * Hp), jnp.float32),  # hoisted gates_x
        ])
    out_flat = pl.pallas_call(
        kernel,
        out_shape=jax.ShapeDtypeStruct((T_pad * B_pad, Op), jnp.float32),
        grid_spec=grid_spec,
        compiler_params=pltpu.CompilerParams(
            dimension_semantics=("arbitrary",),
            vmem_limit_bytes=vlim),
    )(latent_pad, params['dec_wl2h'], params['dec_bl2h'], params['dec_wih'],
      params['dec_whh'], params['dec_b'], params['dec_wh2o'], params['dec_bh2o'])
    return out_flat.reshape(T_pad, B_pad, Op)[:T, :B, :out_size]


# ---------------------------------------------------------------------------
# Model wrapper
# ---------------------------------------------------------------------------
class PallasVRAE:
    """Inference forward pass of vrae.VRAE (encoder -> Lambda -> decoder)."""

    def __init__(self, sequence_length, number_of_features, hidden_size=90,
                 hidden_layer_depth=2, latent_length=20, batch_size=32,
                 block='LSTM', dropout_rate=0.0, key=None,
                 mm_dtype=jnp.bfloat16, time_chunk=256):
        if block != 'LSTM':
            raise NotImplementedError('only the LSTM block is implemented')
        self.sequence_length = sequence_length
        self.number_of_features = number_of_features
        self.hidden_size = hidden_size
        self.hidden_layer_depth = hidden_layer_depth
        self.latent_length = latent_length
        self.batch_size = batch_size
        self.mm_dtype = mm_dtype
        self.time_chunk = time_chunk
        # lane-aligned padded sizes (each gate slice is whole 128-lane groups)
        self.hidden_pad = _round_up(hidden_size, 128)
        self.out_pad = _round_up(number_of_features, 128)

        if key is None:
            key = jax.random.PRNGKey(0)
        H, Hp, L, Z = hidden_size, self.hidden_pad, hidden_layer_depth, latent_length
        F = number_of_features
        O = number_of_features
        Op = self.out_pad
        k = 1.0 / np.sqrt(H)

        def uni(kk, shape, scale):
            return jax.random.uniform(kk, shape, jnp.float32, -scale, scale)

        def xavier(kk, shape):
            a = np.sqrt(6.0 / (shape[0] + shape[1]))
            return jax.random.uniform(kk, shape, jnp.float32, -a, a)

        p = {}
        # ---- encoder nn.LSTM(F, H, L, batch_first=True) ----
        wih0, wihr, whh, bias = None, [], [], []
        for l in range(L):
            fin = F if l == 0 else H
            key, k1, k2, k3, k4 = jax.random.split(key, 5)
            w_ih = uni(k1, (4 * H, fin), k)
            w_hh = uni(k2, (4 * H, H), k)
            b_ih = uni(k3, (4 * H,), k)
            b_hh = uni(k4, (4 * H,), k)
            w_ih_p = _pad_gate_rows(w_ih, H, Hp)                  # (4Hp, fin)
            if l > 0:                                             # input = padded h
                w_ih_p = jnp.pad(w_ih_p, ((0, 0), (0, Hp - H)))
            w_hh_p = jnp.pad(_pad_gate_rows(w_hh, H, Hp), ((0, 0), (0, Hp - H)))
            b_p = _pad_gate_rows(b_ih + b_hh, H, Hp)
            if l == 0:
                wih0 = w_ih_p.T
            else:
                wihr.append(w_ih_p.T)
            whh.append(w_hh_p.T)
            bias.append(b_p[None, :])
        if not wihr:
            wihr = [jnp.zeros((Hp, 4 * Hp), jnp.float32)]          # unused dummy
        p['enc_wih0'] = wih0.astype(mm_dtype)                      # (F, 4Hp)
        p['enc_wihr'] = jnp.stack(wihr).astype(mm_dtype)           # (max(L-1,1), Hp, 4Hp)
        p['enc_whh'] = jnp.stack(whh).astype(mm_dtype)             # (L, Hp, 4Hp)
        p['enc_b'] = jnp.stack(bias)                               # (L, 1, 4Hp) f32

        # ---- Lambda.hidden_to_mean (eval path only) ----
        key, k1, k2 = jax.random.split(key, 3)
        wm = xavier(k1, (Z, H)).T                                  # (H, Z)
        p['lmbd_wm'] = jnp.pad(wm, ((0, Hp - H), (0, 0))).astype(mm_dtype)
        p['lmbd_bm'] = uni(k2, (Z,), 1.0 / np.sqrt(H))[None, :]
        # TODO(synk): hidden_to_logvar / reparameterization noise (training only).

        # ---- decoder ----
        key, k1, k2 = jax.random.split(key, 3)
        wl2h = xavier(k1, (H, Z)).T                                # (Z, H)
        p['dec_wl2h'] = jnp.pad(wl2h, ((0, 0), (0, Hp - H))).astype(mm_dtype)
        p['dec_bl2h'] = jnp.pad(uni(k2, (H,), 1.0 / np.sqrt(Z)),
                                (0, Hp - H))[None, :]
        dwih, dwhh, dbias = [], [], []
        for l in range(L):
            fin = 1 if l == 0 else H
            key, k1, k2, k3, k4 = jax.random.split(key, 5)
            w_ih = uni(k1, (4 * H, fin), k)
            w_hh = uni(k2, (4 * H, H), k)
            b_ih = uni(k3, (4 * H,), k)
            b_hh = uni(k4, (4 * H,), k)
            if l > 0:
                w_ih_p = jnp.pad(_pad_gate_rows(w_ih, H, Hp), ((0, 0), (0, Hp - H)))
                dwih.append(w_ih_p.T)
            # layer-0 W_ih multiplies the all-zero decoder inputs -> drops out
            dwhh.append(jnp.pad(_pad_gate_rows(w_hh, H, Hp),
                                ((0, 0), (0, Hp - H))).T)
            dbias.append(_pad_gate_rows(b_ih + b_hh, H, Hp)[None, :])
        if not dwih:
            dwih = [jnp.zeros((Hp, 4 * Hp), jnp.float32)]
        p['dec_wih'] = jnp.stack(dwih).astype(mm_dtype)
        p['dec_whh'] = jnp.stack(dwhh).astype(mm_dtype)
        p['dec_b'] = jnp.stack(dbias)
        key, k1, k2 = jax.random.split(key, 3)
        wh2o = xavier(k1, (O, H)).T                                # (H, O)
        p['dec_wh2o'] = jnp.pad(wh2o, ((0, Hp - H), (0, Op - O))).astype(mm_dtype)
        p['dec_bh2o'] = jnp.pad(uni(k2, (O,), 1.0 / np.sqrt(H)),
                                (0, Op - O))[None, :]
        self.params = p

    def encode(self, x):
        return _encoder_pallas(x, self.params, hidden_size=self.hidden_size,
                               hidden_pad=self.hidden_pad,
                               depth=self.hidden_layer_depth,
                               latent_length=self.latent_length,
                               mm_dtype=self.mm_dtype,
                               time_chunk=self.time_chunk)

    def decode(self, latent):
        return _decoder_pallas(latent, self.params,
                               hidden_pad=self.hidden_pad,
                               depth=self.hidden_layer_depth,
                               seq_len=self.sequence_length,
                               out_size=self.number_of_features,
                               out_pad=self.out_pad,
                               mm_dtype=self.mm_dtype,
                               time_chunk=self.time_chunk)

    def __call__(self, x):
        _, latent = self.encode(x)
        x_decoded = self.decode(latent)
        return x_decoded, latent


# ---------------------------------------------------------------------------
# Pure-JAX reference (same dtype policy, same padded-lane layout).
# ---------------------------------------------------------------------------
def _reference_forward(x, model):
    p = model.params
    Hp = model.hidden_pad
    L = model.hidden_layer_depth
    O = model.number_of_features
    Td = model.sequence_length
    mm = model.mm_dtype
    B, T, _ = x.shape

    def scan_layer(gx_seq, h0, c0, whh):
        def cell(carry, gx_t):
            h, c = carry
            gates = gx_t + jnp.dot(h.astype(mm), whh,
                                   preferred_element_type=jnp.float32)
            h_new, c_new = _lstm_step(gates, c, Hp)
            return (h_new, c_new), h_new
        (h, _), seq = lax.scan(cell, (h0, c0), gx_seq)
        return h, seq

    zeros = jnp.zeros((B, Hp), jnp.float32)
    # encoder (batch_first=True)
    seq = jnp.transpose(x.astype(jnp.float32), (1, 0, 2))
    h_end = None
    for l in range(L):
        wih = p['enc_wih0'] if l == 0 else p['enc_wihr'][l - 1]
        gx = (jnp.dot(seq.reshape(T * B, -1).astype(mm), wih,
                      preferred_element_type=jnp.float32).reshape(T, B, 4 * Hp)
              + p['enc_b'][l])
        h_end, seq = scan_layer(gx, zeros, zeros, p['enc_whh'][l])
    latent = (jnp.dot(h_end.astype(mm), p['lmbd_wm'],
                      preferred_element_type=jnp.float32) + p['lmbd_bm'])

    # decoder
    h0 = (jnp.dot(latent.astype(mm), p['dec_wl2h'],
                  preferred_element_type=jnp.float32) + p['dec_bl2h'])
    seq_d = None
    for l in range(L):
        if l == 0:
            gx = jnp.broadcast_to(p['dec_b'][0], (Td, B, 4 * Hp))
        else:
            gx = (jnp.dot(seq_d.reshape(Td * B, Hp).astype(mm),
                          p['dec_wih'][l - 1],
                          preferred_element_type=jnp.float32)
                  .reshape(Td, B, 4 * Hp) + p['dec_b'][l])
        _, seq_d = scan_layer(gx, h0, zeros, p['dec_whh'][l])
    x_decoded = (jnp.dot(seq_d.reshape(Td * B, Hp).astype(mm), p['dec_wh2o'],
                         preferred_element_type=jnp.float32).reshape(Td, B, -1)
                 + p['dec_bh2o'])[:, :, :O]
    return x_decoded, latent, h_end


if __name__ == "__main__":
    sequence_length = 8
    number_of_features = 4
    hidden_size = 32
    hidden_layer_depth = 2
    latent_length = 16
    batch_size = 2

    key = jax.random.PRNGKey(0)
    key_params, key_x = jax.random.split(key)

    model = PallasVRAE(sequence_length=sequence_length,
                       number_of_features=number_of_features,
                       hidden_size=hidden_size,
                       hidden_layer_depth=hidden_layer_depth,
                       latent_length=latent_length,
                       batch_size=batch_size,
                       block='LSTM',
                       key=key_params)

    # batch_first=True: x is (batch, time, features)
    x = jax.random.normal(key_x, (batch_size, sequence_length,
                                  number_of_features), dtype=jnp.float32)

    x_decoded, latent = model(x)
    x_decoded, latent = jax.block_until_ready((x_decoded, latent))

    assert latent.shape == (batch_size, latent_length), latent.shape
    assert x_decoded.shape == (sequence_length, batch_size,
                               number_of_features), x_decoded.shape

    x_dec_ref, latent_ref, _ = _reference_forward(x, model)
    x_dec_ref, latent_ref = jax.block_until_ready((x_dec_ref, latent_ref))
    np.testing.assert_allclose(np.asarray(latent), np.asarray(latent_ref),
                               rtol=5e-3, atol=5e-3)
    np.testing.assert_allclose(np.asarray(x_decoded), np.asarray(x_dec_ref),
                               rtol=5e-3, atol=5e-3)

    print("KERNEL_OK")
</pallas_src>

<mosaic_0001>
module attributes {stable_mosaic.version = 11 : i64} {
  func.func @_encoder_kernel(%arg0: i32, %arg1: memref<64x4xbf16, #tpu.memory_space<vmem>>, %arg2: memref<4x512xbf16, #tpu.memory_space<vmem>>, %arg3: memref<1x128x512xbf16, #tpu.memory_space<vmem>>, %arg4: memref<2x128x512xbf16, #tpu.memory_space<vmem>>, %arg5: memref<2x1x512xf32, #tpu.memory_space<vmem>>, %arg6: memref<128x16xbf16, #tpu.memory_space<vmem>>, %arg7: memref<1x16xf32, #tpu.memory_space<vmem>>, %arg8: memref<8x128xf32, #tpu.memory_space<vmem>>, %arg9: memref<8x16xf32, #tpu.memory_space<vmem>>, %arg10: memref<2x8x128xf32, #tpu.memory_space<vmem>>, %arg11: memref<2x8x128xf32, #tpu.memory_space<vmem>>, %arg12: memref<64x128xf32, #tpu.memory_space<vmem>>, %arg13: memref<64x512xf32, #tpu.memory_space<vmem>>) attributes {dimension_semantics = [#tpu.dimension_semantics<arbitrary>], iteration_bounds = array<i64: 1>, scalar_prefetch = 0 : i64, scratch_operands = 4 : i64, tpu.core_type = #tpu.core_type<tc>, window_params = [{transform_indices = @transform_0, window_bounds = array<i64: 64, 4>}, {pipeline_mode = #tpu.pipeline_mode<synchronous>, transform_indices = @transform_1, window_bounds = array<i64: 4, 512>}, {pipeline_mode = #tpu.pipeline_mode<synchronous>, transform_indices = @transform_2, window_bounds = array<i64: 1, 128, 512>}, {pipeline_mode = #tpu.pipeline_mode<synchronous>, transform_indices = @transform_3, window_bounds = array<i64: 2, 128, 512>}, {pipeline_mode = #tpu.pipeline_mode<synchronous>, transform_indices = @transform_4, window_bounds = array<i64: 2, 1, 512>}, {pipeline_mode = #tpu.pipeline_mode<synchronous>, transform_indices = @transform_5, window_bounds = array<i64: 128, 16>}, {pipeline_mode = #tpu.pipeline_mode<synchronous>, transform_indices = @transform_6, window_bounds = array<i64: 1, 16>}, {pipeline_mode = #tpu.pipeline_mode<synchronous>, transform_indices = @transform_7, window_bounds = array<i64: 8, 128>}, {pipeline_mode = #tpu.pipeline_mode<synchronous>, transform_indices = @transform_8, window_bounds = array<i64: 8, 16>}]} {
    %c0_i32 = arith.constant 0 : i32
    %0 = arith.cmpi eq, %arg0, %c0_i32 : i32
    %1 = arith.extui %0 : i1 to i32
    %c0_i32_0 = arith.constant 0 : i32
    %2 = arith.cmpi ne, %1, %c0_i32_0 : i32
    scf.if %2 {
      %cst_333 = arith.constant 0.000000e+00 : f32
      %716 = vector.broadcast %cst_333 : f32 to vector<2x8x128xf32>
      %c0_334 = arith.constant 0 : index
      %c0_335 = arith.constant 0 : index
      %c0_336 = arith.constant 0 : index
      %717 = vector.load %arg10[%c0_334, %c0_335, %c0_336] : memref<2x8x128xf32, #tpu.memory_space<vmem>>, vector<2x8x128xf32>
      tpu.vector_store %arg10[%c0_334, %c0_335, %c0_336], %716 {strides = array<i32>} : memref<2x8x128xf32, #tpu.memory_space<vmem>>, vector<2x8x128xf32>,
      %cst_337 = arith.constant 0.000000e+00 : f32
      %718 = vector.broadcast %cst_337 : f32 to vector<2x8x128xf32>
      %c0_338 = arith.constant 0 : index
      %c0_339 = arith.constant 0 : index
      %c0_340 = arith.constant 0 : index
      %719 = vector.load %arg11[%c0_338, %c0_339, %c0_340] : memref<2x8x128xf32, #tpu.memory_space<vmem>>, vector<2x8x128xf32>
      tpu.vector_store %arg11[%c0_338, %c0_339, %c0_340], %718 {strides = array<i32>} : memref<2x8x128xf32, #tpu.memory_space<vmem>>, vector<2x8x128xf32>,
    } else {
    }
    %c0 = arith.constant 0 : index
    %c0_1 = arith.constant 0 : index
    %3 = vector.load %arg1[%c0, %c0_1] : memref<64x4xbf16, #tpu.memory_space<vmem>>, vector<64x4xbf16>
    %c0_2 = arith.constant 0 : index
    %c0_3 = arith.constant 0 : index
    %4 = vector.load %arg2[%c0_2, %c0_3] : memref<4x512xbf16, #tpu.memory_space<vmem>>, vector<4x512xbf16>
    %cst = arith.constant dense<0.000000e+00> : vector<64x512xf32>
    %5 = tpu.matmul %3, %4, %cst {dimension_numbers = #tpu.dot_dimension_numbers<[1], [0], [0], [1], [0, 0, 1, 1], [], []>} : vector<64x4xbf16>, vector<4x512xbf16>, vector<64x512xf32> -> vector<64x512xf32>
    %c0_4 = arith.constant 0 : index
    %c0_5 = arith.constant 0 : index
    %c0_6 = arith.constant 0 : index
    %6 = vector.load %arg5[%c0_4, %c0_5, %c0_6] : memref<2x1x512xf32, #tpu.memory_space<vmem>>, vector<1x1x512xf32>
    %7 = vector.shape_cast %6 : vector<1x1x512xf32> to vector<1x512xf32>
    %8 = vector.broadcast %7 : vector<1x512xf32> to vector<64x512xf32>
    %9 = arith.addf %5, %8 : vector<64x512xf32>
    %c0_7 = arith.constant 0 : index
    %c0_8 = arith.constant 0 : index
    %10 = vector.load %arg13[%c0_7, %c0_8] : memref<64x512xf32, #tpu.memory_space<vmem>>, vector<64x512xf32>
    tpu.vector_store %arg13[%c0_7, %c0_8], %9 {strides = array<i32>} : memref<64x512xf32, #tpu.memory_space<vmem>>, vector<64x512xf32>,
    %c0_9 = arith.constant 0 : index
    %c0_10 = arith.constant 0 : index
    %c0_11 = arith.constant 0 : index
    %11 = vector.load %arg4[%c0_9, %c0_10, %c0_11] : memref<2x128x512xbf16, #tpu.memory_space<vmem>>, vector<1x128x512xbf16>
    %12 = vector.shape_cast %11 : vector<1x128x512xbf16> to vector<128x512xbf16>
    %c0_i32_12 = arith.constant 0 : i32
    %c8_i32 = arith.constant 8 : i32
    %13 = arith.muli %c0_i32_12, %c8_i32 : i32
    %14 = tpu.assume_multiple %13, 8 : i32
    %c0_13 = arith.constant 0 : index
    %c0_14 = arith.constant 0 : index
    %c0_15 = arith.constant 0 : index
    %15 = vector.load %arg10[%c0_13, %c0_14, %c0_15] : memref<2x8x128xf32, #tpu.memory_space<vmem>>, vector<1x8x128xf32>
    %16 = vector.shape_cast %15 : vector<1x8x128xf32> to vector<8x128xf32>
    %c0_16 = arith.constant 0 : index
    %c0_17 = arith.constant 0 : index
    %c0_18 = arith.constant 0 : index
    %17 = vector.load %arg11[%c0_16, %c0_17, %c0_18] : memref<2x8x128xf32, #tpu.memory_space<vmem>>, vector<1x8x128xf32>
    %18 = vector.shape_cast %17 : vector<1x8x128xf32> to vector<8x128xf32>
    %19 = arith.index_cast %14 : i32 to index
    %c0_19 = arith.constant 0 : index
    %20 = vector.load %arg13[%19, %c0_19] : memref<64x512xf32, #tpu.memory_space<vmem>>, vector<8x512xf32>
    %21 = arith.truncf %16 : vector<8x128xf32> to vector<8x128xbf16>
    %cst_20 = arith.constant dense<0.000000e+00> : vector<8x512xf32>
    %22 = tpu.matmul %21, %12, %cst_20 {dimension_numbers = #tpu.dot_dimension_numbers<[1], [0], [0], [1], [0, 0, 1, 1], [], []>} : vector<8x128xbf16>, vector<128x512xbf16>, vector<8x512xf32> -> vector<8x512xf32>
    %23 = arith.addf %20, %22 : vector<8x512xf32>
    %24 = vector.extract_strided_slice %23 {offsets = [0, 0], sizes = [8, 128], strides = [1, 1]} : vector<8x512xf32> to vector<8x128xf32>
    %25 = arith.negf %24 : vector<8x128xf32>
    %26 = math.exp %25 : vector<8x128xf32>
    %cst_21 = arith.constant 1.000000e+00 : f32
    %27 = vector.broadcast %cst_21 : f32 to vector<8x128xf32>
    %28 = arith.addf %27, %26 : vector<8x128xf32>
    %29 = arith.divf %27, %28 : vector<8x128xf32>
    %30 = vector.extract_strided_slice %23 {offsets = [0, 128], sizes = [8, 128], strides = [1, 1]} : vector<8x512xf32> to vector<8x128xf32>
    %31 = arith.negf %30 : vector<8x128xf32>
    %32 = math.exp %31 : vector<8x128xf32>
    %cst_22 = arith.constant 1.000000e+00 : f32
    %33 = vector.broadcast %cst_22 : f32 to vector<8x128xf32>
    %34 = arith.addf %33, %32 : vector<8x128xf32>
    %35 = arith.divf %33, %34 : vector<8x128xf32>
    %36 = vector.extract_strided_slice %23 {offsets = [0, 256], sizes = [8, 128], strides = [1, 1]} : vector<8x512xf32> to vector<8x128xf32>
    %37 = math.tanh %36 : vector<8x128xf32>
    %38 = vector.extract_strided_slice %23 {offsets = [0, 384], sizes = [8, 128], strides = [1, 1]} : vector<8x512xf32> to vector<8x128xf32>
    %39 = arith.negf %38 : vector<8x128xf32>
    %40 = math.exp %39 : vector<8x128xf32>
    %cst_23 = arith.constant 1.000000e+00 : f32
    %41 = vector.broadcast %cst_23 : f32 to vector<8x128xf32>
    %42 = arith.addf %41, %40 : vector<8x128xf32>
    %43 = arith.divf %41, %42 : vector<8x128xf32>
    %44 = arith.mulf %35, %18 : vector<8x128xf32>
    %45 = arith.mulf %29, %37 : vector<8x128xf32>
    %46 = arith.addf %44, %45 : vector<8x128xf32>
    %47 = math.tanh %46 : vector<8x128xf32>
    %48 = arith.mulf %43, %47 : vector<8x128xf32>
    %c0_24 = arith.constant 0 : index
    %c0_25 = arith.constant 0 : index
    %c0_26 = arith.constant 0 : index
    %49 = vector.load %arg10[%c0_24, %c0_25, %c0_26] : memref<2x8x128xf32, #tpu.memory_space<vmem>>, vector<1x8x128xf32>
    %50 = vector.shape_cast %49 : vector<1x8x128xf32> to vector<8x128xf32>
    %51 = vector.shape_cast %48 : vector<8x128xf32> to vector<1x8x128xf32>
    tpu.vector_store %arg10[%c0_24, %c0_25, %c0_26], %51 {strides = array<i32>} : memref<2x8x128xf32, #tpu.memory_space<vmem>>, vector<1x8x128xf32>,
    %c0_27 = arith.constant 0 : index
    %c0_28 = arith.constant 0 : index
    %c0_29 = arith.constant 0 : index
    %52 = vector.load %arg11[%c0_27, %c0_28, %c0_29] : memref<2x8x128xf32, #tpu.memory_space<vmem>>, vector<1x8x128xf32>
    %53 = vector.shape_cast %52 : vector<1x8x128xf32> to vector<8x128xf32>
    %54 = vector.shape_cast %46 : vector<8x128xf32> to vector<1x8x128xf32>
    tpu.vector_store %arg11[%c0_27, %c0_28, %c0_29], %54 {strides = array<i32>} : memref<2x8x128xf32, #tpu.memory_space<vmem>>, vector<1x8x128xf32>,
    %55 = arith.index_cast %14 : i32 to index
    %c0_30 = arith.constant 0 : index
    %56 = vector.load %arg12[%55, %c0_30] : memref<64x128xf32, #tpu.memory_space<vmem>>, vector<8x128xf32>
    tpu.vector_store %arg12[%55, %c0_30], %48 {strides = array<i32>} : memref<64x128xf32, #tpu.memory_space<vmem>>, vector<8x128xf32>,
    %c1_i32 = arith.constant 1 : i32
    %c8_i32_31 = arith.constant 8 : i32
    %57 = arith.muli %c1_i32, %c8_i32_31 : i32
    %58 = tpu.assume_multiple %57, 8 : i32
    %c0_32 = arith.constant 0 : index
    %c0_33 = arith.constant 0 : index
    %c0_34 = arith.constant 0 : index
    %59 = vector.load %arg10[%c0_32, %c0_33, %c0_34] : memref<2x8x128xf32, #tpu.memory_space<vmem>>, vector<1x8x128xf32>
    %60 = vector.shape_cast %59 : vector<1x8x128xf32> to vector<8x128xf32>
    %c0_35 = arith.constant 0 : index
    %c0_36 = arith.constant 0 : index
    %c0_37 = arith.constant 0 : index
    %61 = vector.load %arg11[%c0_35, %c0_36, %c0_37] : memref<2x8x128xf32, #tpu.memory_space<vmem>>, vector<1x8x128xf32>
    %62 = vector.shape_cast %61 : vector<1x8x128xf32> to vector<8x128xf32>
    %63 = arith.index_cast %58 : i32 to index
    %c0_38 = arith.constant 0 : index
    %64 = vector.load %arg13[%63, %c0_38] : memref<64x512xf32, #tpu.memory_space<vmem>>, vector<8x512xf32>
    %65 = arith.truncf %60 : vector<8x128xf32> to vector<8x128xbf16>
    %cst_39 = arith.constant dense<0.000000e+00> : vector<8x512xf32>
    %66 = tpu.matmul %65, %12, %cst_39 {dimension_numbers = #tpu.dot_dimension_numbers<[1], [0], [0], [1], [0, 0, 1, 1], [], []>} : vector<8x128xbf16>, vector<128x512xbf16>, vector<8x512xf32> -> vector<8x512xf32>
    %67 = arith.addf %64, %66 : vector<8x512xf32>
    %68 = vector.extract_strided_slice %67 {offsets = [0, 0], sizes = [8, 128], strides = [1, 1]} : vector<8x512xf32> to vector<8x128xf32>
    %69 = arith.negf %68 : vector<8x128xf32>
    %70 = math.exp %69 : vector<8x128xf32>
    %cst_40 = arith.constant 1.000000e+00 : f32
    %71 = vector.broadcast %cst_40 : f32 to vector<8x128xf32>
    %72 = arith.addf %71, %70 : vector<8x128xf32>
    %73 = arith.divf %71, %72 : vector<8x128xf32>
    %74 = vector.extract_strided_slice %67 {offsets = [0, 128], sizes = [8, 128], strides = [1, 1]} : vector<8x512xf32> to vector<8x128xf32>
    %75 = arith.negf %74 : vector<8x128xf32>
    %76 = math.exp %75 : vector<8x128xf32>
    %cst_41 = arith.constant 1.000000e+00 : f32
    %77 = vector.broadcast %cst_41 : f32 to vector<8x128xf32>
    %78 = arith.addf %77, %76 : vector<8x128xf32>
    %79 = arith.divf %77, %78 : vector<8x128xf32>
    %80 = vector.extract_strided_slice %67 {offsets = [0, 256], sizes = [8, 128], strides = [1, 1]} : vector<8x512xf32> to vector<8x128xf32>
    %81 = math.tanh %80 : vector<8x128xf32>
    %82 = vector.extract_strided_slice %67 {offsets = [0, 384], sizes = [8, 128], strides = [1, 1]} : vector<8x512xf32> to vector<8x128xf32>
    %83 = arith.negf %82 : vector<8x128xf32>
    %84 = math.exp %83 : vector<8x128xf32>
    %cst_42 = arith.constant 1.000000e+00 : f32
    %85 = vector.broadcast %cst_42 : f32 to vector<8x128xf32>
    %86 = arith.addf %85, %84 : vector<8x128xf32>
    %87 = arith.divf %85, %86 : vector<8x128xf32>
    %88 = arith.mulf %79, %62 : vector<8x128xf32>
    %89 = arith.mulf %73, %81 : vector<8x128xf32>
    %90 = arith.addf %88, %89 : vector<8x128xf32>
    %91 = math.tanh %90 : vector<8x128xf32>
    %92 = arith.mulf %87, %91 : vector<8x128xf32>
    %c0_43 = arith.constant 0 : index
    %c0_44 = arith.constant 0 : index
    %c0_45 = arith.constant 0 : index
    %93 = vector.load %arg10[%c0_43, %c0_44, %c0_45] : memref<2x8x128xf32, #tpu.memory_space<vmem>>, vector<1x8x128xf32>
    %94 = vector.shape_cast %93 : vector<1x8x128xf32> to vector<8x128xf32>
    %95 = vector.shape_cast %92 : vector<8x128xf32> to vector<1x8x128xf32>
    tpu.vector_store %arg10[%c0_43, %c0_44, %c0_45], %95 {strides = array<i32>} : memref<2x8x128xf32, #tpu.memory_space<vmem>>, vector<1x8x128xf32>,
    %c0_46 = arith.constant 0 : index
    %c0_47 = arith.constant 0 : index
    %c0_48 = arith.constant 0 : index
    %96 = vector.load %arg11[%c0_46, %c0_47, %c0_48] : memref<2x8x128xf32, #tpu.memory_space<vmem>>, vector<1x8x128xf32>
    %97 = vector.shape_cast %96 : vector<1x8x128xf32> to vector<8x128xf32>
    %98 = vector.shape_cast %90 : vector<8x128xf32> to vector<1x8x128xf32>
    tpu.vector_store %arg11[%c0_46, %c0_47, %c0_48], %98 {strides = array<i32>} : memref<2x8x128xf32, #tpu.memory_space<vmem>>, vector<1x8x128xf32>,
    %99 = arith.index_cast %58 : i32 to index
    %c0_49 = arith.constant 0 : index
    %100 = vector.load %arg12[%99, %c0_49] : memref<64x128xf32, #tpu.memory_space<vmem>>, vector<8x128xf32>
    tpu.vector_store %arg12[%99, %c0_49], %92 {strides = array<i32>} : memref<64x128xf32, #tpu.memory_space<vmem>>, vector<8x128xf32>,
    %c2_i32 = arith.constant 2 : i32
    %c8_i32_50 = arith.constant 8 : i32
    %101 = arith.muli %c2_i32, %c8_i32_50 : i32
    %102 = tpu.assume_multiple %101, 8 : i32
    %c0_51 = arith.constant 0 : index
    %c0_52 = arith.constant 0 : index
    %c0_53 = arith.constant 0 : index
    %103 = vector.load %arg10[%c0_51, %c0_52, %c0_53] : memref<2x8x128xf32, #tpu.memory_space<vmem>>, vector<1x8x128xf32>
    %104 = vector.shape_cast %103 : vector<1x8x128xf32> to vector<8x128xf32>
    %c0_54 = arith.constant 0 : index
    %c0_55 = arith.constant 0 : index
    %c0_56 = arith.constant 0 : index
    %105 = vector.load %arg11[%c0_54, %c0_55, %c0_56] : memref<2x8x128xf32, #tpu.memory_space<vmem>>, vector<1x8x128xf32>
    %106 = vector.shape_cast %105 : vector<1x8x128xf32> to vector<8x128xf32>
    %107 = arith.index_cast %102 : i32 to index
    %c0_57 = arith.constant 0 : index
    %108 = vector.load %arg13[%107, %c0_57] : memref<64x512xf32, #tpu.memory_space<vmem>>, vector<8x512xf32>
    %109 = arith.truncf %104 : vector<8x128xf32> to vector<8x128xbf16>
    %cst_58 = arith.constant dense<0.000000e+00> : vector<8x512xf32>
    %110 = tpu.matmul %109, %12, %cst_58 {dimension_numbers = #tpu.dot_dimension_numbers<[1], [0], [0], [1], [0, 0, 1, 1], [], []>} : vector<8x128xbf16>, vector<128x512xbf16>, vector<8x512xf32> -> vector<8x512xf32>
    %111 = arith.addf %108, %110 : vector<8x512xf32>
    %112 = vector.extract_strided_slice %111 {offsets = [0, 0], sizes = [8, 128], strides = [1, 1]} : vector<8x512xf32> to vector<8x128xf32>
    %113 = arith.negf %112 : vector<8x128xf32>
    %114 = math.exp %113 : vector<8x128xf32>
    %cst_59 = arith.constant 1.000000e+00 : f32
    %115 = vector.broadcast %cst_59 : f32 to vector<8x128xf32>
    %116 = arith.addf %115, %114 : vector<8x128xf32>
    %117 = arith.divf %115, %116 : vector<8x128xf32>
    %118 = vector.extract_strided_slice %111 {offsets = [0, 128], sizes = [8, 128], strides = [1, 1]} : vector<8x512xf32> to vector<8x128xf32>
    %119 = arith.negf %118 : vector<8x128xf32>
    %120 = math.exp %119 : vector<8x128xf32>
    %cst_60 = arith.constant 1.000000e+00 : f32
    %121 = vector.broadcast %cst_60 : f32 to vector<8x128xf32>
    %122 = arith.addf %121, %120 : vector<8x128xf32>
    %123 = arith.divf %121, %122 : vector<8x128xf32>
    %124 = vector.extract_strided_slice %111 {offsets = [0, 256], sizes = [8, 128], strides = [1, 1]} : vector<8x512xf32> to vector<8x128xf32>
    %125 = math.tanh %124 : vector<8x128xf32>
    %126 = vector.extract_strided_slice %111 {offsets = [0, 384], sizes = [8, 128], strides = [1, 1]} : vector<8x512xf32> to vector<8x128xf32>
    %127 = arith.negf %126 : vector<8x128xf32>
    %128 = math.exp %127 : vector<8x128xf32>
    %cst_61 = arith.constant 1.000000e+00 : f32
    %129 = vector.broadcast %cst_61 : f32 to vector<8x128xf32>
    %130 = arith.addf %129, %128 : vector<8x128xf32>
    %131 = arith.divf %129, %130 : vector<8x128xf32>
    %132 = arith.mulf %123, %106 : vector<8x128xf32>
    %133 = arith.mulf %117, %125 : vector<8x128xf32>
    %134 = arith.addf %132, %133 : vector<8x128xf32>
    %135 = math.tanh %134 : vector<8x128xf32>
    %136 = arith.mulf %131, %135 : vector<8x128xf32>
    %c0_62 = arith.constant 0 : index
    %c0_63 = arith.constant 0 : index
    %c0_64 = arith.constant 0 : index
    %137 = vector.load %arg10[%c0_62, %c0_63, %c0_64] : memref<2x8x128xf32, #tpu.memory_space<vmem>>, vector<1x8x128xf32>
    %138 = vector.shape_cast %137 : vector<1x8x128xf32> to vector<8x128xf32>
    %139 = vector.shape_cast %136 : vector<8x128xf32> to vector<1x8x128xf32>
    tpu.vector_store %arg10[%c0_62, %c0_63, %c0_64], %139 {strides = array<i32>} : memref<2x8x128xf32, #tpu.memory_space<vmem>>, vector<1x8x128xf32>,
    %c0_65 = arith.constant 0 : index
    %c0_66 = arith.constant 0 : index
    %c0_67 = arith.constant 0 : index
    %140 = vector.load %arg11[%c0_65, %c0_66, %c0_67] : memref<2x8x128xf32, #tpu.memory_space<vmem>>, vector<1x8x128xf32>
    %141 = vector.shape_cast %140 : vector<1x8x128xf32> to vector<8x128xf32>
    %142 = vector.shape_cast %134 : vector<8x128xf32> to vector<1x8x128xf32>
    tpu.vector_store %arg11[%c0_65, %c0_66, %c0_67], %142 {strides = array<i32>} : memref<2x8x128xf32, #tpu.memory_space<vmem>>, vector<1x8x128xf32>,
    %143 = arith.index_cast %102 : i32 to index
    %c0_68 = arith.constant 0 : index
    %144 = vector.load %arg12[%143, %c0_68] : memref<64x128xf32, #tpu.memory_space<vmem>>, vector<8x128xf32>
    tpu.vector_store %arg12[%143, %c0_68], %136 {strides = array<i32>} : memref<64x128xf32, #tpu.memory_space<vmem>>, vector<8x128xf32>,
    %c3_i32 = arith.constant 3 : i32
    %c8_i32_69 = arith.constant 8 : i32
    %145 = arith.muli %c3_i32, %c8_i32_69 : i32
    %146 = tpu.assume_multiple %145, 8 : i32
    %c0_70 = arith.constant 0 : index
    %c0_71 = arith.constant 0 : index
    %c0_72 = arith.constant 0 : index
    %147 = vector.load %arg10[%c0_70, %c0_71, %c0_72] : memref<2x8x128xf32, #tpu.memory_space<vmem>>, vector<1x8x128xf32>
    %148 = vector.shape_cast %147 : vector<1x8x128xf32> to vector<8x128xf32>
    %c0_73 = arith.constant 0 : index
    %c0_74 = arith.constant 0 : index
    %c0_75 = arith.constant 0 : index
    %149 = vector.load %arg11[%c0_73, %c0_74, %c0_75] : memref<2x8x128xf32, #tpu.memory_space<vmem>>, vector<1x8x128xf32>
    %150 = vector.shape_cast %149 : vector<1x8x128xf32> to vector<8x128xf32>
    %151 = arith.index_cast %146 : i32 to index
    %c0_76 = arith.constant 0 : index
    %152 = vector.load %arg13[%151, %c0_76] : memref<64x512xf32, #tpu.memory_space<vmem>>, vector<8x512xf32>
    %153 = arith.truncf %148 : vector<8x128xf32> to vector<8x128xbf16>
    %cst_77 = arith.constant dense<0.000000e+00> : vector<8x512xf32>
    %154 = tpu.matmul %153, %12, %cst_77 {dimension_numbers = #tpu.dot_dimension_numbers<[1], [0], [0], [1], [0, 0, 1, 1], [], []>} : vector<8x128xbf16>, vector<128x512xbf16>, vector<8x512xf32> -> vector<8x512xf32>
    %155 = arith.addf %152, %154 : vector<8x512xf32>
    %156 = vector.extract_strided_slice %155 {offsets = [0, 0], sizes = [8, 128], strides = [1, 1]} : vector<8x512xf32> to vector<8x128xf32>
    %157 = arith.negf %156 : vector<8x128xf32>
    %158 = math.exp %157 : vector<8x128xf32>
    %cst_78 = arith.constant 1.000000e+00 : f32
    %159 = vector.broadcast %cst_78 : f32 to vector<8x128xf32>
    %160 = arith.addf %159, %158 : vector<8x128xf32>
    %161 = arith.divf %159, %160 : vector<8x128xf32>
    %162 = vector.extract_strided_slice %155 {offsets = [0, 128], sizes = [8, 128], strides = [1, 1]} : vector<8x512xf32> to vector<8x128xf32>
    %163 = arith.negf %162 : vector<8x128xf32>
    %164 = math.exp %163 : vector<8x128xf32>
    %cst_79 = arith.constant 1.000000e+00 : f32
    %165 = vector.broadcast %cst_79 : f32 to vector<8x128xf32>
    %166 = arith.addf %165, %164 : vector<8x128xf32>
    %167 = arith.divf %165, %166 : vector<8x128xf32>
    %168 = vector.extract_strided_slice %155 {offsets = [0, 256], sizes = [8, 128], strides = [1, 1]} : vector<8x512xf32> to vector<8x128xf32>
    %169 = math.tanh %168 : vector<8x128xf32>
    %170 = vector.extract_strided_slice %155 {offsets = [0, 384], sizes = [8, 128], strides = [1, 1]} : vector<8x512xf32> to vector<8x128xf32>
    %171 = arith.negf %170 : vector<8x128xf32>
    %172 = math.exp %171 : vector<8x128xf32>
    %cst_80 = arith.constant 1.000000e+00 : f32
    %173 = vector.broadcast %cst_80 : f32 to vector<8x128xf32>
    %174 = arith.addf %173, %172 : vector<8x128xf32>
    %175 = arith.divf %173, %174 : vector<8x128xf32>
    %176 = arith.mulf %167, %150 : vector<8x128xf32>
    %177 = arith.mulf %161, %169 : vector<8x128xf32>
    %178 = arith.addf %176, %177 : vector<8x128xf32>
    %179 = math.tanh %178 : vector<8x128xf32>
    %180 = arith.mulf %175, %179 : vector<8x128xf32>
    %c0_81 = arith.constant 0 : index
    %c0_82 = arith.constant 0 : index
    %c0_83 = arith.constant 0 : index
    %181 = vector.load %arg10[%c0_81, %c0_82, %c0_83] : memref<2x8x128xf32, #tpu.memory_space<vmem>>, vector<1x8x128xf32>
    %182 = vector.shape_cast %181 : vector<1x8x128xf32> to vector<8x128xf32>
    %183 = vector.shape_cast %180 : vector<8x128xf32> to vector<1x8x128xf32>
    tpu.vector_store %arg10[%c0_81, %c0_82, %c0_83], %183 {strides = array<i32>} : memref<2x8x128xf32, #tpu.memory_space<vmem>>, vector<1x8x128xf32>,
    %c0_84 = arith.constant 0 : index
    %c0_85 = arith.constant 0 : index
    %c0_86 = arith.constant 0 : index
    %184 = vector.load %arg11[%c0_84, %c0_85, %c0_86] : memref<2x8x128xf32, #tpu.memory_space<vmem>>, vector<1x8x128xf32>
    %185 = vector.shape_cast %184 : vector<1x8x128xf32> to vector<8x128xf32>
    %186 = vector.shape_cast %178 : vector<8x128xf32> to vector<1x8x128xf32>
    tpu.vector_store %arg11[%c0_84, %c0_85, %c0_86], %186 {strides = array<i32>} : memref<2x8x128xf32, #tpu.memory_space<vmem>>, vector<1x8x128xf32>,
    %187 = arith.index_cast %146 : i32 to index
    %c0_87 = arith.constant 0 : index
    %188 = vector.load %arg12[%187, %c0_87] : memref<64x128xf32, #tpu.memory_space<vmem>>, vector<8x128xf32>
    tpu.vector_store %arg12[%187, %c0_87], %180 {strides = array<i32>} : memref<64x128xf32, #tpu.memory_space<vmem>>, vector<8x128xf32>,
    %c4_i32 = arith.constant 4 : i32
    %c8_i32_88 = arith.constant 8 : i32
    %189 = arith.muli %c4_i32, %c8_i32_88 : i32
    %190 = tpu.assume_multiple %189, 8 : i32
    %c0_89 = arith.constant 0 : index
    %c0_90 = arith.constant 0 : index
    %c0_91 = arith.constant 0 : index
    %191 = vector.load %arg10[%c0_89, %c0_90, %c0_91] : memref<2x8x128xf32, #tpu.memory_space<vmem>>, vector<1x8x128xf32>
    %192 = vector.shape_cast %191 : vector<1x8x128xf32> to vector<8x128xf32>
    %c0_92 = arith.constant 0 : index
    %c0_93 = arith.constant 0 : index
    %c0_94 = arith.constant 0 : index
    %193 = vector.load %arg11[%c0_92, %c0_93, %c0_94] : memref<2x8x128xf32, #tpu.memory_space<vmem>>, vector<1x8x128xf32>
    %194 = vector.shape_cast %193 : vector<1x8x128xf32> to vector<8x128xf32>
    %195 = arith.index_cast %190 : i32 to index
    %c0_95 = arith.constant 0 : index
    %196 = vector.load %arg13[%195, %c0_95] : memref<64x512xf32, #tpu.memory_space<vmem>>, vector<8x512xf32>
    %197 = arith.truncf %192 : vector<8x128xf32> to vector<8x128xbf16>
    %cst_96 = arith.constant dense<0.000000e+00> : vector<8x512xf32>
    %198 = tpu.matmul %197, %12, %cst_96 {dimension_numbers = #tpu.dot_dimension_numbers<[1], [0], [0], [1], [0, 0, 1, 1], [], []>} : vector<8x128xbf16>, vector<128x512xbf16>, vector<8x512xf32> -> vector<8x512xf32>
    %199 = arith.addf %196, %198 : vector<8x512xf32>
    %200 = vector.extract_strided_slice %199 {offsets = [0, 0], sizes = [8, 128], strides = [1, 1]} : vector<8x512xf32> to vector<8x128xf32>
    %201 = arith.negf %200 : vector<8x128xf32>
    %202 = math.exp %201 : vector<8x128xf32>
    %cst_97 = arith.constant 1.000000e+00 : f32
    %203 = vector.broadcast %cst_97 : f32 to vector<8x128xf32>
    %204 = arith.addf %203, %202 : vector<8x128xf32>
    %205 = arith.divf %203, %204 : vector<8x128xf32>
    %206 = vector.extract_strided_slice %199 {offsets = [0, 128], sizes = [8, 128], strides = [1, 1]} : vector<8x512xf32> to vector<8x128xf32>
    %207 = arith.negf %206 : vector<8x128xf32>
    %208 = math.exp %207 : vector<8x128xf32>
    %cst_98 = arith.constant 1.000000e+00 : f32
    %209 = vector.broadcast %cst_98 : f32 to vector<8x128xf32>
    %210 = arith.addf %209, %208 : vector<8x128xf32>
    %211 = arith.divf %209, %210 : vector<8x128xf32>
    %212 = vector.extract_strided_slice %199 {offsets = [0, 256], sizes = [8, 128], strides = [1, 1]} : vector<8x512xf32> to vector<8x128xf32>
    %213 = math.tanh %212 : vector<8x128xf32>
    %214 = vector.extract_strided_slice %199 {offsets = [0, 384], sizes = [8, 128], strides = [1, 1]} : vector<8x512xf32> to vector<8x128xf32>
    %215 = arith.negf %214 : vector<8x128xf32>
    %216 = math.exp %215 : vector<8x128xf32>
    %cst_99 = arith.constant 1.000000e+00 : f32
    %217 = vector.broadcast %cst_99 : f32 to vector<8x128xf32>
    %218 = arith.addf %217, %216 : vector<8x128xf32>
    %219 = arith.divf %217, %218 : vector<8x128xf32>
    %220 = arith.mulf %211, %194 : vector<8x128xf32>
    %221 = arith.mulf %205, %213 : vector<8x128xf32>
    %222 = arith.addf %220, %221 : vector<8x128xf32>
    %223 = math.tanh %222 : vector<8x128xf32>
    %224 = arith.mulf %219, %223 : vector<8x128xf32>
    %c0_100 = arith.constant 0 : index
    %c0_101 = arith.constant 0 : index
    %c0_102 = arith.constant 0 : index
    %225 = vector.load %arg10[%c0_100, %c0_101, %c0_102] : memref<2x8x128xf32, #tpu.memory_space<vmem>>, vector<1x8x128xf32>
    %226 = vector.shape_cast %225 : vector<1x8x128xf32> to vector<8x128xf32>
    %227 = vector.shape_cast %224 : vector<8x128xf32> to vector<1x8x128xf32>
    tpu.vector_store %arg10[%c0_100, %c0_101, %c0_102], %227 {strides = array<i32>} : memref<2x8x128xf32, #tpu.memory_space<vmem>>, vector<1x8x128xf32>,
    %c0_103 = arith.constant 0 : index
    %c0_104 = arith.constant 0 : index
    %c0_105 = arith.constant 0 : index
    %228 = vector.load %arg11[%c0_103, %c0_104, %c0_105] : memref<2x8x128xf32, #tpu.memory_space<vmem>>, vector<1x8x128xf32>
    %229 = vector.shape_cast %228 : vector<1x8x128xf32> to vector<8x128xf32>
    %230 = vector.shape_cast %222 : vector<8x128xf32> to vector<1x8x128xf32>
    tpu.vector_store %arg11[%c0_103, %c0_104, %c0_105], %230 {strides = array<i32>} : memref<2x8x128xf32, #tpu.memory_space<vmem>>, vector<1x8x128xf32>,
    %231 = arith.index_cast %190 : i32 to index
    %c0_106 = arith.constant 0 : index
    %232 = vector.load %arg12[%231, %c0_106] : memref<64x128xf32, #tpu.memory_space<vmem>>, vector<8x128xf32>
    tpu.vector_store %arg12[%231, %c0_106], %224 {strides = array<i32>} : memref<64x128xf32, #tpu.memory_space<vmem>>, vector<8x128xf32>,
    %c5_i32 = arith.constant 5 : i32
    %c8_i32_107 = arith.constant 8 : i32
    %233 = arith.muli %c5_i32, %c8_i32_107 : i32
    %234 = tpu.assume_multiple %233, 8 : i32
    %c0_108 = arith.constant 0 : index
    %c0_109 = arith.constant 0 : index
    %c0_110 = arith.constant 0 : index
    %235 = vector.load %arg10[%c0_108, %c0_109, %c0_110] : memref<2x8x128xf32, #tpu.memory_space<vmem>>, vector<1x8x128xf32>
    %236 = vector.shape_cast %235 : vector<1x8x128xf32> to vector<8x128xf32>
    %c0_111 = arith.constant 0 : index
    %c0_112 = arith.constant 0 : index
    %c0_113 = arith.constant 0 : index
    %237 = vector.load %arg11[%c0_111, %c0_112, %c0_113] : memref<2x8x128xf32, #tpu.memory_space<vmem>>, vector<1x8x128xf32>
    %238 = vector.shape_cast %237 : vector<1x8x128xf32> to vector<8x128xf32>
    %239 = arith.index_cast %234 : i32 to index
    %c0_114 = arith.constant 0 : index
    %240 = vector.load %arg13[%239, %c0_114] : memref<64x512xf32, #tpu.memory_space<vmem>>, vector<8x512xf32>
    %241 = arith.truncf %236 : vector<8x128xf32> to vector<8x128xbf16>
    %cst_115 = arith.constant dense<0.000000e+00> : vector<8x512xf32>
    %242 = tpu.matmul %241, %12, %cst_115 {dimension_numbers = #tpu.dot_dimension_numbers<[1], [0], [0], [1], [0, 0, 1, 1], [], []>} : vector<8x128xbf16>, vector<128x512xbf16>, vector<8x512xf32> -> vector<8x512xf32>
    %243 = arith.addf %240, %242 : vector<8x512xf32>
    %244 = vector.extract_strided_slice %243 {offsets = [0, 0], sizes = [8, 128], strides = [1, 1]} : vector<8x512xf32> to vector<8x128xf32>
    %245 = arith.negf %244 : vector<8x128xf32>
    %246 = math.exp %245 : vector<8x128xf32>
    %cst_116 = arith.constant 1.000000e+00 : f32
    %247 = vector.broadcast %cst_116 : f32 to vector<8x128xf32>
    %248 = arith.addf %247, %246 : vector<8x128xf32>
    %249 = arith.divf %247, %248 : vector<8x128xf32>
    %250 = vector.extract_strided_slice %243 {offsets = [0, 128], sizes = [8, 128], strides = [1, 1]} : vector<8x512xf32> to vector<8x128xf32>
    %251 = arith.negf %250 : vector<8x128xf32>
    %252 = math.exp %251 : vector<8x128xf32>
    %cst_117 = arith.constant 1.000000e+00 : f32
    %253 = vector.broadcast %cst_117 : f32 to vector<8x128xf32>
    %254 = arith.addf %253, %252 : vector<8x128xf32>
    %255 = arith.divf %253, %254 : vector<8x128xf32>
    %256 = vector.extract_strided_slice %243 {offsets = [0, 256], sizes = [8, 128], strides = [1, 1]} : vector<8x512xf32> to vector<8x128xf32>
    %257 = math.tanh %256 : vector<8x128xf32>
    %258 = vector.extract_strided_slice %243 {offsets = [0, 384], sizes = [8, 128], strides = [1, 1]} : vector<8x512xf32> to vector<8x128xf32>
    %259 = arith.negf %258 : vector<8x128xf32>
    %260 = math.exp %259 : vector<8x128xf32>
    %cst_118 = arith.constant 1.000000e+00 : f32
    %261 = vector.broadcast %cst_118 : f32 to vector<8x128xf32>
    %262 = arith.addf %261, %260 : vector<8x128xf32>
    %263 = arith.divf %261, %262 : vector<8x128xf32>
    %264 = arith.mulf %255, %238 : vector<8x128xf32>
    %265 = arith.mulf %249, %257 : vector<8x128xf32>
    %266 = arith.addf %264, %265 : vector<8x128xf32>
    %267 = math.tanh %266 : vector<8x128xf32>
    %268 = arith.mulf %263, %267 : vector<8x128xf32>
    %c0_119 = arith.constant 0 : index
    %c0_120 = arith.constant 0 : index
    %c0_121 = arith.constant 0 : index
    %269 = vector.load %arg10[%c0_119, %c0_120, %c0_121] : memref<2x8x128xf32, #tpu.memory_space<vmem>>, vector<1x8x128xf32>
    %270 = vector.shape_cast %269 : vector<1x8x128xf32> to vector<8x128xf32>
    %271 = vector.shape_cast %268 : vector<8x128xf32> to vector<1x8x128xf32>
    tpu.vector_store %arg10[%c0_119, %c0_120, %c0_121], %271 {strides = array<i32>} : memref<2x8x128xf32, #tpu.memory_space<vmem>>, vector<1x8x128xf32>,
    %c0_122 = arith.constant 0 : index
    %c0_123 = arith.constant 0 : index
    %c0_124 = arith.constant 0 : index
    %272 = vector.load %arg11[%c0_122, %c0_123, %c0_124] : memref<2x8x128xf32, #tpu.memory_space<vmem>>, vector<1x8x128xf32>
    %273 = vector.shape_cast %272 : vector<1x8x128xf32> to vector<8x128xf32>
    %274 = vector.shape_cast %266 : vector<8x128xf32> to vector<1x8x128xf32>
    tpu.vector_store %arg11[%c0_122, %c0_123, %c0_124], %274 {strides = array<i32>} : memref<2x8x128xf32, #tpu.memory_space<vmem>>, vector<1x8x128xf32>,
    %275 = arith.index_cast %234 : i32 to index
    %c0_125 = arith.constant 0 : index
    %276 = vector.load %arg12[%275, %c0_125] : memref<64x128xf32, #tpu.memory_space<vmem>>, vector<8x128xf32>
    tpu.vector_store %arg12[%275, %c0_125], %268 {strides = array<i32>} : memref<64x128xf32, #tpu.memory_space<vmem>>, vector<8x128xf32>,
    %c6_i32 = arith.constant 6 : i32
    %c8_i32_126 = arith.constant 8 : i32
    %277 = arith.muli %c6_i32, %c8_i32_126 : i32
    %278 = tpu.assume_multiple %277, 8 : i32
    %c0_127 = arith.constant 0 : index
    %c0_128 = arith.constant 0 : index
    %c0_129 = arith.constant 0 : index
    %279 = vector.load %arg10[%c0_127, %c0_128, %c0_129] : memref<2x8x128xf32, #tpu.memory_space<vmem>>, vector<1x8x128xf32>
    %280 = vector.shape_cast %279 : vector<1x8x128xf32> to vector<8x128xf32>
    %c0_130 = arith.constant 0 : index
    %c0_131 = arith.constant 0 : index
    %c0_132 = arith.constant 0 : index
    %281 = vector.load %arg11[%c0_130, %c0_131, %c0_132] : memref<2x8x128xf32, #tpu.memory_space<vmem>>, vector<1x8x128xf32>
    %282 = vector.shape_cast %281 : vector<1x8x128xf32> to vector<8x128xf32>
    %283 = arith.index_cast %278 : i32 to index
    %c0_133 = arith.constant 0 : index
    %284 = vector.load %arg13[%283, %c0_133] : memref<64x512xf32, #tpu.memory_space<vmem>>, vector<8x512xf32>
    %285 = arith.truncf %280 : vector<8x128xf32> to vector<8x128xbf16>
    %cst_134 = arith.constant dense<0.000000e+00> : vector<8x512xf32>
    %286 = tpu.matmul %285, %12, %cst_134 {dimension_numbers = #tpu.dot_dimension_numbers<[1], [0], [0], [1], [0, 0, 1, 1], [], []>} : vector<8x128xbf16>, vector<128x512xbf16>, vector<8x512xf32> -> vector<8x512xf32>
    %287 = arith.addf %284, %286 : vector<8x512xf32>
    %288 = vector.extract_strided_slice %287 {offsets = [0, 0], sizes = [8, 128], strides = [1, 1]} : vector<8x512xf32> to vector<8x128xf32>
    %289 = arith.negf %288 : vector<8x128xf32>
    %290 = math.exp %289 : vector<8x128xf32>
    %cst_135 = arith.constant 1.000000e+00 : f32
    %291 = vector.broadcast %cst_135 : f32 to vector<8x128xf32>
    %292 = arith.addf %291, %290 : vector<8x128xf32>
    %293 = arith.divf %291, %292 : vector<8x128xf32>
    %294 = vector.extract_strided_slice %287 {offsets = [0, 128], sizes = [8, 128], strides = [1, 1]} : vector<8x512xf32> to vector<8x128xf32>
    %295 = arith.negf %294 : vector<8x128xf32>
    %296 = math.exp %295 : vector<8x128xf32>
    %cst_136 = arith.constant 1.000000e+00 : f32
    %297 = vector.broadcast %cst_136 : f32 to vector<8x128xf32>
    %298 = arith.addf %297, %296 : vector<8x128xf32>
    %299 = arith.divf %297, %298 : vector<8x128xf32>
    %300 = vector.extract_strided_slice %287 {offsets = [0, 256], sizes = [8, 128], strides = [1, 1]} : vector<8x512xf32> to vector<8x128xf32>
    %301 = math.tanh %300 : vector<8x128xf32>
    %302 = vector.extract_strided_slice %287 {offsets = [0, 384], sizes = [8, 128], strides = [1, 1]} : vector<8x512xf32> to vector<8x128xf32>
    %303 = arith.negf %302 : vector<8x128xf32>
    %304 = math.exp %303 : vector<8x128xf32>
    %cst_137 = arith.constant 1.000000e+00 : f32
    %305 = vector.broadcast %cst_137 : f32 to vector<8x128xf32>
    %306 = arith.addf %305, %304 : vector<8x128xf32>
    %307 = arith.divf %305, %306 : vector<8x128xf32>
    %308 = arith.mulf %299, %282 : vector<8x128xf32>
    %309 = arith.mulf %293, %301 : vector<8x128xf32>
    %310 = arith.addf %308, %309 : vector<8x128xf32>
    %311 = math.tanh %310 : vector<8x128xf32>
    %312 = arith.mulf %307, %311 : vector<8x128xf32>
    %c0_138 = arith.constant 0 : index
    %c0_139 = arith.constant 0 : index
    %c0_140 = arith.constant 0 : index
    %313 = vector.load %arg10[%c0_138, %c0_139, %c0_140] : memref<2x8x128xf32, #tpu.memory_space<vmem>>, vector<1x8x128xf32>
    %314 = vector.shape_cast %313 : vector<1x8x128xf32> to vector<8x128xf32>
    %315 = vector.shape_cast %312 : vector<8x128xf32> to vector<1x8x128xf32>
    tpu.vector_store %arg10[%c0_138, %c0_139, %c0_140], %315 {strides = array<i32>} : memref<2x8x128xf32, #tpu.memory_space<vmem>>, vector<1x8x128xf32>,
    %c0_141 = arith.constant 0 : index
    %c0_142 = arith.constant 0 : index
    %c0_143 = arith.constant 0 : index
    %316 = vector.load %arg11[%c0_141, %c0_142, %c0_143] : memref<2x8x128xf32, #tpu.memory_space<vmem>>, vector<1x8x128xf32>
    %317 = vector.shape_cast %316 : vector<1x8x128xf32> to vector<8x128xf32>
    %318 = vector.shape_cast %310 : vector<8x128xf32> to vector<1x8x128xf32>
    tpu.vector_store %arg11[%c0_141, %c0_142, %c0_143], %318 {strides = array<i32>} : memref<2x8x128xf32, #tpu.memory_space<vmem>>, vector<1x8x128xf32>,
    %319 = arith.index_cast %278 : i32 to index
    %c0_144 = arith.constant 0 : index
    %320 = vector.load %arg12[%319, %c0_144] : memref<64x128xf32, #tpu.memory_space<vmem>>, vector<8x128xf32>
    tpu.vector_store %arg12[%319, %c0_144], %312 {strides = array<i32>} : memref<64x128xf32, #tpu.memory_space<vmem>>, vector<8x128xf32>,
    %c7_i32 = arith.constant 7 : i32
    %c8_i32_145 = arith.constant 8 : i32
    %321 = arith.muli %c7_i32, %c8_i32_145 : i32
    %322 = tpu.assume_multiple %321, 8 : i32
    %c0_146 = arith.constant 0 : index
    %c0_147 = arith.constant 0 : index
    %c0_148 = arith.constant 0 : index
    %323 = vector.load %arg10[%c0_146, %c0_147, %c0_148] : memref<2x8x128xf32, #tpu.memory_space<vmem>>, vector<1x8x128xf32>
    %324 = vector.shape_cast %323 : vector<1x8x128xf32> to vector<8x128xf32>
    %c0_149 = arith.constant 0 : index
    %c0_150 = arith.constant 0 : index
    %c0_151 = arith.constant 0 : index
    %325 = vector.load %arg11[%c0_149, %c0_150, %c0_151] : memref<2x8x128xf32, #tpu.memory_space<vmem>>, vector<1x8x128xf32>
    %326 = vector.shape_cast %325 : vector<1x8x128xf32> to vector<8x128xf32>
    %327 = arith.index_cast %322 : i32 to index
    %c0_152 = arith.constant 0 : index
    %328 = vector.load %arg13[%327, %c0_152] : memref<64x512xf32, #tpu.memory_space<vmem>>, vector<8x512xf32>
    %329 = arith.truncf %324 : vector<8x128xf32> to vector<8x128xbf16>
    %cst_153 = arith.constant dense<0.000000e+00> : vector<8x512xf32>
    %330 = tpu.matmul %329, %12, %cst_153 {dimension_numbers = #tpu.dot_dimension_numbers<[1], [0], [0], [1], [0, 0, 1, 1], [], []>} : vector<8x128xbf16>, vector<128x512xbf16>, vector<8x512xf32> -> vector<8x512xf32>
    %331 = arith.addf %328, %330 : vector<8x512xf32>
    %332 = vector.extract_strided_slice %331 {offsets = [0, 0], sizes = [8, 128], strides = [1, 1]} : vector<8x512xf32> to vector<8x128xf32>
    %333 = arith.negf %332 : vector<8x128xf32>
    %334 = math.exp %333 : vector<8x128xf32>
    %cst_154 = arith.constant 1.000000e+00 : f32
    %335 = vector.broadcast %cst_154 : f32 to vector<8x128xf32>
    %336 = arith.addf %335, %334 : vector<8x128xf32>
    %337 = arith.divf %335, %336 : vector<8x128xf32>
    %338 = vector.extract_strided_slice %331 {offsets = [0, 128], sizes = [8, 128], strides = [1, 1]} : vector<8x512xf32> to vector<8x128xf32>
    %339 = arith.negf %338 : vector<8x128xf32>
    %340 = math.exp %339 : vector<8x128xf32>
    %cst_155 = arith.constant 1.000000e+00 : f32
    %341 = vector.broadcast %cst_155 : f32 to vector<8x128xf32>
    %342 = arith.addf %341, %340 : vector<8x128xf32>
    %343 = arith.divf %341, %342 : vector<8x128xf32>
    %344 = vector.extract_strided_slice %331 {offsets = [0, 256], sizes = [8, 128], strides = [1, 1]} : vector<8x512xf32> to vector<8x128xf32>
    %345 = math.tanh %344 : vector<8x128xf32>
    %346 = vector.extract_strided_slice %331 {offsets = [0, 384], sizes = [8, 128], strides = [1, 1]} : vector<8x512xf32> to vector<8x128xf32>
    %347 = arith.negf %346 : vector<8x128xf32>
    %348 = math.exp %347 : vector<8x128xf32>
    %cst_156 = arith.constant 1.000000e+00 : f32
    %349 = vector.broadcast %cst_156 : f32 to vector<8x128xf32>
    %350 = arith.addf %349, %348 : vector<8x128xf32>
    %351 = arith.divf %349, %350 : vector<8x128xf32>
    %352 = arith.mulf %343, %326 : vector<8x128xf32>
    %353 = arith.mulf %337, %345 : vector<8x128xf32>
    %354 = arith.addf %352, %353 : vector<8x128xf32>
    %355 = math.tanh %354 : vector<8x128xf32>
    %356 = arith.mulf %351, %355 : vector<8x128xf32>
    %c0_157 = arith.constant 0 : index
    %c0_158 = arith.constant 0 : index
    %c0_159 = arith.constant 0 : index
    %357 = vector.load %arg10[%c0_157, %c0_158, %c0_159] : memref<2x8x128xf32, #tpu.memory_space<vmem>>, vector<1x8x128xf32>
    %358 = vector.shape_cast %357 : vector<1x8x128xf32> to vector<8x128xf32>
    %359 = vector.shape_cast %356 : vector<8x128xf32> to vector<1x8x128xf32>
    tpu.vector_store %arg10[%c0_157, %c0_158, %c0_159], %359 {strides = array<i32>} : memref<2x8x128xf32, #tpu.memory_space<vmem>>, vector<1x8x128xf32>,
    %c0_160 = arith.constant 0 : index
    %c0_161 = arith.constant 0 : index
    %c0_162 = arith.constant 0 : index
    %360 = vector.load %arg11[%c0_160, %c0_161, %c0_162] : memref<2x8x128xf32, #tpu.memory_space<vmem>>, vector<1x8x128xf32>
    %361 = vector.shape_cast %360 : vector<1x8x128xf32> to vector<8x128xf32>
    %362 = vector.shape_cast %354 : vector<8x128xf32> to vector<1x8x128xf32>
    tpu.vector_store %arg11[%c0_160, %c0_161, %c0_162], %362 {strides = array<i32>} : memref<2x8x128xf32, #tpu.memory_space<vmem>>, vector<1x8x128xf32>,
    %363 = arith.index_cast %322 : i32 to index
    %c0_163 = arith.constant 0 : index
    %364 = vector.load %arg12[%363, %c0_163] : memref<64x128xf32, #tpu.memory_space<vmem>>, vector<8x128xf32>
    tpu.vector_store %arg12[%363, %c0_163], %356 {strides = array<i32>} : memref<64x128xf32, #tpu.memory_space<vmem>>, vector<8x128xf32>,
    %c8_i32_164 = arith.constant 8 : i32
    %c0_165 = arith.constant 0 : index
    %c0_166 = arith.constant 0 : index
    %365 = vector.load %arg12[%c0_165, %c0_166] : memref<64x128xf32, #tpu.memory_space<vmem>>, vector<64x128xf32>
    %366 = arith.truncf %365 : vector<64x128xf32> to vector<64x128xbf16>
    %c0_167 = arith.constant 0 : index
    %c0_168 = arith.constant 0 : index
    %c0_169 = arith.constant 0 : index
    %367 = vector.load %arg3[%c0_167, %c0_168, %c0_169] : memref<1x128x512xbf16, #tpu.memory_space<vmem>>, vector<1x128x512xbf16>
    %368 = vector.shape_cast %367 : vector<1x128x512xbf16> to vector<128x512xbf16>
    %cst_170 = arith.constant dense<0.000000e+00> : vector<64x512xf32>
    %369 = tpu.matmul %366, %368, %cst_170 {dimension_numbers = #tpu.dot_dimension_numbers<[1], [0], [0], [1], [0, 0, 1, 1], [], []>} : vector<64x128xbf16>, vector<128x512xbf16>, vector<64x512xf32> -> vector<64x512xf32>
    %c1 = arith.constant 1 : index
    %c0_171 = arith.constant 0 : index
    %c0_172 = arith.constant 0 : index
    %370 = vector.load %arg5[%c1, %c0_171, %c0_172] : memref<2x1x512xf32, #tpu.memory_space<vmem>>, vector<1x1x512xf32>
    %371 = vector.shape_cast %370 : vector<1x1x512xf32> to vector<1x512xf32>
    %372 = vector.broadcast %371 : vector<1x512xf32> to vector<64x512xf32>
    %373 = arith.addf %369, %372 : vector<64x512xf32>
    %c0_173 = arith.constant 0 : index
    %c0_174 = arith.constant 0 : index
    %374 = vector.load %arg13[%c0_173, %c0_174] : memref<64x512xf32, #tpu.memory_space<vmem>>, vector<64x512xf32>
    tpu.vector_store %arg13[%c0_173, %c0_174], %373 {strides = array<i32>} : memref<64x512xf32, #tpu.memory_space<vmem>>, vector<64x512xf32>,
    %c1_175 = arith.constant 1 : index
    %c0_176 = arith.constant 0 : index
    %c0_177 = arith.constant 0 : index
    %375 = vector.load %arg4[%c1_175, %c0_176, %c0_177] : memref<2x128x512xbf16, #tpu.memory_space<vmem>>, vector<1x128x512xbf16>
    %376 = vector.shape_cast %375 : vector<1x128x512xbf16> to vector<128x512xbf16>
    %c0_i32_178 = arith.constant 0 : i32
    %c8_i32_179 = arith.constant 8 : i32
    %377 = arith.muli %c0_i32_178, %c8_i32_179 : i32
    %378 = tpu.assume_multiple %377, 8 : i32
    %c1_180 = arith.constant 1 : index
    %c0_181 = arith.constant 0 : index
    %c0_182 = arith.constant 0 : index
    %379 = vector.load %arg10[%c1_180, %c0_181, %c0_182] : memref<2x8x128xf32, #tpu.memory_space<vmem>>, vector<1x8x128xf32>
    %380 = vector.shape_cast %379 : vector<1x8x128xf32> to vector<8x128xf32>
    %c1_183 = arith.constant 1 : index
    %c0_184 = arith.constant 0 : index
    %c0_185 = arith.constant 0 : index
    %381 = vector.load %arg11[%c1_183, %c0_184, %c0_185] : memref<2x8x128xf32, #tpu.memory_space<vmem>>, vector<1x8x128xf32>
    %382 = vector.shape_cast %381 : vector<1x8x128xf32> to vector<8x128xf32>
    %383 = arith.index_cast %378 : i32 to index
    %c0_186 = arith.constant 0 : index
    %384 = vector.load %arg13[%383, %c0_186] : memref<64x512xf32, #tpu.memory_space<vmem>>, vector<8x512xf32>
    %385 = arith.truncf %380 : vector<8x128xf32> to vector<8x128xbf16>
    %cst_187 = arith.constant dense<0.000000e+00> : vector<8x512xf32>
    %386 = tpu.matmul %385, %376, %cst_187 {dimension_numbers = #tpu.dot_dimension_numbers<[1], [0], [0], [1], [0, 0, 1, 1], [], []>} : vector<8x128xbf16>, vector<128x512xbf16>, vector<8x512xf32> -> vector<8x512xf32>
    %387 = arith.addf %384, %386 : vector<8x512xf32>
    %388 = vector.extract_strided_slice %387 {offsets = [0, 0], sizes = [8, 128], strides = [1, 1]} : vector<8x512xf32> to vector<8x128xf32>
    %389 = arith.negf %388 : vector<8x128xf32>
    %390 = math.exp %389 : vector<8x128xf32>
    %cst_188 = arith.constant 1.000000e+00 : f32
    %391 = vector.broadcast %cst_188 : f32 to vector<8x128xf32>
    %392 = arith.addf %391, %390 : vector<8x128xf32>
    %393 = arith.divf %391, %392 : vector<8x128xf32>
    %394 = vector.extract_strided_slice %387 {offsets = [0, 128], sizes = [8, 128], strides = [1, 1]} : vector<8x512xf32> to vector<8x128xf32>
    %395 = arith.negf %394 : vector<8x128xf32>
    %396 = math.exp %395 : vector<8x128xf32>
    %cst_189 = arith.constant 1.000000e+00 : f32
    %397 = vector.broadcast %cst_189 : f32 to vector<8x128xf32>
    %398 = arith.addf %397, %396 : vector<8x128xf32>
    %399 = arith.divf %397, %398 : vector<8x128xf32>
    %400 = vector.extract_strided_slice %387 {offsets = [0, 256], sizes = [8, 128], strides = [1, 1]} : vector<8x512xf32> to vector<8x128xf32>
    %401 = math.tanh %400 : vector<8x128xf32>
    %402 = vector.extract_strided_slice %387 {offsets = [0, 384], sizes = [8, 128], strides = [1, 1]} : vector<8x512xf32> to vector<8x128xf32>
    %403 = arith.negf %402 : vector<8x128xf32>
    %404 = math.exp %403 : vector<8x128xf32>
    %cst_190 = arith.constant 1.000000e+00 : f32
    %405 = vector.broadcast %cst_190 : f32 to vector<8x128xf32>
    %406 = arith.addf %405, %404 : vector<8x128xf32>
    %407 = arith.divf %405, %406 : vector<8x128xf32>
    %408 = arith.mulf %399, %382 : vector<8x128xf32>
    %409 = arith.mulf %393, %401 : vector<8x128xf32>
    %410 = arith.addf %408, %409 : vector<8x128xf32>
    %411 = math.tanh %410 : vector<8x128xf32>
    %412 = arith.mulf %407, %411 : vector<8x128xf32>
    %c1_191 = arith.constant 1 : index
    %c0_192 = arith.constant 0 : index
    %c0_193 = arith.constant 0 : index
    %413 = vector.load %arg10[%c1_191, %c0_192, %c0_193] : memref<2x8x128xf32, #tpu.memory_space<vmem>>, vector<1x8x128xf32>
    %414 = vector.shape_cast %413 : vector<1x8x128xf32> to vector<8x128xf32>
    %415 = vector.shape_cast %412 : vector<8x128xf32> to vector<1x8x128xf32>
    tpu.vector_store %arg10[%c1_191, %c0_192, %c0_193], %415 {strides = array<i32>} : memref<2x8x128xf32, #tpu.memory_space<vmem>>, vector<1x8x128xf32>,
    %c1_194 = arith.constant 1 : index
    %c0_195 = arith.constant 0 : index
    %c0_196 = arith.constant 0 : index
    %416 = vector.load %arg11[%c1_194, %c0_195, %c0_196] : memref<2x8x128xf32, #tpu.memory_space<vmem>>, vector<1x8x128xf32>
    %417 = vector.shape_cast %416 : vector<1x8x128xf32> to vector<8x128xf32>
    %418 = vector.shape_cast %410 : vector<8x128xf32> to vector<1x8x128xf32>
    tpu.vector_store %arg11[%c1_194, %c0_195, %c0_196], %418 {strides = array<i32>} : memref<2x8x128xf32, #tpu.memory_space<vmem>>, vector<1x8x128xf32>,
    %c1_i32_197 = arith.constant 1 : i32
    %c8_i32_198 = arith.constant 8 : i32
    %419 = arith.muli %c1_i32_197, %c8_i32_198 : i32
    %420 = tpu.assume_multiple %419, 8 : i32
    %c1_199 = arith.constant 1 : index
    %c0_200 = arith.constant 0 : index
    %c0_201 = arith.constant 0 : index
    %421 = vector.load %arg10[%c1_199, %c0_200, %c0_201] : memref<2x8x128xf32, #tpu.memory_space<vmem>>, vector<1x8x128xf32>
    %422 = vector.shape_cast %421 : vector<1x8x128xf32> to vector<8x128xf32>
    %c1_202 = arith.constant 1 : index
    %c0_203 = arith.constant 0 : index
    %c0_204 = arith.constant 0 : index
    %423 = vector.load %arg11[%c1_202, %c0_203, %c0_204] : memref<2x8x128xf32, #tpu.memory_space<vmem>>, vector<1x8x128xf32>
    %424 = vector.shape_cast %423 : vector<1x8x128xf32> to vector<8x128xf32>
    %425 = arith.index_cast %420 : i32 to index
    %c0_205 = arith.constant 0 : index
    %426 = vector.load %arg13[%425, %c0_205] : memref<64x512xf32, #tpu.memory_space<vmem>>, vector<8x512xf32>
    %427 = arith.truncf %422 : vector<8x128xf32> to vector<8x128xbf16>
    %cst_206 = arith.constant dense<0.000000e+00> : vector<8x512xf32>
    %428 = tpu.matmul %427, %376, %cst_206 {dimension_numbers = #tpu.dot_dimension_numbers<[1], [0], [0], [1], [0, 0, 1, 1], [], []>} : vector<8x128xbf16>, vector<128x512xbf16>, vector<8x512xf32> -> vector<8x512xf32>
    %429 = arith.addf %426, %428 : vector<8x512xf32>
    %430 = vector.extract_strided_slice %429 {offsets = [0, 0], sizes = [8, 128], strides = [1, 1]} : vector<8x512xf32> to vector<8x128xf32>
    %431 = arith.negf %430 : vector<8x128xf32>
    %432 = math.exp %431 : vector<8x128xf32>
    %cst_207 = arith.constant 1.000000e+00 : f32
    %433 = vector.broadcast %cst_207 : f32 to vector<8x128xf32>
    %434 = arith.addf %433, %432 : vector<8x128xf32>
    %435 = arith.divf %433, %434 : vector<8x128xf32>
    %436 = vector.extract_strided_slice %429 {offsets = [0, 128], sizes = [8, 128], strides = [1, 1]} : vector<8x512xf32> to vector<8x128xf32>
    %437 = arith.negf %436 : vector<8x128xf32>
    %438 = math.exp %437 : vector<8x128xf32>
    %cst_208 = arith.constant 1.000000e+00 : f32
    %439 = vector.broadcast %cst_208 : f32 to vector<8x128xf32>
    %440 = arith.addf %439, %438 : vector<8x128xf32>
    %441 = arith.divf %439, %440 : vector<8x128xf32>
    %442 = vector.extract_strided_slice %429 {offsets = [0, 256], sizes = [8, 128], strides = [1, 1]} : vector<8x512xf32> to vector<8x128xf32>
    %443 = math.tanh %442 : vector<8x128xf32>
    %444 = vector.extract_strided_slice %429 {offsets = [0, 384], sizes = [8, 128], strides = [1, 1]} : vector<8x512xf32> to vector<8x128xf32>
    %445 = arith.negf %444 : vector<8x128xf32>
    %446 = math.exp %445 : vector<8x128xf32>
    %cst_209 = arith.constant 1.000000e+00 : f32
    %447 = vector.broadcast %cst_209 : f32 to vector<8x128xf32>
    %448 = arith.addf %447, %446 : vector<8x128xf32>
    %449 = arith.divf %447, %448 : vector<8x128xf32>
    %450 = arith.mulf %441, %424 : vector<8x128xf32>
    %451 = arith.mulf %435, %443 : vector<8x128xf32>
    %452 = arith.addf %450, %451 : vector<8x128xf32>
    %453 = math.tanh %452 : vector<8x128xf32>
    %454 = arith.mulf %449, %453 : vector<8x128xf32>
    %c1_210 = arith.constant 1 : index
    %c0_211 = arith.constant 0 : index
    %c0_212 = arith.constant 0 : index
    %455 = vector.load %arg10[%c1_210, %c0_211, %c0_212] : memref<2x8x128xf32, #tpu.memory_space<vmem>>, vector<1x8x128xf32>
    %456 = vector.shape_cast %455 : vector<1x8x128xf32> to vector<8x128xf32>
    %457 = vector.shape_cast %454 : vector<8x128xf32> to vector<1x8x128xf32>
    tpu.vector_store %arg10[%c1_210, %c0_211, %c0_212], %457 {strides = array<i32>} : memref<2x8x128xf32, #tpu.memory_space<vmem>>, vector<1x8x128xf32>,
    %c1_213 = arith.constant 1 : index
    %c0_214 = arith.constant 0 : index
    %c0_215 = arith.constant 0 : index
    %458 = vector.load %arg11[%c1_213, %c0_214, %c0_215] : memref<2x8x128xf32, #tpu.memory_space<vmem>>, vector<1x8x128xf32>
    %459 = vector.shape_cast %458 : vector<1x8x128xf32> to vector<8x128xf32>
    %460 = vector.shape_cast %452 : vector<8x128xf32> to vector<1x8x128xf32>
    tpu.vector_store %arg11[%c1_213, %c0_214, %c0_215], %460 {strides = array<i32>} : memref<2x8x128xf32, #tpu.memory_space<vmem>>, vector<1x8x128xf32>,
    %c2_i32_216 = arith.constant 2 : i32
    %c8_i32_217 = arith.constant 8 : i32
    %461 = arith.muli %c2_i32_216, %c8_i32_217 : i32
    %462 = tpu.assume_multiple %461, 8 : i32
    %c1_218 = arith.constant 1 : index
    %c0_219 = arith.constant 0 : index
    %c0_220 = arith.constant 0 : index
    %463 = vector.load %arg10[%c1_218, %c0_219, %c0_220] : memref<2x8x128xf32, #tpu.memory_space<vmem>>, vector<1x8x128xf32>
    %464 = vector.shape_cast %463 : vector<1x8x128xf32> to vector<8x128xf32>
    %c1_221 = arith.constant 1 : index
    %c0_222 = arith.constant 0 : index
    %c0_223 = arith.constant 0 : index
    %465 = vector.load %arg11[%c1_221, %c0_222, %c0_223] : memref<2x8x128xf32, #tpu.memory_space<vmem>>, vector<1x8x128xf32>
    %466 = vector.shape_cast %465 : vector<1x8x128xf32> to vector<8x128xf32>
    %467 = arith.index_cast %462 : i32 to index
    %c0_224 = arith.constant 0 : index
    %468 = vector.load %arg13[%467, %c0_224] : memref<64x512xf32, #tpu.memory_space<vmem>>, vector<8x512xf32>
    %469 = arith.truncf %464 : vector<8x128xf32> to vector<8x128xbf16>
    %cst_225 = arith.constant dense<0.000000e+00> : vector<8x512xf32>
    %470 = tpu.matmul %469, %376, %cst_225 {dimension_numbers = #tpu.dot_dimension_numbers<[1], [0], [0], [1], [0, 0, 1, 1], [], []>} : vector<8x128xbf16>, vector<128x512xbf16>, vector<8x512xf32> -> vector<8x512xf32>
    %471 = arith.addf %468, %470 : vector<8x512xf32>
    %472 = vector.extract_strided_slice %471 {offsets = [0, 0], sizes = [8, 128], strides = [1, 1]} : vector<8x512xf32> to vector<8x128xf32>
    %473 = arith.negf %472 : vector<8x128xf32>
    %474 = math.exp %473 : vector<8x128xf32>
    %cst_226 = arith.constant 1.000000e+00 : f32
    %475 = vector.broadcast %cst_226 : f32 to vector<8x128xf32>
    %476 = arith.addf %475, %474 : vector<8x128xf32>
    %477 = arith.divf %475, %476 : vector<8x128xf32>
    %478 = vector.extract_strided_slice %471 {offsets = [0, 128], sizes = [8, 128], strides = [1, 1]} : vector<8x512xf32> to vector<8x128xf32>
    %479 = arith.negf %478 : vector<8x128xf32>
    %480 = math.exp %479 : vector<8x128xf32>
    %cst_227 = arith.constant 1.000000e+00 : f32
    %481 = vector.broadcast %cst_227 : f32 to vector<8x128xf32>
    %482 = arith.addf %481, %480 : vector<8x128xf32>
    %483 = arith.divf %481, %482 : vector<8x128xf32>
    %484 = vector.extract_strided_slice %471 {offsets = [0, 256], sizes = [8, 128], strides = [1, 1]} : vector<8x512xf32> to vector<8x128xf32>
    %485 = math.tanh %484 : vector<8x128xf32>
    %486 = vector.extract_strided_slice %471 {offsets = [0, 384], sizes = [8, 128], strides = [1, 1]} : vector<8x512xf32> to vector<8x128xf32>
    %487 = arith.negf %486 : vector<8x128xf32>
    %488 = math.exp %487 : vector<8x128xf32>
    %cst_228 = arith.constant 1.000000e+00 : f32
    %489 = vector.broadcast %cst_228 : f32 to vector<8x128xf32>
    %490 = arith.addf %489, %488 : vector<8x128xf32>
    %491 = arith.divf %489, %490 : vector<8x128xf32>
    %492 = arith.mulf %483, %466 : vector<8x128xf32>
    %493 = arith.mulf %477, %485 : vector<8x128xf32>
    %494 = arith.addf %492, %493 : vector<8x128xf32>
    %495 = math.tanh %494 : vector<8x128xf32>
    %496 = arith.mulf %491, %495 : vector<8x128xf32>
    %c1_229 = arith.constant 1 : index
    %c0_230 = arith.constant 0 : index
    %c0_231 = arith.constant 0 : index
    %497 = vector.load %arg10[%c1_229, %c0_230, %c0_231] : memref<2x8x128xf32, #tpu.memory_space<vmem>>, vector<1x8x128xf32>
    %498 = vector.shape_cast %497 : vector<1x8x128xf32> to vector<8x128xf32>
    %499 = vector.shape_cast %496 : vector<8x128xf32> to vector<1x8x128xf32>
    tpu.vector_store %arg10[%c1_229, %c0_230, %c0_231], %499 {strides = array<i32>} : memref<2x8x128xf32, #tpu.memory_space<vmem>>, vector<1x8x128xf32>,
    %c1_232 = arith.constant 1 : index
    %c0_233 = arith.constant 0 : index
    %c0_234 = arith.constant 0 : index
    %500 = vector.load %arg11[%c1_232, %c0_233, %c0_234] : memref<2x8x128xf32, #tpu.memory_space<vmem>>, vector<1x8x128xf32>
    %501 = vector.shape_cast %500 : vector<1x8x128xf32> to vector<8x128xf32>
    %502 = vector.shape_cast %494 : vector<8x128xf32> to vector<1x8x128xf32>
    tpu.vector_store %arg11[%c1_232, %c0_233, %c0_234], %502 {strides = array<i32>} : memref<2x8x128xf32, #tpu.memory_space<vmem>>, vector<1x8x128xf32>,
    %c3_i32_235 = arith.constant 3 : i32
    %c8_i32_236 = arith.constant 8 : i32
    %503 = arith.muli %c3_i32_235, %c8_i32_236 : i32
    %504 = tpu.assume_multiple %503, 8 : i32
    %c1_237 = arith.constant 1 : index
    %c0_238 = arith.constant 0 : index
    %c0_239 = arith.constant 0 : index
    %505 = vector.load %arg10[%c1_237, %c0_238, %c0_239] : memref<2x8x128xf32, #tpu.memory_space<vmem>>, vector<1x8x128xf32>
    %506 = vector.shape_cast %505 : vector<1x8x128xf32> to vector<8x128xf32>
    %c1_240 = arith.constant 1 : index
    %c0_241 = arith.constant 0 : index
    %c0_242 = arith.constant 0 : index
    %507 = vector.load %arg11[%c1_240, %c0_241, %c0_242] : memref<2x8x128xf32, #tpu.memory_space<vmem>>, vector<1x8x128xf32>
    %508 = vector.shape_cast %507 : vector<1x8x128xf32> to vector<8x128xf32>
    %509 = arith.index_cast %504 : i32 to index
    %c0_243 = arith.constant 0 : index
    %510 = vector.load %arg13[%509, %c0_243] : memref<64x512xf32, #tpu.memory_space<vmem>>, vector<8x512xf32>
    %511 = arith.truncf %506 : vector<8x128xf32> to vector<8x128xbf16>
    %cst_244 = arith.constant dense<0.000000e+00> : vector<8x512xf32>
    %512 = tpu.matmul %511, %376, %cst_244 {dimension_numbers = #tpu.dot_dimension_numbers<[1], [0], [0], [1], [0, 0, 1, 1], [], []>} : vector<8x128xbf16>, vector<128x512xbf16>, vector<8x512xf32> -> vector<8x512xf32>
    %513 = arith.addf %510, %512 : vector<8x512xf32>
    %514 = vector.extract_strided_slice %513 {offsets = [0, 0], sizes = [8, 128], strides = [1, 1]} : vector<8x512xf32> to vector<8x128xf32>
    %515 = arith.negf %514 : vector<8x128xf32>
    %516 = math.exp %515 : vector<8x128xf32>
    %cst_245 = arith.constant 1.000000e+00 : f32
    %517 = vector.broadcast %cst_245 : f32 to vector<8x128xf32>
    %518 = arith.addf %517, %516 : vector<8x128xf32>
    %519 = arith.divf %517, %518 : vector<8x128xf32>
    %520 = vector.extract_strided_slice %513 {offsets = [0, 128], sizes = [8, 128], strides = [1, 1]} : vector<8x512xf32> to vector<8x128xf32>
    %521 = arith.negf %520 : vector<8x128xf32>
    %522 = math.exp %521 : vector<8x128xf32>
    %cst_246 = arith.constant 1.000000e+00 : f32
    %523 = vector.broadcast %cst_246 : f32 to vector<8x128xf32>
    %524 = arith.addf %523, %522 : vector<8x128xf32>
    %525 = arith.divf %523, %524 : vector<8x128xf32>
    %526 = vector.extract_strided_slice %513 {offsets = [0, 256], sizes = [8, 128], strides = [1, 1]} : vector<8x512xf32> to vector<8x128xf32>
    %527 = math.tanh %526 : vector<8x128xf32>
    %528 = vector.extract_strided_slice %513 {offsets = [0, 384], sizes = [8, 128], strides = [1, 1]} : vector<8x512xf32> to vector<8x128xf32>
    %529 = arith.negf %528 : vector<8x128xf32>
    %530 = math.exp %529 : vector<8x128xf32>
    %cst_247 = arith.constant 1.000000e+00 : f32
    %531 = vector.broadcast %cst_247 : f32 to vector<8x128xf32>
    %532 = arith.addf %531, %530 : vector<8x128xf32>
    %533 = arith.divf %531, %532 : vector<8x128xf32>
    %534 = arith.mulf %525, %508 : vector<8x128xf32>
    %535 = arith.mulf %519, %527 : vector<8x128xf32>
    %536 = arith.addf %534, %535 : vector<8x128xf32>
    %537 = math.tanh %536 : vector<8x128xf32>
    %538 = arith.mulf %533, %537 : vector<8x128xf32>
    %c1_248 = arith.constant 1 : index
    %c0_249 = arith.constant 0 : index
    %c0_250 = arith.constant 0 : index
    %539 = vector.load %arg10[%c1_248, %c0_249, %c0_250] : memref<2x8x128xf32, #tpu.memory_space<vmem>>, vector<1x8x128xf32>
    %540 = vector.shape_cast %539 : vector<1x8x128xf32> to vector<8x128xf32>
    %541 = vector.shape_cast %538 : vector<8x128xf32> to vector<1x8x128xf32>
    tpu.vector_store %arg10[%c1_248, %c0_249, %c0_250], %541 {strides = array<i32>} : memref<2x8x128xf32, #tpu.memory_space<vmem>>, vector<1x8x128xf32>,
    %c1_251 = arith.constant 1 : index
    %c0_252 = arith.constant 0 : index
    %c0_253 = arith.constant 0 : index
    %542 = vector.load %arg11[%c1_251, %c0_252, %c0_253] : memref<2x8x128xf32, #tpu.memory_space<vmem>>, vector<1x8x128xf32>
    %543 = vector.shape_cast %542 : vector<1x8x128xf32> to vector<8x128xf32>
    %544 = vector.shape_cast %536 : vector<8x128xf32> to vector<1x8x128xf32>
    tpu.vector_store %arg11[%c1_251, %c0_252, %c0_253], %544 {strides = array<i32>} : memref<2x8x128xf32, #tpu.memory_space<vmem>>, vector<1x8x128xf32>,
    %c4_i32_254 = arith.constant 4 : i32
    %c8_i32_255 = arith.constant 8 : i32
    %545 = arith.muli %c4_i32_254, %c8_i32_255 : i32
    %546 = tpu.assume_multiple %545, 8 : i32
    %c1_256 = arith.constant 1 : index
    %c0_257 = arith.constant 0 : index
    %c0_258 = arith.constant 0 : index
    %547 = vector.load %arg10[%c1_256, %c0_257, %c0_258] : memref<2x8x128xf32, #tpu.memory_space<vmem>>, vector<1x8x128xf32>
    %548 = vector.shape_cast %547 : vector<1x8x128xf32> to vector<8x128xf32>
    %c1_259 = arith.constant 1 : index
    %c0_260 = arith.constant 0 : index
    %c0_261 = arith.constant 0 : index
    %549 = vector.load %arg11[%c1_259, %c0_260, %c0_261] : memref<2x8x128xf32, #tpu.memory_space<vmem>>, vector<1x8x128xf32>
    %550 = vector.shape_cast %549 : vector<1x8x128xf32> to vector<8x128xf32>
    %551 = arith.index_cast %546 : i32 to index
    %c0_262 = arith.constant 0 : index
    %552 = vector.load %arg13[%551, %c0_262] : memref<64x512xf32, #tpu.memory_space<vmem>>, vector<8x512xf32>
    %553 = arith.truncf %548 : vector<8x128xf32> to vector<8x128xbf16>
    %cst_263 = arith.constant dense<0.000000e+00> : vector<8x512xf32>
    %554 = tpu.matmul %553, %376, %cst_263 {dimension_numbers = #tpu.dot_dimension_numbers<[1], [0], [0], [1], [0, 0, 1, 1], [], []>} : vector<8x128xbf16>, vector<128x512xbf16>, vector<8x512xf32> -> vector<8x512xf32>
    %555 = arith.addf %552, %554 : vector<8x512xf32>
    %556 = vector.extract_strided_slice %555 {offsets = [0, 0], sizes = [8, 128], strides = [1, 1]} : vector<8x512xf32> to vector<8x128xf32>
    %557 = arith.negf %556 : vector<8x128xf32>
    %558 = math.exp %557 : vector<8x128xf32>
    %cst_264 = arith.constant 1.000000e+00 : f32
    %559 = vector.broadcast %cst_264 : f32 to vector<8x128xf32>
    %560 = arith.addf %559, %558 : vector<8x128xf32>
    %561 = arith.divf %559, %560 : vector<8x128xf32>
    %562 = vector.extract_strided_slice %555 {offsets = [0, 128], sizes = [8, 128], strides = [1, 1]} : vector<8x512xf32> to vector<8x128xf32>
    %563 = arith.negf %562 : vector<8x128xf32>
    %564 = math.exp %563 : vector<8x128xf32>
    %cst_265 = arith.constant 1.000000e+00 : f32
    %565 = vector.broadcast %cst_265 : f32 to vector<8x128xf32>
    %566 = arith.addf %565, %564 : vector<8x128xf32>
    %567 = arith.divf %565, %566 : vector<8x128xf32>
    %568 = vector.extract_strided_slice %555 {offsets = [0, 256], sizes = [8, 128], strides = [1, 1]} : vector<8x512xf32> to vector<8x128xf32>
    %569 = math.tanh %568 : vector<8x128xf32>
    %570 = vector.extract_strided_slice %555 {offsets = [0, 384], sizes = [8, 128], strides = [1, 1]} : vector<8x512xf32> to vector<8x128xf32>
    %571 = arith.negf %570 : vector<8x128xf32>
    %572 = math.exp %571 : vector<8x128xf32>
    %cst_266 = arith.constant 1.000000e+00 : f32
    %573 = vector.broadcast %cst_266 : f32 to vector<8x128xf32>
    %574 = arith.addf %573, %572 : vector<8x128xf32>
    %575 = arith.divf %573, %574 : vector<8x128xf32>
    %576 = arith.mulf %567, %550 : vector<8x128xf32>
    %577 = arith.mulf %561, %569 : vector<8x128xf32>
    %578 = arith.addf %576, %577 : vector<8x128xf32>
    %579 = math.tanh %578 : vector<8x128xf32>
    %580 = arith.mulf %575, %579 : vector<8x128xf32>
    %c1_267 = arith.constant 1 : index
    %c0_268 = arith.constant 0 : index
    %c0_269 = arith.constant 0 : index
    %581 = vector.load %arg10[%c1_267, %c0_268, %c0_269] : memref<2x8x128xf32, #tpu.memory_space<vmem>>, vector<1x8x128xf32>
    %582 = vector.shape_cast %581 : vector<1x8x128xf32> to vector<8x128xf32>
    %583 = vector.shape_cast %580 : vector<8x128xf32> to vector<1x8x128xf32>
    tpu.vector_store %arg10[%c1_267, %c0_268, %c0_269], %583 {strides = array<i32>} : memref<2x8x128xf32, #tpu.memory_space<vmem>>, vector<1x8x128xf32>,
    %c1_270 = arith.constant 1 : index
    %c0_271 = arith.constant 0 : index
    %c0_272 = arith.constant 0 : index
    %584 = vector.load %arg11[%c1_270, %c0_271, %c0_272] : memref<2x8x128xf32, #tpu.memory_space<vmem>>, vector<1x8x128xf32>
    %585 = vector.shape_cast %584 : vector<1x8x128xf32> to vector<8x128xf32>
    %586 = vector.shape_cast %578 : vector<8x128xf32> to vector<1x8x128xf32>
    tpu.vector_store %arg11[%c1_270, %c0_271, %c0_272], %586 {strides = array<i32>} : memref<2x8x128xf32, #tpu.memory_space<vmem>>, vector<1x8x128xf32>,
    %c5_i32_273 = arith.constant 5 : i32
    %c8_i32_274 = arith.constant 8 : i32
    %587 = arith.muli %c5_i32_273, %c8_i32_274 : i32
    %588 = tpu.assume_multiple %587, 8 : i32
    %c1_275 = arith.constant 1 : index
    %c0_276 = arith.constant 0 : index
    %c0_277 = arith.constant 0 : index
    %589 = vector.load %arg10[%c1_275, %c0_276, %c0_277] : memref<2x8x128xf32, #tpu.memory_space<vmem>>, vector<1x8x128xf32>
    %590 = vector.shape_cast %589 : vector<1x8x128xf32> to vector<8x128xf32>
    %c1_278 = arith.constant 1 : index
    %c0_279 = arith.constant 0 : index
    %c0_280 = arith.constant 0 : index
    %591 = vector.load %arg11[%c1_278, %c0_279, %c0_280] : memref<2x8x128xf32, #tpu.memory_space<vmem>>, vector<1x8x128xf32>
    %592 = vector.shape_cast %591 : vector<1x8x128xf32> to vector<8x128xf32>
    %593 = arith.index_cast %588 : i32 to index
    %c0_281 = arith.constant 0 : index
    %594 = vector.load %arg13[%593, %c0_281] : memref<64x512xf32, #tpu.memory_space<vmem>>, vector<8x512xf32>
    %595 = arith.truncf %590 : vector<8x128xf32> to vector<8x128xbf16>
    %cst_282 = arith.constant dense<0.000000e+00> : vector<8x512xf32>
    %596 = tpu.matmul %595, %376, %cst_282 {dimension_numbers = #tpu.dot_dimension_numbers<[1], [0], [0], [1], [0, 0, 1, 1], [], []>} : vector<8x128xbf16>, vector<128x512xbf16>, vector<8x512xf32> -> vector<8x512xf32>
    %597 = arith.addf %594, %596 : vector<8x512xf32>
    %598 = vector.extract_strided_slice %597 {offsets = [0, 0], sizes = [8, 128], strides = [1, 1]} : vector<8x512xf32> to vector<8x128xf32>
    %599 = arith.negf %598 : vector<8x128xf32>
    %600 = math.exp %599 : vector<8x128xf32>
    %cst_283 = arith.constant 1.000000e+00 : f32
    %601 = vector.broadcast %cst_283 : f32 to vector<8x128xf32>
    %602 = arith.addf %601, %600 : vector<8x128xf32>
    %603 = arith.divf %601, %602 : vector<8x128xf32>
    %604 = vector.extract_strided_slice %597 {offsets = [0, 128], sizes = [8, 128], strides = [1, 1]} : vector<8x512xf32> to vector<8x128xf32>
    %605 = arith.negf %604 : vector<8x128xf32>
    %606 = math.exp %605 : vector<8x128xf32>
    %cst_284 = arith.constant 1.000000e+00 : f32
    %607 = vector.broadcast %cst_284 : f32 to vector<8x128xf32>
    %608 = arith.addf %607, %606 : vector<8x128xf32>
    %609 = arith.divf %607, %608 : vector<8x128xf32>
    %610 = vector.extract_strided_slice %597 {offsets = [0, 256], sizes = [8, 128], strides = [1, 1]} : vector<8x512xf32> to vector<8x128xf32>
    %611 = math.tanh %610 : vector<8x128xf32>
    %612 = vector.extract_strided_slice %597 {offsets = [0, 384], sizes = [8, 128], strides = [1, 1]} : vector<8x512xf32> to vector<8x128xf32>
    %613 = arith.negf %612 : vector<8x128xf32>
    %614 = math.exp %613 : vector<8x128xf32>
    %cst_285 = arith.constant 1.000000e+00 : f32
    %615 = vector.broadcast %cst_285 : f32 to vector<8x128xf32>
    %616 = arith.addf %615, %614 : vector<8x128xf32>
    %617 = arith.divf %615, %616 : vector<8x128xf32>
    %618 = arith.mulf %609, %592 : vector<8x128xf32>
    %619 = arith.mulf %603, %611 : vector<8x128xf32>
    %620 = arith.addf %618, %619 : vector<8x128xf32>
    %621 = math.tanh %620 : vector<8x128xf32>
    %622 = arith.mulf %617, %621 : vector<8x128xf32>
    %c1_286 = arith.constant 1 : index
    %c0_287 = arith.constant 0 : index
    %c0_288 = arith.constant 0 : index
    %623 = vector.load %arg10[%c1_286, %c0_287, %c0_288] : memref<2x8x128xf32, #tpu.memory_space<vmem>>, vector<1x8x128xf32>
    %624 = vector.shape_cast %623 : vector<1x8x128xf32> to vector<8x128xf32>
    %625 = vector.shape_cast %622 : vector<8x128xf32> to vector<1x8x128xf32>
    tpu.vector_store %arg10[%c1_286, %c0_287, %c0_288], %625 {strides = array<i32>} : memref<2x8x128xf32, #tpu.memory_space<vmem>>, vector<1x8x128xf32>,
    %c1_289 = arith.constant 1 : index
    %c0_290 = arith.constant 0 : index
    %c0_291 = arith.constant 0 : index
    %626 = vector.load %arg11[%c1_289, %c0_290, %c0_291] : memref<2x8x128xf32, #tpu.memory_space<vmem>>, vector<1x8x128xf32>
    %627 = vector.shape_cast %626 : vector<1x8x128xf32> to vector<8x128xf32>
    %628 = vector.shape_cast %620 : vector<8x128xf32> to vector<1x8x128xf32>
    tpu.vector_store %arg11[%c1_289, %c0_290, %c0_291], %628 {strides = array<i32>} : memref<2x8x128xf32, #tpu.memory_space<vmem>>, vector<1x8x128xf32>,
    %c6_i32_292 = arith.constant 6 : i32
    %c8_i32_293 = arith.constant 8 : i32
    %629 = arith.muli %c6_i32_292, %c8_i32_293 : i32
    %630 = tpu.assume_multiple %629, 8 : i32
    %c1_294 = arith.constant 1 : index
    %c0_295 = arith.constant 0 : index
    %c0_296 = arith.constant 0 : index
    %631 = vector.load %arg10[%c1_294, %c0_295, %c0_296] : memref<2x8x128xf32, #tpu.memory_space<vmem>>, vector<1x8x128xf32>
    %632 = vector.shape_cast %631 : vector<1x8x128xf32> to vector<8x128xf32>
    %c1_297 = arith.constant 1 : index
    %c0_298 = arith.constant 0 : index
    %c0_299 = arith.constant 0 : index
    %633 = vector.load %arg11[%c1_297, %c0_298, %c0_299] : memref<2x8x128xf32, #tpu.memory_space<vmem>>, vector<1x8x128xf32>
    %634 = vector.shape_cast %633 : vector<1x8x128xf32> to vector<8x128xf32>
    %635 = arith.index_cast %630 : i32 to index
    %c0_300 = arith.constant 0 : index
    %636 = vector.load %arg13[%635, %c0_300] : memref<64x512xf32, #tpu.memory_space<vmem>>, vector<8x512xf32>
    %637 = arith.truncf %632 : vector<8x128xf32> to vector<8x128xbf16>
    %cst_301 = arith.constant dense<0.000000e+00> : vector<8x512xf32>
    %638 = tpu.matmul %637, %376, %cst_301 {dimension_numbers = #tpu.dot_dimension_numbers<[1], [0], [0], [1], [0, 0, 1, 1], [], []>} : vector<8x128xbf16>, vector<128x512xbf16>, vector<8x512xf32> -> vector<8x512xf32>
    %639 = arith.addf %636, %638 : vector<8x512xf32>
    %640 = vector.extract_strided_slice %639 {offsets = [0, 0], sizes = [8, 128], strides = [1, 1]} : vector<8x512xf32> to vector<8x128xf32>
    %641 = arith.negf %640 : vector<8x128xf32>
    %642 = math.exp %641 : vector<8x128xf32>
    %cst_302 = arith.constant 1.000000e+00 : f32
    %643 = vector.broadcast %cst_302 : f32 to vector<8x128xf32>
    %644 = arith.addf %643, %642 : vector<8x128xf32>
    %645 = arith.divf %643, %644 : vector<8x128xf32>
    %646 = vector.extract_strided_slice %639 {offsets = [0, 128], sizes = [8, 128], strides = [1, 1]} : vector<8x512xf32> to vector<8x128xf32>
    %647 = arith.negf %646 : vector<8x128xf32>
    %648 = math.exp %647 : vector<8x128xf32>
    %cst_303 = arith.constant 1.000000e+00 : f32
    %649 = vector.broadcast %cst_303 : f32 to vector<8x128xf32>
    %650 = arith.addf %649, %648 : vector<8x128xf32>
    %651 = arith.divf %649, %650 : vector<8x128xf32>
    %652 = vector.extract_strided_slice %639 {offsets = [0, 256], sizes = [8, 128], strides = [1, 1]} : vector<8x512xf32> to vector<8x128xf32>
    %653 = math.tanh %652 : vector<8x128xf32>
    %654 = vector.extract_strided_slice %639 {offsets = [0, 384], sizes = [8, 128], strides = [1, 1]} : vector<8x512xf32> to vector<8x128xf32>
    %655 = arith.negf %654 : vector<8x128xf32>
    %656 = math.exp %655 : vector<8x128xf32>
    %cst_304 = arith.constant 1.000000e+00 : f32
    %657 = vector.broadcast %cst_304 : f32 to vector<8x128xf32>
    %658 = arith.addf %657, %656 : vector<8x128xf32>
    %659 = arith.divf %657, %658 : vector<8x128xf32>
    %660 = arith.mulf %651, %634 : vector<8x128xf32>
    %661 = arith.mulf %645, %653 : vector<8x128xf32>
    %662 = arith.addf %660, %661 : vector<8x128xf32>
    %663 = math.tanh %662 : vector<8x128xf32>
    %664 = arith.mulf %659, %663 : vector<8x128xf32>
    %c1_305 = arith.constant 1 : index
    %c0_306 = arith.constant 0 : index
    %c0_307 = arith.constant 0 : index
    %665 = vector.load %arg10[%c1_305, %c0_306, %c0_307] : memref<2x8x128xf32, #tpu.memory_space<vmem>>, vector<1x8x128xf32>
    %666 = vector.shape_cast %665 : vector<1x8x128xf32> to vector<8x128xf32>
    %667 = vector.shape_cast %664 : vector<8x128xf32> to vector<1x8x128xf32>
    tpu.vector_store %arg10[%c1_305, %c0_306, %c0_307], %667 {strides = array<i32>} : memref<2x8x128xf32, #tpu.memory_space<vmem>>, vector<1x8x128xf32>,
    %c1_308 = arith.constant 1 : index
    %c0_309 = arith.constant 0 : index
    %c0_310 = arith.constant 0 : index
    %668 = vector.load %arg11[%c1_308, %c0_309, %c0_310] : memref<2x8x128xf32, #tpu.memory_space<vmem>>, vector<1x8x128xf32>
    %669 = vector.shape_cast %668 : vector<1x8x128xf32> to vector<8x128xf32>
    %670 = vector.shape_cast %662 : vector<8x128xf32> to vector<1x8x128xf32>
    tpu.vector_store %arg11[%c1_308, %c0_309, %c0_310], %670 {strides = array<i32>} : memref<2x8x128xf32, #tpu.memory_space<vmem>>, vector<1x8x128xf32>,
    %c7_i32_311 = arith.constant 7 : i32
    %c8_i32_312 = arith.constant 8 : i32
    %671 = arith.muli %c7_i32_311, %c8_i32_312 : i32
    %672 = tpu.assume_multiple %671, 8 : i32
    %c1_313 = arith.constant 1 : index
    %c0_314 = arith.constant 0 : index
    %c0_315 = arith.constant 0 : index
    %673 = vector.load %arg10[%c1_313, %c0_314, %c0_315] : memref<2x8x128xf32, #tpu.memory_space<vmem>>, vector<1x8x128xf32>
    %674 = vector.shape_cast %673 : vector<1x8x128xf32> to vector<8x128xf32>
    %c1_316 = arith.constant 1 : index
    %c0_317 = arith.constant 0 : index
    %c0_318 = arith.constant 0 : index
    %675 = vector.load %arg11[%c1_316, %c0_317, %c0_318] : memref<2x8x128xf32, #tpu.memory_space<vmem>>, vector<1x8x128xf32>
    %676 = vector.shape_cast %675 : vector<1x8x128xf32> to vector<8x128xf32>
    %677 = arith.index_cast %672 : i32 to index
    %c0_319 = arith.constant 0 : index
    %678 = vector.load %arg13[%677, %c0_319] : memref<64x512xf32, #tpu.memory_space<vmem>>, vector<8x512xf32>
    %679 = arith.truncf %674 : vector<8x128xf32> to vector<8x128xbf16>
    %cst_320 = arith.constant dense<0.000000e+00> : vector<8x512xf32>
    %680 = tpu.matmul %679, %376, %cst_320 {dimension_numbers = #tpu.dot_dimension_numbers<[1], [0], [0], [1], [0, 0, 1, 1], [], []>} : vector<8x128xbf16>, vector<128x512xbf16>, vector<8x512xf32> -> vector<8x512xf32>
    %681 = arith.addf %678, %680 : vector<8x512xf32>
    %682 = vector.extract_strided_slice %681 {offsets = [0, 0], sizes = [8, 128], strides = [1, 1]} : vector<8x512xf32> to vector<8x128xf32>
    %683 = arith.negf %682 : vector<8x128xf32>
    %684 = math.exp %683 : vector<8x128xf32>
    %cst_321 = arith.constant 1.000000e+00 : f32
    %685 = vector.broadcast %cst_321 : f32 to vector<8x128xf32>
    %686 = arith.addf %685, %684 : vector<8x128xf32>
    %687 = arith.divf %685, %686 : vector<8x128xf32>
    %688 = vector.extract_strided_slice %681 {offsets = [0, 128], sizes = [8, 128], strides = [1, 1]} : vector<8x512xf32> to vector<8x128xf32>
    %689 = arith.negf %688 : vector<8x128xf32>
    %690 = math.exp %689 : vector<8x128xf32>
    %cst_322 = arith.constant 1.000000e+00 : f32
    %691 = vector.broadcast %cst_322 : f32 to vector<8x128xf32>
    %692 = arith.addf %691, %690 : vector<8x128xf32>
    %693 = arith.divf %691, %692 : vector<8x128xf32>
    %694 = vector.extract_strided_slice %681 {offsets = [0, 256], sizes = [8, 128], strides = [1, 1]} : vector<8x512xf32> to vector<8x128xf32>
    %695 = math.tanh %694 : vector<8x128xf32>
    %696 = vector.extract_strided_slice %681 {offsets = [0, 384], sizes = [8, 128], strides = [1, 1]} : vector<8x512xf32> to vector<8x128xf32>
    %697 = arith.negf %696 : vector<8x128xf32>
    %698 = math.exp %697 : vector<8x128xf32>
    %cst_323 = arith.constant 1.000000e+00 : f32
    %699 = vector.broadcast %cst_323 : f32 to vector<8x128xf32>
    %700 = arith.addf %699, %698 : vector<8x128xf32>
    %701 = arith.divf %699, %700 : vector<8x128xf32>
    %702 = arith.mulf %693, %676 : vector<8x128xf32>
    %703 = arith.mulf %687, %695 : vector<8x128xf32>
    %704 = arith.addf %702, %703 : vector<8x128xf32>
    %705 = math.tanh %704 : vector<8x128xf32>
    %706 = arith.mulf %701, %705 : vector<8x128xf32>
    %c1_324 = arith.constant 1 : index
    %c0_325 = arith.constant 0 : index
    %c0_326 = arith.constant 0 : index
    %707 = vector.load %arg10[%c1_324, %c0_325, %c0_326] : memref<2x8x128xf32, #tpu.memory_space<vmem>>, vector<1x8x128xf32>
    %708 = vector.shape_cast %707 : vector<1x8x128xf32> to vector<8x128xf32>
    %709 = vector.shape_cast %706 : vector<8x128xf32> to vector<1x8x128xf32>
    tpu.vector_store %arg10[%c1_324, %c0_325, %c0_326], %709 {strides = array<i32>} : memref<2x8x128xf32, #tpu.memory_space<vmem>>, vector<1x8x128xf32>,
    %c1_327 = arith.constant 1 : index
    %c0_328 = arith.constant 0 : index
    %c0_329 = arith.constant 0 : index
    %710 = vector.load %arg11[%c1_327, %c0_328, %c0_329] : memref<2x8x128xf32, #tpu.memory_space<vmem>>, vector<1x8x128xf32>
    %711 = vector.shape_cast %710 : vector<1x8x128xf32> to vector<8x128xf32>
    %712 = vector.shape_cast %704 : vector<8x128xf32> to vector<1x8x128xf32>
    tpu.vector_store %arg11[%c1_327, %c0_328, %c0_329], %712 {strides = array<i32>} : memref<2x8x128xf32, #tpu.memory_space<vmem>>, vector<1x8x128xf32>,
    %c8_i32_330 = arith.constant 8 : i32
    %c0_i32_331 = arith.constant 0 : i32
    %713 = arith.cmpi eq, %arg0, %c0_i32_331 : i32
    %714 = arith.extui %713 : i1 to i32
    %c0_i32_332 = arith.constant 0 : i32
    %715 = arith.cmpi ne, %714, %c0_i32_332 : i32
    scf.if %715 {
      %c1_333 = arith.constant 1 : index
      %c0_334 = arith.constant 0 : index
      %c0_335 = arith.constant 0 : index
      %716 = vector.load %arg10[%c1_333, %c0_334, %c0_335] : memref<2x8x128xf32, #tpu.memory_space<vmem>>, vector<1x8x128xf32>
      %717 = vector.shape_cast %716 : vector<1x8x128xf32> to vector<8x128xf32>
      %c0_336 = arith.constant 0 : index
      %c0_337 = arith.constant 0 : index
      %718 = vector.load %arg8[%c0_336, %c0_337] : memref<8x128xf32, #tpu.memory_space<vmem>>, vector<8x128xf32>
      tpu.vector_store %arg8[%c0_336, %c0_337], %717 {strides = array<i32>} : memref<8x128xf32, #tpu.memory_space<vmem>>, vector<8x128xf32>,
      %719 = arith.truncf %717 : vector<8x128xf32> to vector<8x128xbf16>
      %c0_338 = arith.constant 0 : index
      %c0_339 = arith.constant 0 : index
      %720 = vector.load %arg6[%c0_338, %c0_339] : memref<128x16xbf16, #tpu.memory_space<vmem>>, vector<128x16xbf16>
      %cst_340 = arith.constant dense<0.000000e+00> : vector<8x16xf32>
      %721 = tpu.matmul %719, %720, %cst_340 {dimension_numbers = #tpu.dot_dimension_numbers<[1], [0], [0], [1], [0, 0, 1, 1], [], []>} : vector<8x128xbf16>, vector<128x16xbf16>, vector<8x16xf32> -> vector<8x16xf32>
      %c0_341 = arith.constant 0 : index
      %c0_342 = arith.constant 0 : index
      %722 = vector.load %arg7[%c0_341, %c0_342] : memref<1x16xf32, #tpu.memory_space<vmem>>, vector<1x16xf32>
      %723 = vector.broadcast %722 : vector<1x16xf32> to vector<8x16xf32>
      %724 = arith.addf %721, %723 : vector<8x16xf32>
      %c0_343 = arith.constant 0 : index
      %c0_344 = arith.constant 0 : index
      %725 = vector.load %arg9[%c0_343, %c0_344] : memref<8x16xf32, #tpu.memory_space<vmem>>, vector<8x16xf32>
      tpu.vector_store %arg9[%c0_343, %c0_344], %724 {strides = array<i32>} : memref<8x16xf32, #tpu.memory_space<vmem>>, vector<8x16xf32>,
    } else {
    }
    return
  }
  func.func @transform_0(%arg0: i32) -> (i32, i32) {
    %c0_i32 = arith.constant 0 : i32
    %c0_i32_0 = arith.constant 0 : i32
    return %arg0, %c0_i32 : i32, i32
  }
  func.func @transform_1(%arg0: i32) -> (i32, i32) {
    %c0_i32 = arith.constant 0 : i32
    %c0_i32_0 = arith.constant 0 : i32
    %c0_i32_1 = arith.constant 0 : i32
    return %c0_i32, %c0_i32_0 : i32, i32
  }
  func.func @transform_2(%arg0: i32) -> (i32, i32, i32) {
    %c0_i32 = arith.constant 0 : i32
    %c0_i32_0 = arith.constant 0 : i32
    %c0_i32_1 = arith.constant 0 : i32
    %c0_i32_2 = arith.constant 0 : i32
    return %c0_i32, %c0_i32_0, %c0_i32_1 : i32, i32, i32
  }
  func.func @transform_3(%arg0: i32) -> (i32, i32, i32) {
    %c0_i32 = arith.constant 0 : i32
    %c0_i32_0 = arith.constant 0 : i32
    %c0_i32_1 = arith.constant 0 : i32
    %c0_i32_2 = arith.constant 0 : i32
    return %c0_i32, %c0_i32_0, %c0_i32_1 : i32, i32, i32
  }
  func.func @transform_4(%arg0: i32) -> (i32, i32, i32) {
    %c0_i32 = arith.constant 0 : i32
    %c0_i32_0 = arith.constant 0 : i32
    %c0_i32_1 = arith.constant 0 : i32
    %c0_i32_2 = arith.constant 0 : i32
    return %c0_i32, %c0_i32_0, %c0_i32_1 : i32, i32, i32
  }
  func.func @transform_5(%arg0: i32) -> (i32, i32) {
    %c0_i32 = arith.constant 0 : i32
    %c0_i32_0 = arith.constant 0 : i32
    %c0_i32_1 = arith.constant 0 : i32
    return %c0_i32, %c0_i32_0 : i32, i32
  }
  func.func @transform_6(%arg0: i32) -> (i32, i32) {
    %c0_i32 = arith.constant 0 : i32
    %c0_i32_0 = arith.constant 0 : i32
    %c0_i32_1 = arith.constant 0 : i32
    return %c0_i32, %c0_i32_0 : i32, i32
  }
  func.func @transform_7(%arg0: i32) -> (i32, i32) {
    %c0_i32 = arith.constant 0 : i32
    %c0_i32_0 = arith.constant 0 : i32
    %c0_i32_1 = arith.constant 0 : i32
    return %c0_i32, %c0_i32_0 : i32, i32
  }
  func.func @transform_8(%arg0: i32) -> (i32, i32) {
    %c0_i32 = arith.constant 0 : i32
    %c0_i32_0 = arith.constant 0 : i32
    %c0_i32_1 = arith.constant 0 : i32
    return %c0_i32, %c0_i32_0 : i32, i32
  }
}

</mosaic_0001>

<llo_original>
// kernel: tpu_custom_call.1
$region0: #{tpu_custom_call.1}
  #allocation0 [shape = 'u32[]', space=smem, size = 0x4, offset = 0x4, fixed_abs, tag = 'smem constant byte address 0x4 - core index']
  #allocation1 [shape = 'u32[144,128]{1,0:T(1,128)}', space=vmem, size = 0x12000, scoped, tag = 'internal scratch']
  #allocation2 [shape = 'f32[2,8,128]{2,1,0:T(8,128)}', space=vmem, size = 0x2000, scoped, tag = 'scratch operand']
  #allocation3 [shape = 'f32[2,8,128]{2,1,0:T(8,128)}', space=vmem, size = 0x2000, scoped, tag = 'scratch operand']
  #allocation4 [shape = 'f32[64,128]{1,0:T(8,128)}', space=vmem, size = 0x8000, scoped, tag = 'scratch operand']
  #allocation5 [shape = 'f32[64,512]{1,0:T(8,128)}', space=vmem, size = 0x20000, scoped, tag = 'scratch operand']
  %s0 = inlined_call_operand.vmem [shape: bf16[64,4], index: 0, kind: input, shape index: {}]
  %s1 = inlined_call_operand.vmem [shape: bf16[4,512], index: 1, kind: input, shape index: {}]
  %s2 = inlined_call_operand.hbm [shape: bf16[1,128,512], index: 2, kind: input, shape index: {}]
  %s3 = inlined_call_operand.hbm [shape: bf16[2,128,512], index: 3, kind: input, shape index: {}]
  %s4 = inlined_call_operand.vmem [shape: f32[2,1,512], index: 4, kind: input, shape index: {}]
  %s5 = inlined_call_operand.vmem [shape: bf16[128,16], index: 5, kind: input, shape index: {}]
  %s6 = inlined_call_operand.vmem [shape: f32[1,16], index: 6, kind: input, shape index: {}]
  %s7 = inlined_call_operand.hbm [shape: f32[8,128], index: 7, kind: output, shape index: {0}]
  %s8 = inlined_call_operand.hbm [shape: f32[8,16], index: 8, kind: output, shape index: {1}]
  %9 = xla_tuple %s7, %s8
  %s10 = sld [smem:[#allocation0]]
  $region62: #{tpu_custom_call.1} parent=0
    _
  %s12 = ssub.s32 1, %s10
  %s13 = scalar_select 0, %s12, %s10
  $region1: #{tpu_custom_call.1} parent=0
    #allocation6 [shape = 'u8[131072]{0}', space=vmem, size = 0x20000, scoped, tag = 'input window, operand 2, single buffered']
    #allocation7 [shape = 's32[1]{0}', space=sflag, size = 0x4, scoped, tag = 'scoped memory for tpu_custom_call.1']
    #allocation8 [shape = 's32[1]{0}', space=sflag, size = 0x4, scoped, tag = 'scoped memory for tpu_custom_call.1']
    #allocation9 [shape = 'u8[262144]{0}', space=vmem, size = 0x40000, scoped, tag = 'input window, operand 3, single buffered']
    #allocation10 [shape = 's32[1]{0}', space=sflag, size = 0x4, scoped, tag = 'scoped memory for tpu_custom_call.1']
    #allocation11 [shape = 'u8[4096]{0}', space=vmem, size = 0x1000, scoped, tag = 'output window, operand 0, single buffered']
    #allocation12 [shape = 'u8[4096]{0}', space=vmem, size = 0x1000, scoped, tag = 'output window, operand 1, single buffered']
    #allocation13 [shape = 's32[1]{0}', space=sflag, size = 0x4, scoped, tag = 'scoped memory for tpu_custom_call.1']
    %14 = vsyncpa [#allocation7], 0
    %15 = vsyncpa [#allocation10], 0
    %16 = vsyncpa [#allocation8], 0
    %17 = vsyncpa [#allocation13], 0
    // Predicated region
    $region2: #{tpu_custom_call.1} parent=1 // pred_check
      _
    $region3: #{tpu_custom_call.1} parent=1 // pred_check_branch
      %19 = sbr.rel (0) target = $region5
    $region4: #{tpu_custom_call.1} parent=1 // pred_region
      _
    $region5: #{tpu_custom_call.1} parent=1 // pred_fallthru
      _
    // Predicated region
    $region6: #{tpu_custom_call.1} parent=1 // pred_check
      _
    $region7: #{tpu_custom_call.1} parent=1 // pred_check_branch
      %21 = sbr.rel (0) target = $region9
    $region8: #{tpu_custom_call.1} parent=1 // pred_region
      _
    $region9: #{tpu_custom_call.1} parent=1 // pred_fallthru
      _
    // Predicated region
    $region10: #{tpu_custom_call.1} parent=1 // pred_check
      _
    $region11: #{tpu_custom_call.1} parent=1 // pred_check_branch
      %23 = sbr.rel (0) target = $region13
    $region12: #{tpu_custom_call.1} parent=1 // pred_region
      %s25 = ssub.s32 4096, 4096
      %26 = vsyncadd [#allocation7], %s25
      %s27 = sshll.u32 [#allocation6], 4
      %s28 = int_to_ptr.vmem [resolvable:$true] %s27
      %33 = dma.hbm_to_vmem [thread:$0]  %s2, 4096, %s28, [#allocation7], 256, 256, 16
    $region13: #{tpu_custom_call.1} parent=1 // pred_fallthru
      _
    // Predicated region
    $region14: #{tpu_custom_call.1} parent=1 // pred_check
      _
    $region15: #{tpu_custom_call.1} parent=1 // pred_check_branch
      %35 = sbr.rel (0) target = $region17
    $region16: #{tpu_custom_call.1} parent=1 // pred_region
      %s37 = ssub.s32 8192, 8192
      %38 = vsyncadd [#allocation10], %s37
      %s39 = sshll.u32 [#allocation9], 4
      %s40 = int_to_ptr.vmem [resolvable:$true] %s39
      %45 = dma.hbm_to_vmem [thread:$0]  %s3, 8192, %s40, [#allocation10], 256, 256, 16
    $region17: #{tpu_custom_call.1} parent=1 // pred_fallthru
      _
    // Predicated region
    $region18: #{tpu_custom_call.1} parent=1 // pred_check
      _
    $region19: #{tpu_custom_call.1} parent=1 // pred_check_branch
      %47 = sbr.rel (0) target = $region21
    $region20: #{tpu_custom_call.1} parent=1 // pred_region
      _
    $region21: #{tpu_custom_call.1} parent=1 // pred_fallthru
      _
    // Predicated region
    $region22: #{tpu_custom_call.1} parent=1 // pred_check
      _
    $region23: #{tpu_custom_call.1} parent=1 // pred_check_branch
      %49 = sbr.rel (0) target = $region25
    $region24: #{tpu_custom_call.1} parent=1 // pred_region
      _
    $region25: #{tpu_custom_call.1} parent=1 // pred_fallthru
      _
    // Predicated region
    $region26: #{tpu_custom_call.1} parent=1 // pred_check
      _
    $region27: #{tpu_custom_call.1} parent=1 // pred_check_branch
      %51 = sbr.rel (0) target = $region29
    $region28: #{tpu_custom_call.1} parent=1 // pred_region
      _
    $region29: #{tpu_custom_call.1} parent=1 // pred_fallthru
      _
    // Predicated region
    $region30: #{tpu_custom_call.1} parent=1 // pred_check
      _
    $region31: #{tpu_custom_call.1} parent=1 // pred_check_branch
      %53 = sbr.rel (0) target = $region33
    $region32: #{tpu_custom_call.1} parent=1 // pred_region
      %54 = dma.done [#allocation7], 4096
    $region33: #{tpu_custom_call.1} parent=1 // pred_fallthru
      _
    // Predicated region
    $region34: #{tpu_custom_call.1} parent=1 // pred_check
      _
    $region35: #{tpu_custom_call.1} parent=1 // pred_check_branch
      %56 = sbr.rel (0) target = $region37
    $region36: #{tpu_custom_call.1} parent=1 // pred_region
      %57 = dma.done [#allocation10], 8192
    $region37: #{tpu_custom_call.1} parent=1 // pred_fallthru
      _
    %p59 = scmp.eq.s32.totalorder 0, 0
    // Predicated region
    $region38: #{tpu_custom_call.1} parent=1 // pred_check
      %p60 = pneg %p59
    $region39: #{tpu_custom_call.1} parent=1 // pred_check_branch
      %62 = sbr.rel (%p60) target = $region41
    $region40: #{tpu_custom_call.1} parent=1 // pred_region
      %63 = vst [vmem:[#allocation2] sm:$0xff] 0.0
      %64 = vst [vmem:[#allocation2 + $0x8] sm:$0xff] 0.0
      %65 = vst [vmem:[#allocation3] sm:$0xff] 0.0
      %66 = vst [vmem:[#allocation3 + $0x8] sm:$0xff] 0.0
    $region41: #{tpu_custom_call.1} parent=1 // pred_fallthru
      _
    %v67 = vld [vmem:[%s0] sm:$0xf]
    %v68 = vld [vmem:[%s0 + $0x4] sm:$0xf]
    %v69 = vld [vmem:[%s0 + $0x8] sm:$0xf]
    %v70 = vld [vmem:[%s0 + $0xc] sm:$0xf]
    %v71 = vld [vmem:[%s0 + $0x10] sm:$0xf]
    %v72 = vld [vmem:[%s0 + $0x14] sm:$0xf]
    %v73 = vld [vmem:[%s0 + $0x18] sm:$0xf]
    %v74 = vld [vmem:[%s0 + $0x1c] sm:$0xf]
    %v75 = vld [vmem:[%s1] sm:$0xff]
    %v76 = vld [vmem:[%s4] sm:$0xf]
    %v78 = vlaneseq
    %v79 = vshrl.u32 %v78, 7
    %v80 = vsub.s32 0, %v79
    %v81 = vrot.slane %v76, %v80
    %v82 = vlaneseq
    %v83 = vshrl.u32 %v82, 7
    %v84 = vsub.s32 1, %v83
    %v85 = vrot.slane %v76, %v84
    %v86 = vlaneseq
    %v87 = vshrl.u32 %v86, 7
    %v88 = vsub.s32 2, %v87
    %v89 = vrot.slane %v76, %v88
    %v90 = vlaneseq
    %v91 = vshrl.u32 %v90, 7
    %v92 = vsub.s32 3, %v91
    %v93 = vrot.slane %v76, %v92
    %v106 = vunpack.c.l.b16 %v67
    %v107 = vunpack.c.l.b16 %v68
    %v108 = vunpack.c.l.b16 %v69
    %v109 = vunpack.c.l.b16 %v70
    %v110 = vunpack.c.l.b16 %v71
    %v111 = vunpack.c.l.b16 %v72
    %v112 = vunpack.c.l.b16 %v73
    %v113 = vunpack.c.l.b16 %v74
    %v114 = vpack.c.b16 %v107, %v106
    %v115 = vpack.c.b16 %v109, %v108
    %v116 = vpack.c.b16 %v111, %v110
    %v117 = vpack.c.b16 %v113, %v112
    %v119 = vcombine.high %v75, %v75
    %v121 = vunpack.c.l.s4 1983009808
    %v122 = vunpack.c.0.s8 %v121
    %v123 = vlaneseq
    %v124 = vshrl.u32 %v123, 7
    %v125 = vsub.s32 %v122, %v124
    %v126 = vrot.slane %v75, %v125
    %v128 = vunpack.c.l.s4 1983009808
    %v129 = vunpack.c.0.s8 %v128
    %v130 = vlaneseq
    %v131 = vshrl.u32 %v130, 7
    %v132 = vsub.s32 %v129, %v131
    %v133 = vrot.slane %v119, %v132
    %v134 = vcombine.high %v126, %v126
    %v135 = vcombine.high %v133, %v133
    %vm136 = vcmask 31744
    %v138 = vsel %vm136, %v114, 0
    %v141 = vsel %vm136, %v115, 0
    %v144 = vsel %vm136, %v116, 0
    %v147 = vsel %vm136, %v117, 0
    %vm149 = vcmask 1041408
    %v151 = vsel %vm149, %v126, 0
    %v154 = vsel %vm149, %v134, 0
    %v157 = vsel %vm149, %v133, 0
    %v160 = vsel %vm149, %v135, 0
    %162 = vmatprep.subr.bf16.mxu0 0
    %163 = vmatpush1.bf16.msra.mxu0 0
    %164 = vmatprep.subr.bf16.mxu0 0
    %165 = vmatpush1.bf16.msra.mxu0 0
    %166 = vmatprep.subr.bf16.mxu0 0
    %167 = vmatpush1.bf16.msra.mxu0 0
    %168 = vmatprep.subr.bf16.mxu0 0
    %169 = vmatpush1.bf16.msra.mxu0 0
    %170 = vmatprep.subr.bf16.mxu0 0
    %171 = vmatpush1.bf16.msra.mxu0 0
    %172 = vmatprep.subr.bf16.mxu0 0
    %173 = vmatpush1.bf16.msra.mxu0 0
    %174 = vmatprep.subr.bf16.mxu0 0
    %175 = vmatpush1.bf16.msra.mxu0 0
    %176 = vmatprep.subr.bf16.mxu0 %v154
    %177 = vmatpush1.bf16.msra.mxu0 %v151
    %178 = vmatprep.subr.bf16.mxu0 0
    %179 = vmatpush2.bf16.msra.mxu0 0
    %180 = vmatprep.subr.bf16.mxu0 0
    %181 = vmatpush2.bf16.msra.mxu0 0
    %182 = vmatprep.subr.bf16.mxu0 0
    %183 = vmatpush2.bf16.msra.mxu0 0
    %184 = vmatprep.subr.bf16.mxu0 0
    %185 = vmatpush2.bf16.msra.mxu0 0
    %186 = vmatprep.subr.bf16.mxu0 0
    %187 = vmatpush2.bf16.msra.mxu0 0
    %188 = vmatprep.subr.bf16.mxu0 0
    %189 = vmatpush2.bf16.msra.mxu0 0
    %190 = vmatprep.subr.bf16.mxu0 0
    %191 = vmatpush2.bf16.msra.mxu0 0
    %192 = vmatprep.subr.bf16.mxu0 0
    %193 = vmatpush2.bf16.msra.mxu0 0
    %194 = vmatprep.mubr.bf16.mxu0 0
    %195 = vmatmul.mubr.bf16.gmra.mxu0 %v138
    %v196 = vpop.f32.mrf.mxu0
    %v197 = vadd.f32 %v81, %v196
    %v198 = vpop.f32.mrf.mxu0
    %v199 = vadd.f32 %v85, %v198
    %v200 = vpop.f32.mrf.mxu0
    %v201 = vadd.f32 %v81, %v200
    %v202 = vpop.f32.mrf.mxu0
    %v203 = vadd.f32 %v85, %v202
    %204 = vmatprep.mubr.bf16.mxu0 0
    %205 = vmatmul.mubr.bf16.gmra.mxu0 %v141
    %v206 = vpop.f32.mrf.mxu0
    %v207 = vadd.f32 %v81, %v206
    %v208 = vpop.f32.mrf.mxu0
    %v209 = vadd.f32 %v85, %v208
    %v210 = vpop.f32.mrf.mxu0
    %v211 = vadd.f32 %v81, %v210
    %v212 = vpop.f32.mrf.mxu0
    %v213 = vadd.f32 %v85, %v212
    %214 = vmatprep.mubr.bf16.mxu0 0
    %215 = vmatmul.mubr.bf16.gmra.mxu0 %v144
    %v216 = vpop.f32.mrf.mxu0
    %v217 = vadd.f32 %v81, %v216
    %v218 = vpop.f32.mrf.mxu0
    %v219 = vadd.f32 %v85, %v218
    %v220 = vpop.f32.mrf.mxu0
    %v221 = vadd.f32 %v81, %v220
    %v222 = vpop.f32.mrf.mxu0
    %v223 = vadd.f32 %v85, %v222
    %224 = vmatprep.mubr.bf16.mxu0 0
    %225 = vmatmul.mubr.bf16.gmra.mxu0 %v147
    %v226 = vpop.f32.mrf.mxu0
    %v227 = vadd.f32 %v81, %v226
    %v228 = vpop.f32.mrf.mxu0
    %v229 = vadd.f32 %v85, %v228
    %v230 = vpop.f32.mrf.mxu0
    %v231 = vadd.f32 %v81, %v230
    %v232 = vpop.f32.mrf.mxu0
    %v233 = vadd.f32 %v85, %v232
    %234 = vdwg.mxu0
    %235 = vmatprep.subr.bf16.mxu0 0
    %236 = vmatpush1.bf16.msra.mxu0 0
    %237 = vmatprep.subr.bf16.mxu0 0
    %238 = vmatpush1.bf16.msra.mxu0 0
    %239 = vmatprep.subr.bf16.mxu0 0
    %240 = vmatpush1.bf16.msra.mxu0 0
    %241 = vmatprep.subr.bf16.mxu0 0
    %242 = vmatpush1.bf16.msra.mxu0 0
    %243 = vmatprep.subr.bf16.mxu0 0
    %244 = vmatpush1.bf16.msra.mxu0 0
    %245 = vmatprep.subr.bf16.mxu0 0
    %246 = vmatpush1.bf16.msra.mxu0 0
    %247 = vmatprep.subr.bf16.mxu0 0
    %248 = vmatpush1.bf16.msra.mxu0 0
    %249 = vmatprep.subr.bf16.mxu0 %v160
    %250 = vmatpush1.bf16.msra.mxu0 %v157
    %251 = vmatprep.subr.bf16.mxu0 0
    %252 = vmatpush2.bf16.msra.mxu0 0
    %253 = vmatprep.subr.bf16.mxu0 0
    %254 = vmatpush2.bf16.msra.mxu0 0
    %255 = vmatprep.subr.bf16.mxu0 0
    %256 = vmatpush2.bf16.msra.mxu0 0
    %257 = vmatprep.subr.bf16.mxu0 0
    %258 = vmatpush2.bf16.msra.mxu0 0
    %259 = vmatprep.subr.bf16.mxu0 0
    %260 = vmatpush2.bf16.msra.mxu0 0
    %261 = vmatprep.subr.bf16.mxu0 0
    %262 = vmatpush2.bf16.msra.mxu0 0
    %263 = vmatprep.subr.bf16.mxu0 0
    %264 = vmatpush2.bf16.msra.mxu0 0
    %265 = vmatprep.subr.bf16.mxu0 0
    %266 = vmatpush2.bf16.msra.mxu0 0
    %267 = vmatprep.mubr.bf16.mxu0 0
    %268 = vmatmul.mubr.bf16.gmra.mxu0 %v138
    %v269 = vpop.f32.mrf.mxu0
    %v270 = vadd.f32 %v89, %v269
    %v271 = vpop.f32.mrf.mxu0
    %v272 = vadd.f32 %v93, %v271
    %v273 = vpop.f32.mrf.mxu0
    %v274 = vadd.f32 %v89, %v273
    %v275 = vpop.f32.mrf.mxu0
    %v276 = vadd.f32 %v93, %v275
    %277 = vmatprep.mubr.bf16.mxu0 0
    %278 = vmatmul.mubr.bf16.gmra.mxu0 %v141
    %v279 = vpop.f32.mrf.mxu0
    %v280 = vadd.f32 %v89, %v279
    %v281 = vpop.f32.mrf.mxu0
    %v282 = vadd.f32 %v93, %v281
    %v283 = vpop.f32.mrf.mxu0
    %v284 = vadd.f32 %v89, %v283
    %v285 = vpop.f32.mrf.mxu0
    %v286 = vadd.f32 %v93, %v285
    %287 = vmatprep.mubr.bf16.mxu0 0
    %288 = vmatmul.mubr.bf16.gmra.mxu0 %v144
    %v289 = vpop.f32.mrf.mxu0
    %v290 = vadd.f32 %v89, %v289
    %v291 = vpop.f32.mrf.mxu0
    %v292 = vadd.f32 %v93, %v291
    %v293 = vpop.f32.mrf.mxu0
    %v294 = vadd.f32 %v89, %v293
    %v295 = vpop.f32.mrf.mxu0
    %v296 = vadd.f32 %v93, %v295
    %297 = vmatprep.mubr.bf16.mxu0 0
    %298 = vmatmul.mubr.bf16.gmra.mxu0 %v147
    %v299 = vpop.f32.mrf.mxu0
    %v300 = vadd.f32 %v89, %v299
    %v301 = vpop.f32.mrf.mxu0
    %v302 = vadd.f32 %v93, %v301
    %v303 = vpop.f32.mrf.mxu0
    %v304 = vadd.f32 %v89, %v303
    %v305 = vpop.f32.mrf.mxu0
    %v306 = vadd.f32 %v93, %v305
    %307 = vdwg.mxu0
    %308 = vst [vmem:[#allocation5] sm:$0xff] %v197
    %309 = vst [vmem:[#allocation5 + $0x8] sm:$0xff] %v199
    %310 = vst [vmem:[#allocation5 + $0x10] sm:$0xff] %v270
    %311 = vst [vmem:[#allocation5 + $0x18] sm:$0xff] %v272
    %312 = vst [vmem:[#allocation5 + $0x20] sm:$0xff] %v201
    %313 = vst [vmem:[#allocation5 + $0x28] sm:$0xff] %v203
    %314 = vst [vmem:[#allocation5 + $0x30] sm:$0xff] %v274
    %315 = vst [vmem:[#allocation5 + $0x38] sm:$0xff] %v276
    %316 = vst [vmem:[#allocation5 + $0x40] sm:$0xff] %v207
    %317 = vst [vmem:[#allocation5 + $0x48] sm:$0xff] %v209
    %318 = vst [vmem:[#allocation5 + $0x50] sm:$0xff] %v280
    %319 = vst [vmem:[#allocation5 + $0x58] sm:$0xff] %v282
    %320 = vst [vmem:[#allocation5 + $0x60] sm:$0xff] %v211
    %321 = vst [vmem:[#allocation5 + $0x68] sm:$0xff] %v213
    %322 = vst [vmem:[#allocation5 + $0x70] sm:$0xff] %v284
    %323 = vst [vmem:[#allocation5 + $0x78] sm:$0xff] %v286
    %324 = vst [vmem:[#allocation5 + $0x80] sm:$0xff] %v217
    %325 = vst [vmem:[#allocation5 + $0x88] sm:$0xff] %v219
    %326 = vst [vmem:[#allocation5 + $0x90] sm:$0xff] %v290
    %327 = vst [vmem:[#allocation5 + $0x98] sm:$0xff] %v292
    %328 = vst [vmem:[#allocation5 + $0xa0] sm:$0xff] %v221
    %329 = vst [vmem:[#allocation5 + $0xa8] sm:$0xff] %v223
    %330 = vst [vmem:[#allocation5 + $0xb0] sm:$0xff] %v294
    %331 = vst [vmem:[#allocation5 + $0xb8] sm:$0xff] %v296
    %332 = vst [vmem:[#allocation5 + $0xc0] sm:$0xff] %v227
    %333 = vst [vmem:[#allocation5 + $0xc8] sm:$0xff] %v229
    %334 = vst [vmem:[#allocation5 + $0xd0] sm:$0xff] %v300
    %335 = vst [vmem:[#allocation5 + $0xd8] sm:$0xff] %v302
    %336 = vst [vmem:[#allocation5 + $0xe0] sm:$0xff] %v231
    %337 = vst [vmem:[#allocation5 + $0xe8] sm:$0xff] %v233
    %338 = vst [vmem:[#allocation5 + $0xf0] sm:$0xff] %v304
    %339 = vst [vmem:[#allocation5 + $0xf8] sm:$0xff] %v306
    %v340 = vld [vmem:[#allocation9] sm:$0xff]
    %v341 = vld [vmem:[#allocation9 + $0x8] sm:$0xff]
    %v342 = vld [vmem:[#allocation9 + $0x10] sm:$0xff]
    %v343 = vld [vmem:[#allocation9 + $0x18] sm:$0xff]
    %v344 = vld [vmem:[#allocation9 + $0x20] sm:$0xff]
    %v345 = vld [vmem:[#allocation9 + $0x28] sm:$0xff]
    %v346 = vld [vmem:[#allocation9 + $0x30] sm:$0xff]
    %v347 = vld [vmem:[#allocation9 + $0x38] sm:$0xff]
    %v348 = vld [vmem:[#allocation9 + $0x40] sm:$0xff]
    %v349 = vld [vmem:[#allocation9 + $0x48] sm:$0xff]
    %v350 = vld [vmem:[#allocation9 + $0x50] sm:$0xff]
    %v351 = vld [vmem:[#allocation9 + $0x58] sm:$0xff]
    %v352 = vld [vmem:[#allocation9 + $0x60] sm:$0xff]
    %v353 = vld [vmem:[#allocation9 + $0x68] sm:$0xff]
    %v354 = vld [vmem:[#allocation9 + $0x70] sm:$0xff]
    %v355 = vld [vmem:[#allocation9 + $0x78] sm:$0xff]
    %v356 = vld [vmem:[#allocation9 + $0x80] sm:$0xff]
    %v357 = vld [vmem:[#allocation9 + $0x88] sm:$0xff]
    %v358 = vld [vmem:[#allocation9 + $0x90] sm:$0xff]
    %v359 = vld [vmem:[#allocation9 + $0x98] sm:$0xff]
    %v360 = vld [vmem:[#allocation9 + $0xa0] sm:$0xff]
    %v361 = vld [vmem:[#allocation9 + $0xa8] sm:$0xff]
    %v362 = vld [vmem:[#allocation9 + $0xb0] sm:$0xff]
    %v363 = vld [vmem:[#allocation9 + $0xb8] sm:$0xff]
    %v364 = vld [vmem:[#allocation9 + $0xc0] sm:$0xff]
    %v365 = vld [vmem:[#allocation9 + $0xc8] sm:$0xff]
    %v366 = vld [vmem:[#allocation9 + $0xd0] sm:$0xff]
    %v367 = vld [vmem:[#allocation9 + $0xd8] sm:$0xff]
    %v368 = vld [vmem:[#allocation9 + $0xe0] sm:$0xff]
    %v369 = vld [vmem:[#allocation9 + $0xe8] sm:$0xff]
    %v370 = vld [vmem:[#allocation9 + $0xf0] sm:$0xff]
    %v371 = vld [vmem:[#allocation9 + $0xf8] sm:$0xff]
    %v372 = vld [vmem:[#allocation2] sm:$0xff]
    %v373 = vld [vmem:[#allocation3] sm:$0xff]
    %s374 = smul.u32 0, 4
    %s375 = smul.addr %s374, 8
    %s376 = scalar_lea.vmem [#allocation5], %s375
    %v377 = vld [vmem:[%s376] sm:$0xff]
    %v378 = vld [vmem:[%s376 + $0x8] sm:$0xff]
    %v379 = vld [vmem:[%s376 + $0x10] sm:$0xff]
    %v380 = vld [vmem:[%s376 + $0x18] sm:$0xff]
    %v381 = vpack.c.bf16 %v372, %v372
    %v414 = vunpack.c.l.b16 %v340
    %v415 = vunpack.c.h.b16 %v340
    %v416 = vunpack.c.l.b16 %v341
    %v417 = vunpack.c.h.b16 %v341
    %v418 = vunpack.c.l.b16 %v342
    %v419 = vunpack.c.h.b16 %v342
    %v420 = vunpack.c.l.b16 %v343
    %v421 = vunpack.c.h.b16 %v343
    %v422 = vunpack.c.l.b16 %v344
    %v423 = vunpack.c.h.b16 %v344
    %v424 = vunpack.c.l.b16 %v345
    %v425 = vunpack.c.h.b16 %v345
    %v426 = vunpack.c.l.b16 %v346
    %v427 = vunpack.c.h.b16 %v346
    %v428 = vunpack.c.l.b16 %v347
    %v429 = vunpack.c.h.b16 %v347
    %v430 = vunpack.c.l.b16 %v348
    %v431 = vunpack.c.h.b16 %v348
    %v432 = vunpack.c.l.b16 %v349
    %v433 = vunpack.c.h.b16 %v349
    %v434 = vunpack.c.l.b16 %v350
    %v435 = vunpack.c.h.b16 %v350
    %v436 = vunpack.c.l.b16 %v351
    %v437 = vunpack.c.h.b16 %v351
    %v438 = vunpack.c.l.b16 %v352
    %v439 = vunpack.c.h.b16 %v352
    %v440 = vunpack.c.l.b16 %v353
    %v441 = vunpack.c.h.b16 %v353
    %v442 = vunpack.c.l.b16 %v354
    %v443 = vunpack.c.h.b16 %v354
    %v444 = vunpack.c.l.b16 %v355
    %v445 = vunpack.c.h.b16 %v355
    %v446 = vunpack.c.l.b16 %v356
    %v447 = vunpack.c.h.b16 %v356
    %v448 = vunpack.c.l.b16 %v357
    %v449 = vunpack.c.h.b16 %v357
    %v450 = vunpack.c.l.b16 %v358
    %v451 = vunpack.c.h.b16 %v358
    %v452 = vunpack.c.l.b16 %v359
    %v453 = vunpack.c.h.b16 %v359
    %v454 = vunpack.c.l.b16 %v360
    %v455 = vunpack.c.h.b16 %v360
    %v456 = vunpack.c.l.b16 %v361
    %v457 = vunpack.c.h.b16 %v361
    %v458 = vunpack.c.l.b16 %v362
    %v459 = vunpack.c.h.b16 %v362
    %v460 = vunpack.c.l.b16 %v363
    %v461 = vunpack.c.h.b16 %v363
    %v462 = vunpack.c.l.b16 %v364
    %v463 = vunpack.c.h.b16 %v364
    %v464 = vunpack.c.l.b16 %v365
    %v465 = vunpack.c.h.b16 %v365
    %v466 = vunpack.c.l.b16 %v366
    %v467 = vunpack.c.h.b16 %v366
    %v468 = vunpack.c.l.b16 %v367
    %v469 = vunpack.c.h.b16 %v367
    %v470 = vunpack.c.l.b16 %v368
    %v471 = vunpack.c.h.b16 %v368
    %v472 = vunpack.c.l.b16 %v369
    %v473 = vunpack.c.h.b16 %v369
    %v474 = vunpack.c.l.b16 %v370
    %v475 = vunpack.c.h.b16 %v370
    %v476 = vunpack.c.l.b16 %v371
    %v477 = vunpack.c.h.b16 %v371
    %v478 = vpack.c.b16 %v418, %v414
    %v479 = vpack.c.b16 %v419, %v415
    %v480 = vpack.c.b16 %v420, %v416
    %v481 = vpack.c.b16 %v421, %v417
    %v482 = vpack.c.b16 %v426, %v422
    %v483 = vpack.c.b16 %v427, %v423
    %v484 = vpack.c.b16 %v428, %v424
    %v485 = vpack.c.b16 %v429, %v425
    %v486 = vpack.c.b16 %v434, %v430
    %v487 = vpack.c.b16 %v435, %v431
    %v488 = vpack.c.b16 %v436, %v432
    %v489 = vpack.c.b16 %v437, %v433
    %v490 = vpack.c.b16 %v442, %v438
    %v491 = vpack.c.b16 %v443, %v439
    %v492 = vpack.c.b16 %v444, %v440
    %v493 = vpack.c.b16 %v445, %v441
    %v494 = vpack.c.b16 %v450, %v446
    %v495 = vpack.c.b16 %v451, %v447
    %v496 = vpack.c.b16 %v452, %v448
    %v497 = vpack.c.b16 %v453, %v449
    %v498 = vpack.c.b16 %v458, %v454
    %v499 = vpack.c.b16 %v459, %v455
    %v500 = vpack.c.b16 %v460, %v456
    %v501 = vpack.c.b16 %v461, %v457
    %v502 = vpack.c.b16 %v466, %v462
    %v503 = vpack.c.b16 %v467, %v463
    %v504 = vpack.c.b16 %v468, %v464
    %v505 = vpack.c.b16 %v469, %v465
    %v506 = vpack.c.b16 %v474, %v470
    %v507 = vpack.c.b16 %v475, %v471
    %v508 = vpack.c.b16 %v476, %v472
    %v509 = vpack.c.b16 %v477, %v473
    %542 = vmatprep.subr.bf16.mxu0 %v507
    %543 = vmatpush1.bf16.msra.mxu0 %v506
    %544 = vmatprep.subr.bf16.mxu0 %v503
    %545 = vmatpush1.bf16.msra.mxu0 %v502
    %546 = vmatprep.subr.bf16.mxu0 %v499
    %547 = vmatpush1.bf16.msra.mxu0 %v498
    %548 = vmatprep.subr.bf16.mxu0 %v495
    %549 = vmatpush1.bf16.msra.mxu0 %v494
    %550 = vmatprep.subr.bf16.mxu0 %v491
    %551 = vmatpush1.bf16.msra.mxu0 %v490
    %552 = vmatprep.subr.bf16.mxu0 %v487
    %553 = vmatpush1.bf16.msra.mxu0 %v486
    %554 = vmatprep.subr.bf16.mxu0 %v483
    %555 = vmatpush1.bf16.msra.mxu0 %v482
    %556 = vmatprep.subr.bf16.mxu0 %v479
    %557 = vmatpush1.bf16.msra.mxu0 %v478
    %558 = vmatprep.subr.bf16.mxu0 0
    %559 = vmatpush2.bf16.msra.mxu0 0
    %560 = vmatprep.subr.bf16.mxu0 0
    %561 = vmatpush2.bf16.msra.mxu0 0
    %562 = vmatprep.subr.bf16.mxu0 0
    %563 = vmatpush2.bf16.msra.mxu0 0
    %564 = vmatprep.subr.bf16.mxu0 0
    %565 = vmatpush2.bf16.msra.mxu0 0
    %566 = vmatprep.subr.bf16.mxu0 0
    %567 = vmatpush2.bf16.msra.mxu0 0
    %568 = vmatprep.subr.bf16.mxu0 0
    %569 = vmatpush2.bf16.msra.mxu0 0
    %570 = vmatprep.subr.bf16.mxu0 0
    %571 = vmatpush2.bf16.msra.mxu0 0
    %572 = vmatprep.subr.bf16.mxu0 0
    %573 = vmatpush2.bf16.msra.mxu0 0
    %574 = vmatprep.mubr.bf16.mxu0 0
    %575 = vmatmul.mubr.bf16.gmra.mxu0 %v381
    %v576 = vpop.f32.mrf.mxu0
    %v577 = vadd.f32 0.0, %v576
    %v578 = vpop.f32.mrf.mxu0
    %v579 = vadd.f32 0.0, %v578
    %v580 = vpop.f32.mrf.mxu0
    %v581 = vpop.f32.mrf.mxu0
    %582 = vdwg.mxu0
    %583 = vmatprep.subr.bf16.mxu0 %v509
    %584 = vmatpush1.bf16.msra.mxu0 %v508
    %585 = vmatprep.subr.bf16.mxu0 %v505
    %586 = vmatpush1.bf16.msra.mxu0 %v504
    %587 = vmatprep.subr.bf16.mxu0 %v501
    %588 = vmatpush1.bf16.msra.mxu0 %v500
    %589 = vmatprep.subr.bf16.mxu0 %v497
    %590 = vmatpush1.bf16.msra.mxu0 %v496
    %591 = vmatprep.subr.bf16.mxu0 %v493
    %592 = vmatpush1.bf16.msra.mxu0 %v492
    %593 = vmatprep.subr.bf16.mxu0 %v489
    %594 = vmatpush1.bf16.msra.mxu0 %v488
    %595 = vmatprep.subr.bf16.mxu0 %v485
    %596 = vmatpush1.bf16.msra.mxu0 %v484
    %597 = vmatprep.subr.bf16.mxu0 %v481
    %598 = vmatpush1.bf16.msra.mxu0 %v480
    %599 = vmatprep.subr.bf16.mxu0 0
    %600 = vmatpush2.bf16.msra.mxu0 0
    %601 = vmatprep.subr.bf16.mxu0 0
    %602 = vmatpush2.bf16.msra.mxu0 0
    %603 = vmatprep.subr.bf16.mxu0 0
    %604 = vmatpush2.bf16.msra.mxu0 0
    %605 = vmatprep.subr.bf16.mxu0 0
    %606 = vmatpush2.bf16.msra.mxu0 0
    %607 = vmatprep.subr.bf16.mxu0 0
    %608 = vmatpush2.bf16.msra.mxu0 0
    %609 = vmatprep.subr.bf16.mxu0 0
    %610 = vmatpush2.bf16.msra.mxu0 0
    %611 = vmatprep.subr.bf16.mxu0 0
    %612 = vmatpush2.bf16.msra.mxu0 0
    %613 = vmatprep.subr.bf16.mxu0 0
    %614 = vmatpush2.bf16.msra.mxu0 0
    %615 = vmatprep.mubr.bf16.mxu0 0
    %616 = vmatmul.mubr.bf16.gmra.mxu0 %v381
    %v617 = vpop.f32.mrf.mxu0
    %v618 = vadd.f32 0.0, %v617
    %v619 = vpop.f32.mrf.mxu0
    %v620 = vadd.f32 0.0, %v619
    %v621 = vpop.f32.mrf.mxu0
    %v622 = vpop.f32.mrf.mxu0
    %623 = vdwg.mxu0
    %v624 = vadd.f32 %v377, %v577
    %v625 = vadd.f32 %v378, %v579
    %v626 = vadd.f32 %v379, %v618
    %v627 = vadd.f32 %v380, %v620
    %v628 = vxor.u32 %v624, 2147483648
    %v629 = vmul.f32 %v628, 1.442695
    %v630 = vpow.pop %v629
    %v631 = vadd.f32 %v630, 1.0
    %v632 = vrcp.pop %v631
    %v633 = vmul.f32 1.0, %v632
    %v634 = vxor.u32 %v625, 2147483648
    %v635 = vmul.f32 %v634, 1.442695
    %v636 = vpow.pop %v635
    %v637 = vadd.f32 %v636, 1.0
    %v638 = vrcp.pop %v637
    %v639 = vmul.f32 1.0, %v638
    %v640 = vtanh.pop %v626
    %v641 = vxor.u32 %v627, 2147483648
    %v642 = vmul.f32 %v641, 1.442695
    %v643 = vpow.pop %v642
    %v644 = vadd.f32 %v643, 1.0
    %v645 = vrcp.pop %v644
    %v646 = vmul.f32 1.0, %v645
    %v647 = vmul.f32 %v639, %v373
    %v648 = vmul.f32 %v633, %v640
    %v649 = vadd.f32 %v647, %v648
    %v650 = vtanh.pop %v649
    %v651 = vmul.f32 %v646, %v650
    %652 = vst [vmem:[#allocation2] sm:$0xff] %v651
    %653 = vst [vmem:[#allocation3] sm:$0xff] %v649
    %654 = vst [vmem:[#allocation4] sm:$0xff] %v651
    %v655 = vld [vmem:[#allocation2] sm:$0xff]
    %v656 = vld [vmem:[#allocation3] sm:$0xff]
    %s657 = smul.u32 1, 4
    %s658 = smul.addr %s657, 8
    %s659 = scalar_lea.vmem [#allocation5], %s658
    %v660 = vld [vmem:[%s659] sm:$0xff]
    %v661 = vld [vmem:[%s659 + $0x8] sm:$0xff]
    %v662 = vld [vmem:[%s659 + $0x10] sm:$0xff]
    %v663 = vld [vmem:[%s659 + $0x18] sm:$0xff]
    %v664 = vpack.c.bf16 %v655, %v655
    %665 = vmatprep.subr.bf16.mxu0 %v507
    %666 = vmatpush1.bf16.msra.mxu0 %v506
    %667 = vmatprep.subr.bf16.mxu0 %v503
    %668 = vmatpush1.bf16.msra.mxu0 %v502
    %669 = vmatprep.subr.bf16.mxu0 %v499
    %670 = vmatpush1.bf16.msra.mxu0 %v498
    %671 = vmatprep.subr.bf16.mxu0 %v495
    %672 = vmatpush1.bf16.msra.mxu0 %v494
    %673 = vmatprep.subr.bf16.mxu0 %v491
    %674 = vmatpush1.bf16.msra.mxu0 %v490
    %675 = vmatprep.subr.bf16.mxu0 %v487
    %676 = vmatpush1.bf16.msra.mxu0 %v486
    %677 = vmatprep.subr.bf16.mxu0 %v483
    %678 = vmatpush1.bf16.msra.mxu0 %v482
    %679 = vmatprep.subr.bf16.mxu0 %v479
    %680 = vmatpush1.bf16.msra.mxu0 %v478
    %681 = vmatprep.subr.bf16.mxu0 0
    %682 = vmatpush2.bf16.msra.mxu0 0
    %683 = vmatprep.subr.bf16.mxu0 0
    %684 = vmatpush2.bf16.msra.mxu0 0
    %685 = vmatprep.subr.bf16.mxu0 0
    %686 = vmatpush2.bf16.msra.mxu0 0
    %687 = vmatprep.subr.bf16.mxu0 0
    %688 = vmatpush2.bf16.msra.mxu0 0
    %689 = vmatprep.subr.bf16.mxu0 0
    %690 = vmatpush2.bf16.msra.mxu0 0
    %691 = vmatprep.subr.bf16.mxu0 0
    %692 = vmatpush2.bf16.msra.mxu0 0
    %693 = vmatprep.subr.bf16.mxu0 0
    %694 = vmatpush2.bf16.msra.mxu0 0
    %695 = vmatprep.subr.bf16.mxu0 0
    %696 = vmatpush2.bf16.msra.mxu0 0
    %697 = vmatprep.mubr.bf16.mxu0 0
    %698 = vmatmul.mubr.bf16.gmra.mxu0 %v664
    %v699 = vpop.f32.mrf.mxu0
    %v700 = vadd.f32 0.0, %v699
    %v701 = vpop.f32.mrf.mxu0
    %v702 = vadd.f32 0.0, %v701
    %v703 = vpop.f32.mrf.mxu0
    %v704 = vpop.f32.mrf.mxu0
    %705 = vdwg.mxu0
    %706 = vmatprep.subr.bf16.mxu0 %v509
    %707 = vmatpush1.bf16.msra.mxu0 %v508
    %708 = vmatprep.subr.bf16.mxu0 %v505
    %709 = vmatpush1.bf16.msra.mxu0 %v504
    %710 = vmatprep.subr.bf16.mxu0 %v501
    %711 = vmatpush1.bf16.msra.mxu0 %v500
    %712 = vmatprep.subr.bf16.mxu0 %v497
    %713 = vmatpush1.bf16.msra.mxu0 %v496
    %714 = vmatprep.subr.bf16.mxu0 %v493
    %715 = vmatpush1.bf16.msra.mxu0 %v492
    %716 = vmatprep.subr.bf16.mxu0 %v489
    %717 = vmatpush1.bf16.msra.mxu0 %v488
    %718 = vmatprep.subr.bf16.mxu0 %v485
    %719 = vmatpush1.bf16.msra.mxu0 %v484
    %720 = vmatprep.subr.bf16.mxu0 %v481
    %721 = vmatpush1.bf16.msra.mxu0 %v480
    %722 = vmatprep.subr.bf16.mxu0 0
    %723 = vmatpush2.bf16.msra.mxu0 0
    %724 = vmatprep.subr.bf16.mxu0 0
    %725 = vmatpush2.bf16.msra.mxu0 0
    %726 = vmatprep.subr.bf16.mxu0 0
    %727 = vmatpush2.bf16.msra.mxu0 0
    %728 = vmatprep.subr.bf16.mxu0 0
    %729 = vmatpush2.bf16.msra.mxu0 0
    %730 = vmatprep.subr.bf16.mxu0 0
    %731 = vmatpush2.bf16.msra.mxu0 0
    %732 = vmatprep.subr.bf16.mxu0 0
    %733 = vmatpush2.bf16.msra.mxu0 0
    %734 = vmatprep.subr.bf16.mxu0 0
    %735 = vmatpush2.bf16.msra.mxu0 0
    %736 = vmatprep.subr.bf16.mxu0 0
    %737 = vmatpush2.bf16.msra.mxu0 0
    %738 = vmatprep.mubr.bf16.mxu0 0
    %739 = vmatmul.mubr.bf16.gmra.mxu0 %v664
    %v740 = vpop.f32.mrf.mxu0
    %v741 = vadd.f32 0.0, %v740
    %v742 = vpop.f32.mrf.mxu0
    %v743 = vadd.f32 0.0, %v742
    %v744 = vpop.f32.mrf.mxu0
    %v745 = vpop.f32.mrf.mxu0
    %746 = vdwg.mxu0
    %v747 = vadd.f32 %v660, %v700
    %v748 = vadd.f32 %v661, %v702
    %v749 = vadd.f32 %v662, %v741
    %v750 = vadd.f32 %v663, %v743
    %v751 = vxor.u32 %v747, 2147483648
    %v752 = vmul.f32 %v751, 1.442695
    %v753 = vpow.pop %v752
    %v754 = vadd.f32 %v753, 1.0
    %v755 = vrcp.pop %v754
    %v756 = vmul.f32 1.0, %v755
    %v757 = vxor.u32 %v748, 2147483648
    %v758 = vmul.f32 %v757, 1.442695
    %v759 = vpow.pop %v758
    %v760 = vadd.f32 %v759, 1.0
    %v761 = vrcp.pop %v760
    %v762 = vmul.f32 1.0, %v761
    %v763 = vtanh.pop %v749
    %v764 = vxor.u32 %v750, 2147483648
    %v765 = vmul.f32 %v764, 1.442695
    %v766 = vpow.pop %v765
    %v767 = vadd.f32 %v766, 1.0
    %v768 = vrcp.pop %v767
    %v769 = vmul.f32 1.0, %v768
    %v770 = vmul.f32 %v762, %v656
    %v771 = vmul.f32 %v756, %v763
    %v772 = vadd.f32 %v770, %v771
    %v773 = vtanh.pop %v772
    %v774 = vmul.f32 %v769, %v773
    %775 = vst [vmem:[#allocation2] sm:$0xff] %v774
    %776 = vst [vmem:[#allocation3] sm:$0xff] %v772
    %s777 = scalar_lea.vmem [#allocation4], 8
    %778 = vst [vmem:[%s777] sm:$0xff] %v774
    %v779 = vld [vmem:[#allocation2] sm:$0xff]
    %v780 = vld [vmem:[#allocation3] sm:$0xff]
    %s781 = smul.u32 2, 4
    %s782 = smul.addr %s781, 8
    %s783 = scalar_lea.vmem [#allocation5], %s782
    %v784 = vld [vmem:[%s783] sm:$0xff]
    %v785 = vld [vmem:[%s783 + $0x8] sm:$0xff]
    %v786 = vld [vmem:[%s783 + $0x10] sm:$0xff]
    %v787 = vld [vmem:[%s783 + $0x18] sm:$0xff]
    %v788 = vpack.c.bf16 %v779, %v779
    %789 = vmatprep.subr.bf16.mxu0 %v507
    %790 = vmatpush1.bf16.msra.mxu0 %v506
    %791 = vmatprep.subr.bf16.mxu0 %v503
    %792 = vmatpush1.bf16.msra.mxu0 %v502
    %793 = vmatprep.subr.bf16.mxu0 %v499
    %794 = vmatpush1.bf16.msra.mxu0 %v498
    %795 = vmatprep.subr.bf16.mxu0 %v495
    %796 = vmatpush1.bf16.msra.mxu0 %v494
    %797 = vmatprep.subr.bf16.mxu0 %v491
    %798 = vmatpush1.bf16.msra.mxu0 %v490
    %799 = vmatprep.subr.bf16.mxu0 %v487
    %800 = vmatpush1.bf16.msra.mxu0 %v486
    %801 = vmatprep.subr.bf16.mxu0 %v483
    %802 = vmatpush1.bf16.msra.mxu0 %v482
    %803 = vmatprep.subr.bf16.mxu0 %v479
    %804 = vmatpush1.bf16.msra.mxu0 %v478
    %805 = vmatprep.subr.bf16.mxu0 0
    %806 = vmatpush2.bf16.msra.mxu0 0
    %807 = vmatprep.subr.bf16.mxu0 0
    %808 = vmatpush2.bf16.msra.mxu0 0
    %809 = vmatprep.subr.bf16.mxu0 0
    %810 = vmatpush2.bf16.msra.mxu0 0
    %811 = vmatprep.subr.bf16.mxu0 0
    %812 = vmatpush2.bf16.msra.mxu0 0
    %813 = vmatprep.subr.bf16.mxu0 0
    %814 = vmatpush2.bf16.msra.mxu0 0
    %815 = vmatprep.subr.bf16.mxu0 0
    %816 = vmatpush2.bf16.msra.mxu0 0
    %817 = vmatprep.subr.bf16.mxu0 0
    %818 = vmatpush2.bf16.msra.mxu0 0
    %819 = vmatprep.subr.bf16.mxu0 0
    %820 = vmatpush2.bf16.msra.mxu0 0
    %821 = vmatprep.mubr.bf16.mxu0 0
    %822 = vmatmul.mubr.bf16.gmra.mxu0 %v788
    %v823 = vpop.f32.mrf.mxu0
    %v824 = vadd.f32 0.0, %v823
    %v825 = vpop.f32.mrf.mxu0
    %v826 = vadd.f32 0.0, %v825
    %v827 = vpop.f32.mrf.mxu0
    %v828 = vpop.f32.mrf.mxu0
    %829 = vdwg.mxu0
    %830 = vmatprep.subr.bf16.mxu0 %v509
    %831 = vmatpush1.bf16.msra.mxu0 %v508
    %832 = vmatprep.subr.bf16.mxu0 %v505
    %833 = vmatpush1.bf16.msra.mxu0 %v504
    %834 = vmatprep.subr.bf16.mxu0 %v501
    %835 = vmatpush1.bf16.msra.mxu0 %v500
    %836 = vmatprep.subr.bf16.mxu0 %v497
    %837 = vmatpush1.bf16.msra.mxu0 %v496
    %838 = vmatprep.subr.bf16.mxu0 %v493
    %839 = vmatpush1.bf16.msra.mxu0 %v492
    %840 = vmatprep.subr.bf16.mxu0 %v489
    %841 = vmatpush1.bf16.msra.mxu0 %v488
    %842 = vmatprep.subr.bf16.mxu0 %v485
    %843 = vmatpush1.bf16.msra.mxu0 %v484
    %844 = vmatprep.subr.bf16.mxu0 %v481
    %845 = vmatpush1.bf16.msra.mxu0 %v480
    %846 = vmatprep.subr.bf16.mxu0 0
    %847 = vmatpush2.bf16.msra.mxu0 0
    %848 = vmatprep.subr.bf16.mxu0 0
    %849 = vmatpush2.bf16.msra.mxu0 0
    %850 = vmatprep.subr.bf16.mxu0 0
    %851 = vmatpush2.bf16.msra.mxu0 0
    %852 = vmatprep.subr.bf16.mxu0 0
    %853 = vmatpush2.bf16.msra.mxu0 0
    %854 = vmatprep.subr.bf16.mxu0 0
    %855 = vmatpush2.bf16.msra.mxu0 0
    %856 = vmatprep.subr.bf16.mxu0 0
    %857 = vmatpush2.bf16.msra.mxu0 0
    %858 = vmatprep.subr.bf16.mxu0 0
    %859 = vmatpush2.bf16.msra.mxu0 0
    %860 = vmatprep.subr.bf16.mxu0 0
    %861 = vmatpush2.bf16.msra.mxu0 0
    %862 = vmatprep.mubr.bf16.mxu0 0
    %863 = vmatmul.mubr.bf16.gmra.mxu0 %v788
    %v864 = vpop.f32.mrf.mxu0
    %v865 = vadd.f32 0.0, %v864
    %v866 = vpop.f32.mrf.mxu0
    %v867 = vadd.f32 0.0, %v866
    %v868 = vpop.f32.mrf.mxu0
    %v869 = vpop.f32.mrf.mxu0
    %870 = vdwg.mxu0
    %v871 = vadd.f32 %v784, %v824
    %v872 = vadd.f32 %v785, %v826
    %v873 = vadd.f32 %v786, %v865
    %v874 = vadd.f32 %v787, %v867
    %v875 = vxor.u32 %v871, 2147483648
    %v876 = vmul.f32 %v875, 1.442695
    %v877 = vpow.pop %v876
    %v878 = vadd.f32 %v877, 1.0
    %v879 = vrcp.pop %v878
    %v880 = vmul.f32 1.0, %v879
    %v881 = vxor.u32 %v872, 2147483648
    %v882 = vmul.f32 %v881, 1.442695
    %v883 = vpow.pop %v882
    %v884 = vadd.f32 %v883, 1.0
    %v885 = vrcp.pop %v884
    %v886 = vmul.f32 1.0, %v885
    %v887 = vtanh.pop %v873
    %v888 = vxor.u32 %v874, 2147483648
    %v889 = vmul.f32 %v888, 1.442695
    %v890 = vpow.pop %v889
    %v891 = vadd.f32 %v890, 1.0
    %v892 = vrcp.pop %v891
    %v893 = vmul.f32 1.0, %v892
    %v894 = vmul.f32 %v886, %v780
    %v895 = vmul.f32 %v880, %v887
    %v896 = vadd.f32 %v894, %v895
    %v897 = vtanh.pop %v896
    %v898 = vmul.f32 %v893, %v897
    %899 = vst [vmem:[#allocation2] sm:$0xff] %v898
    %900 = vst [vmem:[#allocation3] sm:$0xff] %v896
    %s901 = scalar_lea.vmem [#allocation4], 16
    %902 = vst [vmem:[%s901] sm:$0xff] %v898
    %v903 = vld [vmem:[#allocation2] sm:$0xff]
    %v904 = vld [vmem:[#allocation3] sm:$0xff]
    %s905 = smul.u32 3, 4
    %s906 = smul.addr %s905, 8
    %s907 = scalar_lea.vmem [#allocation5], %s906
    %v908 = vld [vmem:[%s907] sm:$0xff]
    %v909 = vld [vmem:[%s907 + $0x8] sm:$0xff]
    %v910 = vld [vmem:[%s907 + $0x10] sm:$0xff]
    %v911 = vld [vmem:[%s907 + $0x18] sm:$0xff]
    %v912 = vpack.c.bf16 %v903, %v903
    %913 = vmatprep.subr.bf16.mxu0 %v507
    %914 = vmatpush1.bf16.msra.mxu0 %v506
    %915 = vmatprep.subr.bf16.mxu0 %v503
    %916 = vmatpush1.bf16.msra.mxu0 %v502
    %917 = vmatprep.subr.bf16.mxu0 %v499
    %918 = vmatpush1.bf16.msra.mxu0 %v498
    %919 = vmatprep.subr.bf16.mxu0 %v495
    %920 = vmatpush1.bf16.msra.mxu0 %v494
    %921 = vmatprep.subr.bf16.mxu0 %v491
    %922 = vmatpush1.bf16.msra.mxu0 %v490
    %923 = vmatprep.subr.bf16.mxu0 %v487
    %924 = vmatpush1.bf16.msra.mxu0 %v486
    %925 = vmatprep.subr.bf16.mxu0 %v483
    %926 = vmatpush1.bf16.msra.mxu0 %v482
    %927 = vmatprep.subr.bf16.mxu0 %v479
    %928 = vmatpush1.bf16.msra.mxu0 %v478
    %929 = vmatprep.subr.bf16.mxu0 0
    %930 = vmatpush2.bf16.msra.mxu0 0
    %931 = vmatprep.subr.bf16.mxu0 0
    %932 = vmatpush2.bf16.msra.mxu0 0
    %933 = vmatprep.subr.bf16.mxu0 0
    %934 = vmatpush2.bf16.msra.mxu0 0
    %935 = vmatprep.subr.bf16.mxu0 0
    %936 = vmatpush2.bf16.msra.mxu0 0
    %937 = vmatprep.subr.bf16.mxu0 0
    %938 = vmatpush2.bf16.msra.mxu0 0
    %939 = vmatprep.subr.bf16.mxu0 0
    %940 = vmatpush2.bf16.msra.mxu0 0
    %941 = vmatprep.subr.bf16.mxu0 0
    %942 = vmatpush2.bf16.msra.mxu0 0
    %943 = vmatprep.subr.bf16.mxu0 0
    %944 = vmatpush2.bf16.msra.mxu0 0
    %945 = vmatprep.mubr.bf16.mxu0 0
    %946 = vmatmul.mubr.bf16.gmra.mxu0 %v912
    %v947 = vpop.f32.mrf.mxu0
    %v948 = vadd.f32 0.0, %v947
    %v949 = vpop.f32.mrf.mxu0
    %v950 = vadd.f32 0.0, %v949
    %v951 = vpop.f32.mrf.mxu0
    %v952 = vpop.f32.mrf.mxu0
    %953 = vdwg.mxu0
    %954 = vmatprep.subr.bf16.mxu0 %v509
    %955 = vmatpush1.bf16.msra.mxu0 %v508
    %956 = vmatprep.subr.bf16.mxu0 %v505
    %957 = vmatpush1.bf16.msra.mxu0 %v504
    %958 = vmatprep.subr.bf16.mxu0 %v501
    %959 = vmatpush1.bf16.msra.mxu0 %v500
    %960 = vmatprep.subr.bf16.mxu0 %v497
    %961 = vmatpush1.bf16.msra.mxu0 %v496
    %962 = vmatprep.subr.bf16.mxu0 %v493
    %963 = vmatpush1.bf16.msra.mxu0 %v492
    %964 = vmatprep.subr.bf16.mxu0 %v489
    %965 = vmatpush1.bf16.msra.mxu0 %v488
    %966 = vmatprep.subr.bf16.mxu0 %v485
    %967 = vmatpush1.bf16.msra.mxu0 %v484
    %968 = vmatprep.subr.bf16.mxu0 %v481
    %969 = vmatpush1.bf16.msra.mxu0 %v480
    %970 = vmatprep.subr.bf16.mxu0 0
    %971 = vmatpush2.bf16.msra.mxu0 0
    %972 = vmatprep.subr.bf16.mxu0 0
    %973 = vmatpush2.bf16.msra.mxu0 0
    %974 = vmatprep.subr.bf16.mxu0 0
    %975 = vmatpush2.bf16.msra.mxu0 0
    %976 = vmatprep.subr.bf16.mxu0 0
    %977 = vmatpush2.bf16.msra.mxu0 0
    %978 = vmatprep.subr.bf16.mxu0 0
    %979 = vmatpush2.bf16.msra.mxu0 0
    %980 = vmatprep.subr.bf16.mxu0 0
    %981 = vmatpush2.bf16.msra.mxu0 0
    %982 = vmatprep.subr.bf16.mxu0 0
    %983 = vmatpush2.bf16.msra.mxu0 0
    %984 = vmatprep.subr.bf16.mxu0 0
    %985 = vmatpush2.bf16.msra.mxu0 0
    %986 = vmatprep.mubr.bf16.mxu0 0
    %987 = vmatmul.mubr.bf16.gmra.mxu0 %v912
    %v988 = vpop.f32.mrf.mxu0
    %v989 = vadd.f32 0.0, %v988
    %v990 = vpop.f32.mrf.mxu0
    %v991 = vadd.f32 0.0, %v990
    %v992 = vpop.f32.mrf.mxu0
    %v993 = vpop.f32.mrf.mxu0
    %994 = vdwg.mxu0
    %v995 = vadd.f32 %v908, %v948
    %v996 = vadd.f32 %v909, %v950
    %v997 = vadd.f32 %v910, %v989
    %v998 = vadd.f32 %v911, %v991
    %v999 = vxor.u32 %v995, 2147483648
    %v1000 = vmul.f32 %v999, 1.442695
    %v1001 = vpow.pop %v1000
    %v1002 = vadd.f32 %v1001, 1.0
    %v1003 = vrcp.pop %v1002
    %v1004 = vmul.f32 1.0, %v1003
    %v1005 = vxor.u32 %v996, 2147483648
    %v1006 = vmul.f32 %v1005, 1.442695
    %v1007 = vpow.pop %v1006
    %v1008 = vadd.f32 %v1007, 1.0
    %v1009 = vrcp.pop %v1008
    %v1010 = vmul.f32 1.0, %v1009
    %v1011 = vtanh.pop %v997
    %v1012 = vxor.u32 %v998, 2147483648
    %v1013 = vmul.f32 %v1012, 1.442695
    %v1014 = vpow.pop %v1013
    %v1015 = vadd.f32 %v1014, 1.0
    %v1016 = vrcp.pop %v1015
    %v1017 = vmul.f32 1.0, %v1016
    %v1018 = vmul.f32 %v1010, %v904
    %v1019 = vmul.f32 %v1004, %v1011
    %v1020 = vadd.f32 %v1018, %v1019
    %v1021 = vtanh.pop %v1020
    %v1022 = vmul.f32 %v1017, %v1021
    %1023 = vst [vmem:[#allocation2] sm:$0xff] %v1022
    %1024 = vst [vmem:[#allocation3] sm:$0xff] %v1020
    %s1025 = scalar_lea.vmem [#allocation4], 24
    %1026 = vst [vmem:[%s1025] sm:$0xff] %v1022
    %v1027 = vld [vmem:[#allocation2] sm:$0xff]
    %v1028 = vld [vmem:[#allocation3] sm:$0xff]
    %s1029 = smul.u32 4, 4
    %s1030 = smul.addr %s1029, 8
    %s1031 = scalar_lea.vmem [#allocation5], %s1030
    %v1032 = vld [vmem:[%s1031] sm:$0xff]
    %v1033 = vld [vmem:[%s1031 + $0x8] sm:$0xff]
    %v1034 = vld [vmem:[%s1031 + $0x10] sm:$0xff]
    %v1035 = vld [vmem:[%s1031 + $0x18] sm:$0xff]
    %v1036 = vpack.c.bf16 %v1027, %v1027
    %1037 = vmatprep.subr.bf16.mxu0 %v507
    %1038 = vmatpush1.bf16.msra.mxu0 %v506
    %1039 = vmatprep.subr.bf16.mxu0 %v503
    %1040 = vmatpush1.bf16.msra.mxu0 %v502
    %1041 = vmatprep.subr.bf16.mxu0 %v499
    %1042 = vmatpush1.bf16.msra.mxu0 %v498
    %1043 = vmatprep.subr.bf16.mxu0 %v495
    %1044 = vmatpush1.bf16.msra.mxu0 %v494
    %1045 = vmatprep.subr.bf16.mxu0 %v491
    %1046 = vmatpush1.bf16.msra.mxu0 %v490
    %1047 = vmatprep.subr.bf16.mxu0 %v487
    %1048 = vmatpush1.bf16.msra.mxu0 %v486
    %1049 = vmatprep.subr.bf16.mxu0 %v483
    %1050 = vmatpush1.bf16.msra.mxu0 %v482
    %1051 = vmatprep.subr.bf16.mxu0 %v479
    %1052 = vmatpush1.bf16.msra.mxu0 %v478
    %1053 = vmatprep.subr.bf16.mxu0 0
    %1054 = vmatpush2.bf16.msra.mxu0 0
    %1055 = vmatprep.subr.bf16.mxu0 0
    %1056 = vmatpush2.bf16.msra.mxu0 0
    %1057 = vmatprep.subr.bf16.mxu0 0
    %1058 = vmatpush2.bf16.msra.mxu0 0
    %1059 = vmatprep.subr.bf16.mxu0 0
    %1060 = vmatpush2.bf16.msra.mxu0 0
    %1061 = vmatprep.subr.bf16.mxu0 0
    %1062 = vmatpush2.bf16.msra.mxu0 0
    %1063 = vmatprep.subr.bf16.mxu0 0
    %1064 = vmatpush2.bf16.msra.mxu0 0
    %1065 = vmatprep.subr.bf16.mxu0 0
    %1066 = vmatpush2.bf16.msra.mxu0 0
    %1067 = vmatprep.subr.bf16.mxu0 0
    %1068 = vmatpush2.bf16.msra.mxu0 0
    %1069 = vmatprep.mubr.bf16.mxu0 0
    %1070 = vmatmul.mubr.bf16.gmra.mxu0 %v1036
    %v1071 = vpop.f32.mrf.mxu0
    %v1072 = vadd.f32 0.0, %v1071
    %v1073 = vpop.f32.mrf.mxu0
    %v1074 = vadd.f32 0.0, %v1073
    %v1075 = vpop.f32.mrf.mxu0
    %v1076 = vpop.f32.mrf.mxu0
    %1077 = vdwg.mxu0
    %1078 = vmatprep.subr.bf16.mxu0 %v509
    %1079 = vmatpush1.bf16.msra.mxu0 %v508
    %1080 = vmatprep.subr.bf16.mxu0 %v505
    %1081 = vmatpush1.bf16.msra.mxu0 %v504
    %1082 = vmatprep.subr.bf16.mxu0 %v501
    %1083 = vmatpush1.bf16.msra.mxu0 %v500
    %1084 = vmatprep.subr.bf16.mxu0 %v497
    %1085 = vmatpush1.bf16.msra.mxu0 %v496
    %1086 = vmatprep.subr.bf16.mxu0 %v493
    %1087 = vmatpush1.bf16.msra.mxu0 %v492
    %1088 = vmatprep.subr.bf16.mxu0 %v489
    %1089 = vmatpush1.bf16.msra.mxu0 %v488
    %1090 = vmatprep.subr.bf16.mxu0 %v485
    %1091 = vmatpush1.bf16.msra.mxu0 %v484
    %1092 = vmatprep.subr.bf16.mxu0 %v481
    %1093 = vmatpush1.bf16.msra.mxu0 %v480
    %1094 = vmatprep.subr.bf16.mxu0 0
    %1095 = vmatpush2.bf16.msra.mxu0 0
    %1096 = vmatprep.subr.bf16.mxu0 0
    %1097 = vmatpush2.bf16.msra.mxu0 0
    %1098 = vmatprep.subr.bf16.mxu0 0
    %1099 = vmatpush2.bf16.msra.mxu0 0
    %1100 = vmatprep.subr.bf16.mxu0 0
    %1101 = vmatpush2.bf16.msra.mxu0 0
    %1102 = vmatprep.subr.bf16.mxu0 0
    %1103 = vmatpush2.bf16.msra.mxu0 0
    %1104 = vmatprep.subr.bf16.mxu0 0
    %1105 = vmatpush2.bf16.msra.mxu0 0
    %1106 = vmatprep.subr.bf16.mxu0 0
    %1107 = vmatpush2.bf16.msra.mxu0 0
    %1108 = vmatprep.subr.bf16.mxu0 0
    %1109 = vmatpush2.bf16.msra.mxu0 0
    %1110 = vmatprep.mubr.bf16.mxu0 0
    %1111 = vmatmul.mubr.bf16.gmra.mxu0 %v1036
    %v1112 = vpop.f32.mrf.mxu0
    %v1113 = vadd.f32 0.0, %v1112
    %v1114 = vpop.f32.mrf.mxu0
    %v1115 = vadd.f32 0.0, %v1114
    %v1116 = vpop.f32.mrf.mxu0
    %v1117 = vpop.f32.mrf.mxu0
    %1118 = vdwg.mxu0
    %v1119 = vadd.f32 %v1032, %v1072
    %v1120 = vadd.f32 %v1033, %v1074
    %v1121 = vadd.f32 %v1034, %v1113
    %v1122 = vadd.f32 %v1035, %v1115
    %v1123 = vxor.u32 %v1119, 2147483648
    %v1124 = vmul.f32 %v1123, 1.442695
    %v1125 = vpow.pop %v1124
    %v1126 = vadd.f32 %v1125, 1.0
    %v1127 = vrcp.pop %v1126
    %v1128 = vmul.f32 1.0, %v1127
    %v1129 = vxor.u32 %v1120, 2147483648
    %v1130 = vmul.f32 %v1129, 1.442695
    %v1131 = vpow.pop %v1130
    %v1132 = vadd.f32 %v1131, 1.0
    %v1133 = vrcp.pop %v1132
    %v1134 = vmul.f32 1.0, %v1133
    %v1135 = vtanh.pop %v1121
    %v1136 = vxor.u32 %v1122, 2147483648
    %v1137 = vmul.f32 %v1136, 1.442695
    %v1138 = vpow.pop %v1137
    %v1139 = vadd.f32 %v1138, 1.0
    %v1140 = vrcp.pop %v1139
    %v1141 = vmul.f32 1.0, %v1140
    %v1142 = vmul.f32 %v1134, %v1028
    %v1143 = vmul.f32 %v1128, %v1135
    %v1144 = vadd.f32 %v1142, %v1143
    %v1145 = vtanh.pop %v1144
    %v1146 = vmul.f32 %v1141, %v1145
    %1147 = vst [vmem:[#allocation2] sm:$0xff] %v1146
    %1148 = vst [vmem:[#allocation3] sm:$0xff] %v1144
    %s1149 = scalar_lea.vmem [#allocation4], 32
    %1150 = vst [vmem:[%s1149] sm:$0xff] %v1146
    %v1151 = vld [vmem:[#allocation2] sm:$0xff]
    %v1152 = vld [vmem:[#allocation3] sm:$0xff]
    %s1153 = smul.u32 5, 4
    %s1154 = smul.addr %s1153, 8
    %s1155 = scalar_lea.vmem [#allocation5], %s1154
    %v1156 = vld [vmem:[%s1155] sm:$0xff]
    %v1157 = vld [vmem:[%s1155 + $0x8] sm:$0xff]
    %v1158 = vld [vmem:[%s1155 + $0x10] sm:$0xff]
    %v1159 = vld [vmem:[%s1155 + $0x18] sm:$0xff]
    %v1160 = vpack.c.bf16 %v1151, %v1151
    %1161 = vmatprep.subr.bf16.mxu0 %v507
    %1162 = vmatpush1.bf16.msra.mxu0 %v506
    %1163 = vmatprep.subr.bf16.mxu0 %v503
    %1164 = vmatpush1.bf16.msra.mxu0 %v502
    %1165 = vmatprep.subr.bf16.mxu0 %v499
    %1166 = vmatpush1.bf16.msra.mxu0 %v498
    %1167 = vmatprep.subr.bf16.mxu0 %v495
    %1168 = vmatpush1.bf16.msra.mxu0 %v494
    %1169 = vmatprep.subr.bf16.mxu0 %v491
    %1170 = vmatpush1.bf16.msra.mxu0 %v490
    %1171 = vmatprep.subr.bf16.mxu0 %v487
    %1172 = vmatpush1.bf16.msra.mxu0 %v486
    %1173 = vmatprep.subr.bf16.mxu0 %v483
    %1174 = vmatpush1.bf16.msra.mxu0 %v482
    %1175 = vmatprep.subr.bf16.mxu0 %v479
    %1176 = vmatpush1.bf16.msra.mxu0 %v478
    %1177 = vmatprep.subr.bf16.mxu0 0
    %1178 = vmatpush2.bf16.msra.mxu0 0
    %1179 = vmatprep.subr.bf16.mxu0 0
    %1180 = vmatpush2.bf16.msra.mxu0 0
    %1181 = vmatprep.subr.bf16.mxu0 0
    %1182 = vmatpush2.bf16.msra.mxu0 0
    %1183 = vmatprep.subr.bf16.mxu0 0
    %1184 = vmatpush2.bf16.msra.mxu0 0
    %1185 = vmatprep.subr.bf16.mxu0 0
    %1186 = vmatpush2.bf16.msra.mxu0 0
    %1187 = vmatprep.subr.bf16.mxu0 0
    %1188 = vmatpush2.bf16.msra.mxu0 0
    %1189 = vmatprep.subr.bf16.mxu0 0
    %1190 = vmatpush2.bf16.msra.mxu0 0
    %1191 = vmatprep.subr.bf16.mxu0 0
    %1192 = vmatpush2.bf16.msra.mxu0 0
    %1193 = vmatprep.mubr.bf16.mxu0 0
    %1194 = vmatmul.mubr.bf16.gmra.mxu0 %v1160
    %v1195 = vpop.f32.mrf.mxu0
    %v1196 = vadd.f32 0.0, %v1195
    %v1197 = vpop.f32.mrf.mxu0
    %v1198 = vadd.f32 0.0, %v1197
    %v1199 = vpop.f32.mrf.mxu0
    %v1200 = vpop.f32.mrf.mxu0
    %1201 = vdwg.mxu0
    %1202 = vmatprep.subr.bf16.mxu0 %v509
    %1203 = vmatpush1.bf16.msra.mxu0 %v508
    %1204 = vmatprep.subr.bf16.mxu0 %v505
    %1205 = vmatpush1.bf16.msra.mxu0 %v504
    %1206 = vmatprep.subr.bf16.mxu0 %v501
    %1207 = vmatpush1.bf16.msra.mxu0 %v500
    %1208 = vmatprep.subr.bf16.mxu0 %v497
    %1209 = vmatpush1.bf16.msra.mxu0 %v496
    %1210 = vmatprep.subr.bf16.mxu0 %v493
    %1211 = vmatpush1.bf16.msra.mxu0 %v492
    %1212 = vmatprep.subr.bf16.mxu0 %v489
    %1213 = vmatpush1.bf16.msra.mxu0 %v488
    %1214 = vmatprep.subr.bf16.mxu0 %v485
    %1215 = vmatpush1.bf16.msra.mxu0 %v484
    %1216 = vmatprep.subr.bf16.mxu0 %v481
    %1217 = vmatpush1.bf16.msra.mxu0 %v480
    %1218 = vmatprep.subr.bf16.mxu0 0
    %1219 = vmatpush2.bf16.msra.mxu0 0
    %1220 = vmatprep.subr.bf16.mxu0 0
    %1221 = vmatpush2.bf16.msra.mxu0 0
    %1222 = vmatprep.subr.bf16.mxu0 0
    %1223 = vmatpush2.bf16.msra.mxu0 0
    %1224 = vmatprep.subr.bf16.mxu0 0
    %1225 = vmatpush2.bf16.msra.mxu0 0
    %1226 = vmatprep.subr.bf16.mxu0 0
    %1227 = vmatpush2.bf16.msra.mxu0 0
    %1228 = vmatprep.subr.bf16.mxu0 0
    %1229 = vmatpush2.bf16.msra.mxu0 0
    %1230 = vmatprep.subr.bf16.mxu0 0
    %1231 = vmatpush2.bf16.msra.mxu0 0
    %1232 = vmatprep.subr.bf16.mxu0 0
    %1233 = vmatpush2.bf16.msra.mxu0 0
    %1234 = vmatprep.mubr.bf16.mxu0 0
    %1235 = vmatmul.mubr.bf16.gmra.mxu0 %v1160
    %v1236 = vpop.f32.mrf.mxu0
    %v1237 = vadd.f32 0.0, %v1236
    %v1238 = vpop.f32.mrf.mxu0
    %v1239 = vadd.f32 0.0, %v1238
    %v1240 = vpop.f32.mrf.mxu0
    %v1241 = vpop.f32.mrf.mxu0
    %1242 = vdwg.mxu0
    %v1243 = vadd.f32 %v1156, %v1196
    %v1244 = vadd.f32 %v1157, %v1198
    %v1245 = vadd.f32 %v1158, %v1237
    %v1246 = vadd.f32 %v1159, %v1239
    %v1247 = vxor.u32 %v1243, 2147483648
    %v1248 = vmul.f32 %v1247, 1.442695
    %v1249 = vpow.pop %v1248
    %v1250 = vadd.f32 %v1249, 1.0
    %v1251 = vrcp.pop %v1250
    %v1252 = vmul.f32 1.0, %v1251
    %v1253 = vxor.u32 %v1244, 2147483648
    %v1254 = vmul.f32 %v1253, 1.442695
    %v1255 = vpow.pop %v1254
    %v1256 = vadd.f32 %v1255, 1.0
    %v1257 = vrcp.pop %v1256
    %v1258 = vmul.f32 1.0, %v1257
    %v1259 = vtanh.pop %v1245
    %v1260 = vxor.u32 %v1246, 2147483648
    %v1261 = vmul.f32 %v1260, 1.442695
    %v1262 = vpow.pop %v1261
    %v1263 = vadd.f32 %v1262, 1.0
    %v1264 = vrcp.pop %v1263
    %v1265 = vmul.f32 1.0, %v1264
    %v1266 = vmul.f32 %v1258, %v1152
    %v1267 = vmul.f32 %v1252, %v1259
    %v1268 = vadd.f32 %v1266, %v1267
    %v1269 = vtanh.pop %v1268
    %v1270 = vmul.f32 %v1265, %v1269
    %1271 = vst [vmem:[#allocation2] sm:$0xff] %v1270
    %1272 = vst [vmem:[#allocation3] sm:$0xff] %v1268
    %s1273 = scalar_lea.vmem [#allocation4], 40
    %1274 = vst [vmem:[%s1273] sm:$0xff] %v1270
    %v1275 = vld [vmem:[#allocation2] sm:$0xff]
    %v1276 = vld [vmem:[#allocation3] sm:$0xff]
    %s1277 = smul.u32 6, 4
    %s1278 = smul.addr %s1277, 8
    %s1279 = scalar_lea.vmem [#allocation5], %s1278
    %v1280 = vld [vmem:[%s1279] sm:$0xff]
    %v1281 = vld [vmem:[%s1279 + $0x8] sm:$0xff]
    %v1282 = vld [vmem:[%s1279 + $0x10] sm:$0xff]
    %v1283 = vld [vmem:[%s1279 + $0x18] sm:$0xff]
    %v1284 = vpack.c.bf16 %v1275, %v1275
    %1285 = vmatprep.subr.bf16.mxu0 %v507
    %1286 = vmatpush1.bf16.msra.mxu0 %v506
    %1287 = vmatprep.subr.bf16.mxu0 %v503
    %1288 = vmatpush1.bf16.msra.mxu0 %v502
    %1289 = vmatprep.subr.bf16.mxu0 %v499
    %1290 = vmatpush1.bf16.msra.mxu0 %v498
    %1291 = vmatprep.subr.bf16.mxu0 %v495
    %1292 = vmatpush1.bf16.msra.mxu0 %v494
    %1293 = vmatprep.subr.bf16.mxu0 %v491
    %1294 = vmatpush1.bf16.msra.mxu0 %v490
    %1295 = vmatprep.subr.bf16.mxu0 %v487
    %1296 = vmatpush1.bf16.msra.mxu0 %v486
    %1297 = vmatprep.subr.bf16.mxu0 %v483
    %1298 = vmatpush1.bf16.msra.mxu0 %v482
    %1299 = vmatprep.subr.bf16.mxu0 %v479
    %1300 = vmatpush1.bf16.msra.mxu0 %v478
    %1301 = vmatprep.subr.bf16.mxu0 0
    %1302 = vmatpush2.bf16.msra.mxu0 0
    %1303 = vmatprep.subr.bf16.mxu0 0
    %1304 = vmatpush2.bf16.msra.mxu0 0
    %1305 = vmatprep.subr.bf16.mxu0 0
    %1306 = vmatpush2.bf16.msra.mxu0 0
    %1307 = vmatprep.subr.bf16.mxu0 0
    %1308 = vmatpush2.bf16.msra.mxu0 0
    %1309 = vmatprep.subr.bf16.mxu0 0
    %1310 = vmatpush2.bf16.msra.mxu0 0
    %1311 = vmatprep.subr.bf16.mxu0 0
    %1312 = vmatpush2.bf16.msra.mxu0 0
    %1313 = vmatprep.subr.bf16.mxu0 0
    %1314 = vmatpush2.bf16.msra.mxu0 0
    %1315 = vmatprep.subr.bf16.mxu0 0
    %1316 = vmatpush2.bf16.msra.mxu0 0
    %1317 = vmatprep.mubr.bf16.mxu0 0
    %1318 = vmatmul.mubr.bf16.gmra.mxu0 %v1284
    %v1319 = vpop.f32.mrf.mxu0
    %v1320 = vadd.f32 0.0, %v1319
    %v1321 = vpop.f32.mrf.mxu0
    %v1322 = vadd.f32 0.0, %v1321
    %v1323 = vpop.f32.mrf.mxu0
    %v1324 = vpop.f32.mrf.mxu0
    %1325 = vdwg.mxu0
    %1326 = vmatprep.subr.bf16.mxu0 %v509
    %1327 = vmatpush1.bf16.msra.mxu0 %v508
    %1328 = vmatprep.subr.bf16.mxu0 %v505
    %1329 = vmatpush1.bf16.msra.mxu0 %v504
    %1330 = vmatprep.subr.bf16.mxu0 %v501
    %1331 = vmatpush1.bf16.msra.mxu0 %v500
    %1332 = vmatprep.subr.bf16.mxu0 %v497
    %1333 = vmatpush1.bf16.msra.mxu0 %v496
    %1334 = vmatprep.subr.bf16.mxu0 %v493
    %1335 = vmatpush1.bf16.msra.mxu0 %v492
    %1336 = vmatprep.subr.bf16.mxu0 %v489
    %1337 = vmatpush1.bf16.msra.mxu0 %v488
    %1338 = vmatprep.subr.bf16.mxu0 %v485
    %1339 = vmatpush1.bf16.msra.mxu0 %v484
    %1340 = vmatprep.subr.bf16.mxu0 %v481
    %1341 = vmatpush1.bf16.msra.mxu0 %v480
    %1342 = vmatprep.subr.bf16.mxu0 0
    %1343 = vmatpush2.bf16.msra.mxu0 0
    %1344 = vmatprep.subr.bf16.mxu0 0
    %1345 = vmatpush2.bf16.msra.mxu0 0
    %1346 = vmatprep.subr.bf16.mxu0 0
    %1347 = vmatpush2.bf16.msra.mxu0 0
    %1348 = vmatprep.subr.bf16.mxu0 0
    %1349 = vmatpush2.bf16.msra.mxu0 0
    %1350 = vmatprep.subr.bf16.mxu0 0
    %1351 = vmatpush2.bf16.msra.mxu0 0
    %1352 = vmatprep.subr.bf16.mxu0 0
    %1353 = vmatpush2.bf16.msra.mxu0 0
    %1354 = vmatprep.subr.bf16.mxu0 0
    %1355 = vmatpush2.bf16.msra.mxu0 0
    %1356 = vmatprep.subr.bf16.mxu0 0
    %1357 = vmatpush2.bf16.msra.mxu0 0
    %1358 = vmatprep.mubr.bf16.mxu0 0
    %1359 = vmatmul.mubr.bf16.gmra.mxu0 %v1284
    %v1360 = vpop.f32.mrf.mxu0
    %v1361 = vadd.f32 0.0, %v1360
    %v1362 = vpop.f32.mrf.mxu0
    %v1363 = vadd.f32 0.0, %v1362
    %v1364 = vpop.f32.mrf.mxu0
    %v1365 = vpop.f32.mrf.mxu0
    %1366 = vdwg.mxu0
    %v1367 = vadd.f32 %v1280, %v1320
    %v1368 = vadd.f32 %v1281, %v1322
    %v1369 = vadd.f32 %v1282, %v1361
    %v1370 = vadd.f32 %v1283, %v1363
    %v1371 = vxor.u32 %v1367, 2147483648
    %v1372 = vmul.f32 %v1371, 1.442695
    %v1373 = vpow.pop %v1372
    %v1374 = vadd.f32 %v1373, 1.0
    %v1375 = vrcp.pop %v1374
    %v1376 = vmul.f32 1.0, %v1375
    %v1377 = vxor.u32 %v1368, 2147483648
    %v1378 = vmul.f32 %v1377, 1.442695
    %v1379 = vpow.pop %v1378
    %v1380 = vadd.f32 %v1379, 1.0
    %v1381 = vrcp.pop %v1380
    %v1382 = vmul.f32 1.0, %v1381
    %v1383 = vtanh.pop %v1369
    %v1384 = vxor.u32 %v1370, 2147483648
    %v1385 = vmul.f32 %v1384, 1.442695
    %v1386 = vpow.pop %v1385
    %v1387 = vadd.f32 %v1386, 1.0
    %v1388 = vrcp.pop %v1387
    %v1389 = vmul.f32 1.0, %v1388
    %v1390 = vmul.f32 %v1382, %v1276
    %v1391 = vmul.f32 %v1376, %v1383
    %v1392 = vadd.f32 %v1390, %v1391
    %v1393 = vtanh.pop %v1392
    %v1394 = vmul.f32 %v1389, %v1393
    %1395 = vst [vmem:[#allocation2] sm:$0xff] %v1394
    %1396 = vst [vmem:[#allocation3] sm:$0xff] %v1392
    %s1397 = scalar_lea.vmem [#allocation4], 48
    %1398 = vst [vmem:[%s1397] sm:$0xff] %v1394
    %v1399 = vld [vmem:[#allocation2] sm:$0xff]
    %v1400 = vld [vmem:[#allocation3] sm:$0xff]
    %s1401 = smul.u32 7, 4
    %s1402 = smul.addr %s1401, 8
    %s1403 = scalar_lea.vmem [#allocation5], %s1402
    %v1404 = vld [vmem:[%s1403] sm:$0xff]
    %v1405 = vld [vmem:[%s1403 + $0x8] sm:$0xff]
    %v1406 = vld [vmem:[%s1403 + $0x10] sm:$0xff]
    %v1407 = vld [vmem:[%s1403 + $0x18] sm:$0xff]
    %v1408 = vpack.c.bf16 %v1399, %v1399
    %1409 = vmatprep.subr.bf16.mxu0 %v507
    %1410 = vmatpush1.bf16.msra.mxu0 %v506
    %1411 = vmatprep.subr.bf16.mxu0 %v503
    %1412 = vmatpush1.bf16.msra.mxu0 %v502
    %1413 = vmatprep.subr.bf16.mxu0 %v499
    %1414 = vmatpush1.bf16.msra.mxu0 %v498
    %1415 = vmatprep.subr.bf16.mxu0 %v495
    %1416 = vmatpush1.bf16.msra.mxu0 %v494
    %1417 = vmatprep.subr.bf16.mxu0 %v491
    %1418 = vmatpush1.bf16.msra.mxu0 %v490
    %1419 = vmatprep.subr.bf16.mxu0 %v487
    %1420 = vmatpush1.bf16.msra.mxu0 %v486
    %1421 = vmatprep.subr.bf16.mxu0 %v483
    %1422 = vmatpush1.bf16.msra.mxu0 %v482
    %1423 = vmatprep.subr.bf16.mxu0 %v479
    %1424 = vmatpush1.bf16.msra.mxu0 %v478
    %1425 = vmatprep.subr.bf16.mxu0 0
    %1426 = vmatpush2.bf16.msra.mxu0 0
    %1427 = vmatprep.subr.bf16.mxu0 0
    %1428 = vmatpush2.bf16.msra.mxu0 0
    %1429 = vmatprep.subr.bf16.mxu0 0
    %1430 = vmatpush2.bf16.msra.mxu0 0
    %1431 = vmatprep.subr.bf16.mxu0 0
    %1432 = vmatpush2.bf16.msra.mxu0 0
    %1433 = vmatprep.subr.bf16.mxu0 0
    %1434 = vmatpush2.bf16.msra.mxu0 0
    %1435 = vmatprep.subr.bf16.mxu0 0
    %1436 = vmatpush2.bf16.msra.mxu0 0
    %1437 = vmatprep.subr.bf16.mxu0 0
    %1438 = vmatpush2.bf16.msra.mxu0 0
    %1439 = vmatprep.subr.bf16.mxu0 0
    %1440 = vmatpush2.bf16.msra.mxu0 0
    %1441 = vmatprep.mubr.bf16.mxu0 0
    %1442 = vmatmul.mubr.bf16.gmra.mxu0 %v1408
    %v1443 = vpop.f32.mrf.mxu0
    %v1444 = vadd.f32 0.0, %v1443
    %v1445 = vpop.f32.mrf.mxu0
    %v1446 = vadd.f32 0.0, %v1445
    %v1447 = vpop.f32.mrf.mxu0
    %v1448 = vpop.f32.mrf.mxu0
    %1449 = vdwg.mxu0
    %1450 = vmatprep.subr.bf16.mxu0 %v509
    %1451 = vmatpush1.bf16.msra.mxu0 %v508
    %1452 = vmatprep.subr.bf16.mxu0 %v505
    %1453 = vmatpush1.bf16.msra.mxu0 %v504
    %1454 = vmatprep.subr.bf16.mxu0 %v501
    %1455 = vmatpush1.bf16.msra.mxu0 %v500
    %1456 = vmatprep.subr.bf16.mxu0 %v497
    %1457 = vmatpush1.bf16.msra.mxu0 %v496
    %1458 = vmatprep.subr.bf16.mxu0 %v493
    %1459 = vmatpush1.bf16.msra.mxu0 %v492
    %1460 = vmatprep.subr.bf16.mxu0 %v489
    %1461 = vmatpush1.bf16.msra.mxu0 %v488
    %1462 = vmatprep.subr.bf16.mxu0 %v485
    %1463 = vmatpush1.bf16.msra.mxu0 %v484
    %1464 = vmatprep.subr.bf16.mxu0 %v481
    %1465 = vmatpush1.bf16.msra.mxu0 %v480
    %1466 = vmatprep.subr.bf16.mxu0 0
    %1467 = vmatpush2.bf16.msra.mxu0 0
    %1468 = vmatprep.subr.bf16.mxu0 0
    %1469 = vmatpush2.bf16.msra.mxu0 0
    %1470 = vmatprep.subr.bf16.mxu0 0
    %1471 = vmatpush2.bf16.msra.mxu0 0
    %1472 = vmatprep.subr.bf16.mxu0 0
    %1473 = vmatpush2.bf16.msra.mxu0 0
    %1474 = vmatprep.subr.bf16.mxu0 0
    %1475 = vmatpush2.bf16.msra.mxu0 0
    %1476 = vmatprep.subr.bf16.mxu0 0
    %1477 = vmatpush2.bf16.msra.mxu0 0
    %1478 = vmatprep.subr.bf16.mxu0 0
    %1479 = vmatpush2.bf16.msra.mxu0 0
    %1480 = vmatprep.subr.bf16.mxu0 0
    %1481 = vmatpush2.bf16.msra.mxu0 0
    %1482 = vmatprep.mubr.bf16.mxu0 0
    %1483 = vmatmul.mubr.bf16.gmra.mxu0 %v1408
    %v1484 = vpop.f32.mrf.mxu0
    %v1485 = vadd.f32 0.0, %v1484
    %v1486 = vpop.f32.mrf.mxu0
    %v1487 = vadd.f32 0.0, %v1486
    %v1488 = vpop.f32.mrf.mxu0
    %v1489 = vpop.f32.mrf.mxu0
    %1490 = vdwg.mxu0
    %v1491 = vadd.f32 %v1404, %v1444
    %v1492 = vadd.f32 %v1405, %v1446
    %v1493 = vadd.f32 %v1406, %v1485
    %v1494 = vadd.f32 %v1407, %v1487
    %v1495 = vxor.u32 %v1491, 2147483648
    %v1496 = vmul.f32 %v1495, 1.442695
    %v1497 = vpow.pop %v1496
    %v1498 = vadd.f32 %v1497, 1.0
    %v1499 = vrcp.pop %v1498
    %v1500 = vmul.f32 1.0, %v1499
    %v1501 = vxor.u32 %v1492, 2147483648
    %v1502 = vmul.f32 %v1501, 1.442695
    %v1503 = vpow.pop %v1502
    %v1504 = vadd.f32 %v1503, 1.0
    %v1505 = vrcp.pop %v1504
    %v1506 = vmul.f32 1.0, %v1505
    %v1507 = vtanh.pop %v1493
    %v1508 = vxor.u32 %v1494, 2147483648
    %v1509 = vmul.f32 %v1508, 1.442695
    %v1510 = vpow.pop %v1509
    %v1511 = vadd.f32 %v1510, 1.0
    %v1512 = vrcp.pop %v1511
    %v1513 = vmul.f32 1.0, %v1512
    %v1514 = vmul.f32 %v1506, %v1400
    %v1515 = vmul.f32 %v1500, %v1507
    %v1516 = vadd.f32 %v1514, %v1515
    %v1517 = vtanh.pop %v1516
    %v1518 = vmul.f32 %v1513, %v1517
    %1519 = vst [vmem:[#allocation2] sm:$0xff] %v1518
    %1520 = vst [vmem:[#allocation3] sm:$0xff] %v1516
    %s1521 = scalar_lea.vmem [#allocation4], 56
    %1522 = vst [vmem:[%s1521] sm:$0xff] %v1518
    %v1523 = vld [vmem:[#allocation4] sm:$0xff]
    %v1524 = vld [vmem:[#allocation4 + $0x8] sm:$0xff]
    %v1525 = vld [vmem:[#allocation4 + $0x10] sm:$0xff]
    %v1526 = vld [vmem:[#allocation4 + $0x18] sm:$0xff]
    %v1527 = vld [vmem:[#allocation4 + $0x20] sm:$0xff]
    %v1528 = vld [vmem:[#allocation4 + $0x28] sm:$0xff]
    %v1529 = vld [vmem:[#allocation4 + $0x30] sm:$0xff]
    %v1530 = vld [vmem:[#allocation4 + $0x38] sm:$0xff]
    %v1531 = vpack.c.bf16 %v1524, %v1523
    %v1532 = vpack.c.bf16 %v1526, %v1525
    %v1533 = vpack.c.bf16 %v1528, %v1527
    %v1534 = vpack.c.bf16 %v1530, %v1529
    %v1535 = vld [vmem:[#allocation6] sm:$0xff]
    %v1536 = vld [vmem:[#allocation6 + $0x8] sm:$0xff]
    %v1537 = vld [vmem:[#allocation6 + $0x10] sm:$0xff]
    %v1538 = vld [vmem:[#allocation6 + $0x18] sm:$0xff]
    %v1539 = vld [vmem:[#allocation6 + $0x20] sm:$0xff]
    %v1540 = vld [vmem:[#allocation6 + $0x28] sm:$0xff]
    %v1541 = vld [vmem:[#allocation6 + $0x30] sm:$0xff]
    %v1542 = vld [vmem:[#allocation6 + $0x38] sm:$0xff]
    %v1543 = vld [vmem:[#allocation6 + $0x40] sm:$0xff]
    %v1544 = vld [vmem:[#allocation6 + $0x48] sm:$0xff]
    %v1545 = vld [vmem:[#allocation6 + $0x50] sm:$0xff]
    %v1546 = vld [vmem:[#allocation6 + $0x58] sm:$0xff]
    %v1547 = vld [vmem:[#allocation6 + $0x60] sm:$0xff]
    %v1548 = vld [vmem:[#allocation6 + $0x68] sm:$0xff]
    %v1549 = vld [vmem:[#allocation6 + $0x70] sm:$0xff]
    %v1550 = vld [vmem:[#allocation6 + $0x78] sm:$0xff]
    %v1551 = vld [vmem:[#allocation6 + $0x80] sm:$0xff]
    %v1552 = vld [vmem:[#allocation6 + $0x88] sm:$0xff]
    %v1553 = vld [vmem:[#allocation6 + $0x90] sm:$0xff]
    %v1554 = vld [vmem:[#allocation6 + $0x98] sm:$0xff]
    %v1555 = vld [vmem:[#allocation6 + $0xa0] sm:$0xff]
    %v1556 = vld [vmem:[#allocation6 + $0xa8] sm:$0xff]
    %v1557 = vld [vmem:[#allocation6 + $0xb0] sm:$0xff]
    %v1558 = vld [vmem:[#allocation6 + $0xb8] sm:$0xff]
    %v1559 = vld [vmem:[#allocation6 + $0xc0] sm:$0xff]
    %v1560 = vld [vmem:[#allocation6 + $0xc8] sm:$0xff]
    %v1561 = vld [vmem:[#allocation6 + $0xd0] sm:$0xff]
    %v1562 = vld [vmem:[#allocation6 + $0xd8] sm:$0xff]
    %v1563 = vld [vmem:[#allocation6 + $0xe0] sm:$0xff]
    %v1564 = vld [vmem:[#allocation6 + $0xe8] sm:$0xff]
    %v1565 = vld [vmem:[#allocation6 + $0xf0] sm:$0xff]
    %v1566 = vld [vmem:[#allocation6 + $0xf8] sm:$0xff]
    %s1567 = scalar_lea.vmem %s4, 4
    %v1568 = vld [vmem:[%s1567] sm:$0xf]
    %v1570 = vlaneseq
    %v1571 = vshrl.u32 %v1570, 7
    %v1572 = vsub.s32 0, %v1571
    %v1573 = vrot.slane %v1568, %v1572
    %v1574 = vlaneseq
    %v1575 = vshrl.u32 %v1574, 7
    %v1576 = vsub.s32 1, %v1575
    %v1577 = vrot.slane %v1568, %v1576
    %v1578 = vlaneseq
    %v1579 = vshrl.u32 %v1578, 7
    %v1580 = vsub.s32 2, %v1579
    %v1581 = vrot.slane %v1568, %v1580
    %v1582 = vlaneseq
    %v1583 = vshrl.u32 %v1582, 7
    %v1584 = vsub.s32 3, %v1583
    %v1585 = vrot.slane %v1568, %v1584
    %v1622 = vunpack.c.l.b16 %v1535
    %v1623 = vunpack.c.h.b16 %v1535
    %v1624 = vunpack.c.l.b16 %v1536
    %v1625 = vunpack.c.h.b16 %v1536
    %v1626 = vunpack.c.l.b16 %v1537
    %v1627 = vunpack.c.h.b16 %v1537
    %v1628 = vunpack.c.l.b16 %v1538
    %v1629 = vunpack.c.h.b16 %v1538
    %v1630 = vunpack.c.l.b16 %v1539
    %v1631 = vunpack.c.h.b16 %v1539
    %v1632 = vunpack.c.l.b16 %v1540
    %v1633 = vunpack.c.h.b16 %v1540
    %v1634 = vunpack.c.l.b16 %v1541
    %v1635 = vunpack.c.h.b16 %v1541
    %v1636 = vunpack.c.l.b16 %v1542
    %v1637 = vunpack.c.h.b16 %v1542
    %v1638 = vunpack.c.l.b16 %v1543
    %v1639 = vunpack.c.h.b16 %v1543
    %v1640 = vunpack.c.l.b16 %v1544
    %v1641 = vunpack.c.h.b16 %v1544
    %v1642 = vunpack.c.l.b16 %v1545
    %v1643 = vunpack.c.h.b16 %v1545
    %v1644 = vunpack.c.l.b16 %v1546
    %v1645 = vunpack.c.h.b16 %v1546
    %v1646 = vunpack.c.l.b16 %v1547
    %v1647 = vunpack.c.h.b16 %v1547
    %v1648 = vunpack.c.l.b16 %v1548
    %v1649 = vunpack.c.h.b16 %v1548
    %v1650 = vunpack.c.l.b16 %v1549
    %v1651 = vunpack.c.h.b16 %v1549
    %v1652 = vunpack.c.l.b16 %v1550
    %v1653 = vunpack.c.h.b16 %v1550
    %v1654 = vunpack.c.l.b16 %v1551
    %v1655 = vunpack.c.h.b16 %v1551
    %v1656 = vunpack.c.l.b16 %v1552
    %v1657 = vunpack.c.h.b16 %v1552
    %v1658 = vunpack.c.l.b16 %v1553
    %v1659 = vunpack.c.h.b16 %v1553
    %v1660 = vunpack.c.l.b16 %v1554
    %v1661 = vunpack.c.h.b16 %v1554
    %v1662 = vunpack.c.l.b16 %v1555
    %v1663 = vunpack.c.h.b16 %v1555
    %v1664 = vunpack.c.l.b16 %v1556
    %v1665 = vunpack.c.h.b16 %v1556
    %v1666 = vunpack.c.l.b16 %v1557
    %v1667 = vunpack.c.h.b16 %v1557
    %v1668 = vunpack.c.l.b16 %v1558
    %v1669 = vunpack.c.h.b16 %v1558
    %v1670 = vunpack.c.l.b16 %v1559
    %v1671 = vunpack.c.h.b16 %v1559
    %v1672 = vunpack.c.l.b16 %v1560
    %v1673 = vunpack.c.h.b16 %v1560
    %v1674 = vunpack.c.l.b16 %v1561
    %v1675 = vunpack.c.h.b16 %v1561
    %v1676 = vunpack.c.l.b16 %v1562
    %v1677 = vunpack.c.h.b16 %v1562
    %v1678 = vunpack.c.l.b16 %v1563
    %v1679 = vunpack.c.h.b16 %v1563
    %v1680 = vunpack.c.l.b16 %v1564
    %v1681 = vunpack.c.h.b16 %v1564
    %v1682 = vunpack.c.l.b16 %v1565
    %v1683 = vunpack.c.h.b16 %v1565
    %v1684 = vunpack.c.l.b16 %v1566
    %v1685 = vunpack.c.h.b16 %v1566
    %v1686 = vpack.c.b16 %v1626, %v1622
    %v1687 = vpack.c.b16 %v1627, %v1623
    %v1688 = vpack.c.b16 %v1628, %v1624
    %v1689 = vpack.c.b16 %v1629, %v1625
    %v1690 = vpack.c.b16 %v1634, %v1630
    %v1691 = vpack.c.b16 %v1635, %v1631
    %v1692 = vpack.c.b16 %v1636, %v1632
    %v1693 = vpack.c.b16 %v1637, %v1633
    %v1694 = vpack.c.b16 %v1642, %v1638
    %v1695 = vpack.c.b16 %v1643, %v1639
    %v1696 = vpack.c.b16 %v1644, %v1640
    %v1697 = vpack.c.b16 %v1645, %v1641
    %v1698 = vpack.c.b16 %v1650, %v1646
    %v1699 = vpack.c.b16 %v1651, %v1647
    %v1700 = vpack.c.b16 %v1652, %v1648
    %v1701 = vpack.c.b16 %v1653, %v1649
    %v1702 = vpack.c.b16 %v1658, %v1654
    %v1703 = vpack.c.b16 %v1659, %v1655
    %v1704 = vpack.c.b16 %v1660, %v1656
    %v1705 = vpack.c.b16 %v1661, %v1657
    %v1706 = vpack.c.b16 %v1666, %v1662
    %v1707 = vpack.c.b16 %v1667, %v1663
    %v1708 = vpack.c.b16 %v1668, %v1664
    %v1709 = vpack.c.b16 %v1669, %v1665
    %v1710 = vpack.c.b16 %v1674, %v1670
    %v1711 = vpack.c.b16 %v1675, %v1671
    %v1712 = vpack.c.b16 %v1676, %v1672
    %v1713 = vpack.c.b16 %v1677, %v1673
    %v1714 = vpack.c.b16 %v1682, %v1678
    %v1715 = vpack.c.b16 %v1683, %v1679
    %v1716 = vpack.c.b16 %v1684, %v1680
    %v1717 = vpack.c.b16 %v1685, %v1681
    %1750 = vmatprep.subr.bf16.mxu0 %v1715
    %1751 = vmatpush1.bf16.msra.mxu0 %v1714
    %1752 = vmatprep.subr.bf16.mxu0 %v1711
    %1753 = vmatpush1.bf16.msra.mxu0 %v1710
    %1754 = vmatprep.subr.bf16.mxu0 %v1707
    %1755 = vmatpush1.bf16.msra.mxu0 %v1706
    %1756 = vmatprep.subr.bf16.mxu0 %v1703
    %1757 = vmatpush1.bf16.msra.mxu0 %v1702
    %1758 = vmatprep.subr.bf16.mxu0 %v1699
    %1759 = vmatpush1.bf16.msra.mxu0 %v1698
    %1760 = vmatprep.subr.bf16.mxu0 %v1695
    %1761 = vmatpush1.bf16.msra.mxu0 %v1694
    %1762 = vmatprep.subr.bf16.mxu0 %v1691
    %1763 = vmatpush1.bf16.msra.mxu0 %v1690
    %1764 = vmatprep.subr.bf16.mxu0 %v1687
    %1765 = vmatpush1.bf16.msra.mxu0 %v1686
    %1766 = vmatprep.subr.bf16.mxu0 0
    %1767 = vmatpush2.bf16.msra.mxu0 0
    %1768 = vmatprep.subr.bf16.mxu0 0
    %1769 = vmatpush2.bf16.msra.mxu0 0
    %1770 = vmatprep.subr.bf16.mxu0 0
    %1771 = vmatpush2.bf16.msra.mxu0 0
    %1772 = vmatprep.subr.bf16.mxu0 0
    %1773 = vmatpush2.bf16.msra.mxu0 0
    %1774 = vmatprep.subr.bf16.mxu0 0
    %1775 = vmatpush2.bf16.msra.mxu0 0
    %1776 = vmatprep.subr.bf16.mxu0 0
    %1777 = vmatpush2.bf16.msra.mxu0 0
    %1778 = vmatprep.subr.bf16.mxu0 0
    %1779 = vmatpush2.bf16.msra.mxu0 0
    %1780 = vmatprep.subr.bf16.mxu0 0
    %1781 = vmatpush2.bf16.msra.mxu0 0
    %1782 = vmatprep.mubr.bf16.mxu0 0
    %1783 = vmatmul.mubr.bf16.gmra.mxu0 %v1531
    %v1784 = vpop.f32.mrf.mxu0
    %v1785 = vadd.f32 %v1573, %v1784
    %v1786 = vpop.f32.mrf.mxu0
    %v1787 = vadd.f32 %v1577, %v1786
    %v1788 = vpop.f32.mrf.mxu0
    %v1789 = vadd.f32 %v1573, %v1788
    %v1790 = vpop.f32.mrf.mxu0
    %v1791 = vadd.f32 %v1577, %v1790
    %1792 = vmatprep.mubr.bf16.mxu0 0
    %1793 = vmatmul.mubr.bf16.gmra.mxu0 %v1532
    %v1794 = vpop.f32.mrf.mxu0
    %v1795 = vadd.f32 %v1573, %v1794
    %v1796 = vpop.f32.mrf.mxu0
    %v1797 = vadd.f32 %v1577, %v1796
    %v1798 = vpop.f32.mrf.mxu0
    %v1799 = vadd.f32 %v1573, %v1798
    %v1800 = vpop.f32.mrf.mxu0
    %v1801 = vadd.f32 %v1577, %v1800
    %1802 = vmatprep.mubr.bf16.mxu0 0
    %1803 = vmatmul.mubr.bf16.gmra.mxu0 %v1533
    %v1804 = vpop.f32.mrf.mxu0
    %v1805 = vadd.f32 %v1573, %v1804
    %v1806 = vpop.f32.mrf.mxu0
    %v1807 = vadd.f32 %v1577, %v1806
    %v1808 = vpop.f32.mrf.mxu0
    %v1809 = vadd.f32 %v1573, %v1808
    %v1810 = vpop.f32.mrf.mxu0
    %v1811 = vadd.f32 %v1577, %v1810
    %1812 = vmatprep.mubr.bf16.mxu0 0
    %1813 = vmatmul.mubr.bf16.gmra.mxu0 %v1534
    %v1814 = vpop.f32.mrf.mxu0
    %v1815 = vadd.f32 %v1573, %v1814
    %v1816 = vpop.f32.mrf.mxu0
    %v1817 = vadd.f32 %v1577, %v1816
    %v1818 = vpop.f32.mrf.mxu0
    %v1819 = vadd.f32 %v1573, %v1818
    %v1820 = vpop.f32.mrf.mxu0
    %v1821 = vadd.f32 %v1577, %v1820
    %1822 = vdwg.mxu0
    %1823 = vmatprep.subr.bf16.mxu0 %v1717
    %1824 = vmatpush1.bf16.msra.mxu0 %v1716
    %1825 = vmatprep.subr.bf16.mxu0 %v1713
    %1826 = vmatpush1.bf16.msra.mxu0 %v1712
    %1827 = vmatprep.subr.bf16.mxu0 %v1709
    %1828 = vmatpush1.bf16.msra.mxu0 %v1708
    %1829 = vmatprep.subr.bf16.mxu0 %v1705
    %1830 = vmatpush1.bf16.msra.mxu0 %v1704
    %1831 = vmatprep.subr.bf16.mxu0 %v1701
    %1832 = vmatpush1.bf16.msra.mxu0 %v1700
    %1833 = vmatprep.subr.bf16.mxu0 %v1697
    %1834 = vmatpush1.bf16.msra.mxu0 %v1696
    %1835 = vmatprep.subr.bf16.mxu0 %v1693
    %1836 = vmatpush1.bf16.msra.mxu0 %v1692
    %1837 = vmatprep.subr.bf16.mxu0 %v1689
    %1838 = vmatpush1.bf16.msra.mxu0 %v1688
    %1839 = vmatprep.subr.bf16.mxu0 0
    %1840 = vmatpush2.bf16.msra.mxu0 0
    %1841 = vmatprep.subr.bf16.mxu0 0
    %1842 = vmatpush2.bf16.msra.mxu0 0
    %1843 = vmatprep.subr.bf16.mxu0 0
    %1844 = vmatpush2.bf16.msra.mxu0 0
    %1845 = vmatprep.subr.bf16.mxu0 0
    %1846 = vmatpush2.bf16.msra.mxu0 0
    %1847 = vmatprep.subr.bf16.mxu0 0
    %1848 = vmatpush2.bf16.msra.mxu0 0
    %1849 = vmatprep.subr.bf16.mxu0 0
    %1850 = vmatpush2.bf16.msra.mxu0 0
    %1851 = vmatprep.subr.bf16.mxu0 0
    %1852 = vmatpush2.bf16.msra.mxu0 0
    %1853 = vmatprep.subr.bf16.mxu0 0
    %1854 = vmatpush2.bf16.msra.mxu0 0
    %1855 = vmatprep.mubr.bf16.mxu0 0
    %1856 = vmatmul.mubr.bf16.gmra.mxu0 %v1531
    %v1857 = vpop.f32.mrf.mxu0
    %v1858 = vadd.f32 %v1581, %v1857
    %v1859 = vpop.f32.mrf.mxu0
    %v1860 = vadd.f32 %v1585, %v1859
    %v1861 = vpop.f32.mrf.mxu0
    %v1862 = vadd.f32 %v1581, %v1861
    %v1863 = vpop.f32.mrf.mxu0
    %v1864 = vadd.f32 %v1585, %v1863
    %1865 = vmatprep.mubr.bf16.mxu0 0
    %1866 = vmatmul.mubr.bf16.gmra.mxu0 %v1532
    %v1867 = vpop.f32.mrf.mxu0
    %v1868 = vadd.f32 %v1581, %v1867
    %v1869 = vpop.f32.mrf.mxu0
    %v1870 = vadd.f32 %v1585, %v1869
    %v1871 = vpop.f32.mrf.mxu0
    %v1872 = vadd.f32 %v1581, %v1871
    %v1873 = vpop.f32.mrf.mxu0
    %v1874 = vadd.f32 %v1585, %v1873
    %1875 = vmatprep.mubr.bf16.mxu0 0
    %1876 = vmatmul.mubr.bf16.gmra.mxu0 %v1533
    %v1877 = vpop.f32.mrf.mxu0
    %v1878 = vadd.f32 %v1581, %v1877
    %v1879 = vpop.f32.mrf.mxu0
    %v1880 = vadd.f32 %v1585, %v1879
    %v1881 = vpop.f32.mrf.mxu0
    %v1882 = vadd.f32 %v1581, %v1881
    %v1883 = vpop.f32.mrf.mxu0
    %v1884 = vadd.f32 %v1585, %v1883
    %1885 = vmatprep.mubr.bf16.mxu0 0
    %1886 = vmatmul.mubr.bf16.gmra.mxu0 %v1534
    %v1887 = vpop.f32.mrf.mxu0
    %v1888 = vadd.f32 %v1581, %v1887
    %v1889 = vpop.f32.mrf.mxu0
    %v1890 = vadd.f32 %v1585, %v1889
    %v1891 = vpop.f32.mrf.mxu0
    %v1892 = vadd.f32 %v1581, %v1891
    %v1893 = vpop.f32.mrf.mxu0
    %v1894 = vadd.f32 %v1585, %v1893
    %1895 = vdwg.mxu0
    %1896 = vst [vmem:[#allocation5] sm:$0xff] %v1785
    %1897 = vst [vmem:[#allocation5 + $0x8] sm:$0xff] %v1787
    %1898 = vst [vmem:[#allocation5 + $0x10] sm:$0xff] %v1858
    %1899 = vst [vmem:[#allocation5 + $0x18] sm:$0xff] %v1860
    %1900 = vst [vmem:[#allocation5 + $0x20] sm:$0xff] %v1789
    %1901 = vst [vmem:[#allocation5 + $0x28] sm:$0xff] %v1791
    %1902 = vst [vmem:[#allocation5 + $0x30] sm:$0xff] %v1862
    %1903 = vst [vmem:[#allocation5 + $0x38] sm:$0xff] %v1864
    %1904 = vst [vmem:[#allocation5 + $0x40] sm:$0xff] %v1795
    %1905 = vst [vmem:[#allocation5 + $0x48] sm:$0xff] %v1797
    %1906 = vst [vmem:[#allocation5 + $0x50] sm:$0xff] %v1868
    %1907 = vst [vmem:[#allocation5 + $0x58] sm:$0xff] %v1870
    %1908 = vst [vmem:[#allocation5 + $0x60] sm:$0xff] %v1799
    %1909 = vst [vmem:[#allocation5 + $0x68] sm:$0xff] %v1801
    %1910 = vst [vmem:[#allocation5 + $0x70] sm:$0xff] %v1872
    %1911 = vst [vmem:[#allocation5 + $0x78] sm:$0xff] %v1874
    %1912 = vst [vmem:[#allocation5 + $0x80] sm:$0xff] %v1805
    %1913 = vst [vmem:[#allocation5 + $0x88] sm:$0xff] %v1807
    %1914 = vst [vmem:[#allocation5 + $0x90] sm:$0xff] %v1878
    %1915 = vst [vmem:[#allocation5 + $0x98] sm:$0xff] %v1880
    %1916 = vst [vmem:[#allocation5 + $0xa0] sm:$0xff] %v1809
    %1917 = vst [vmem:[#allocation5 + $0xa8] sm:$0xff] %v1811
    %1918 = vst [vmem:[#allocation5 + $0xb0] sm:$0xff] %v1882
    %1919 = vst [vmem:[#allocation5 + $0xb8] sm:$0xff] %v1884
    %1920 = vst [vmem:[#allocation5 + $0xc0] sm:$0xff] %v1815
    %1921 = vst [vmem:[#allocation5 + $0xc8] sm:$0xff] %v1817
    %1922 = vst [vmem:[#allocation5 + $0xd0] sm:$0xff] %v1888
    %1923 = vst [vmem:[#allocation5 + $0xd8] sm:$0xff] %v1890
    %1924 = vst [vmem:[#allocation5 + $0xe0] sm:$0xff] %v1819
    %1925 = vst [vmem:[#allocation5 + $0xe8] sm:$0xff] %v1821
    %1926 = vst [vmem:[#allocation5 + $0xf0] sm:$0xff] %v1892
    %1927 = vst [vmem:[#allocation5 + $0xf8] sm:$0xff] %v1894
    %s1928 = scalar_lea.vmem [#allocation9], 256
    %v1929 = vld [vmem:[%s1928] sm:$0xff]
    %v1930 = vld [vmem:[%s1928 + $0x8] sm:$0xff]
    %v1931 = vld [vmem:[%s1928 + $0x10] sm:$0xff]
    %v1932 = vld [vmem:[%s1928 + $0x18] sm:$0xff]
    %v1933 = vld [vmem:[%s1928 + $0x20] sm:$0xff]
    %v1934 = vld [vmem:[%s1928 + $0x28] sm:$0xff]
    %v1935 = vld [vmem:[%s1928 + $0x30] sm:$0xff]
    %v1936 = vld [vmem:[%s1928 + $0x38] sm:$0xff]
    %v1937 = vld [vmem:[%s1928 + $0x40] sm:$0xff]
    %v1938 = vld [vmem:[%s1928 + $0x48] sm:$0xff]
    %v1939 = vld [vmem:[%s1928 + $0x50] sm:$0xff]
    %v1940 = vld [vmem:[%s1928 + $0x58] sm:$0xff]
    %v1941 = vld [vmem:[%s1928 + $0x60] sm:$0xff]
    %v1942 = vld [vmem:[%s1928 + $0x68] sm:$0xff]
    %v1943 = vld [vmem:[%s1928 + $0x70] sm:$0xff]
    %v1944 = vld [vmem:[%s1928 + $0x78] sm:$0xff]
    %v1945 = vld [vmem:[%s1928 + $0x80] sm:$0xff]
    %v1946 = vld [vmem:[%s1928 + $0x88] sm:$0xff]
    %v1947 = vld [vmem:[%s1928 + $0x90] sm:$0xff]
    %v1948 = vld [vmem:[%s1928 + $0x98] sm:$0xff]
    %v1949 = vld [vmem:[%s1928 + $0xa0] sm:$0xff]
    %v1950 = vld [vmem:[%s1928 + $0xa8] sm:$0xff]
    %v1951 = vld [vmem:[%s1928 + $0xb0] sm:$0xff]
    %v1952 = vld [vmem:[%s1928 + $0xb8] sm:$0xff]
    %v1953 = vld [vmem:[%s1928 + $0xc0] sm:$0xff]
    %v1954 = vld [vmem:[%s1928 + $0xc8] sm:$0xff]
    %v1955 = vld [vmem:[%s1928 + $0xd0] sm:$0xff]
    %v1956 = vld [vmem:[%s1928 + $0xd8] sm:$0xff]
    %v1957 = vld [vmem:[%s1928 + $0xe0] sm:$0xff]
    %v1958 = vld [vmem:[%s1928 + $0xe8] sm:$0xff]
    %v1959 = vld [vmem:[%s1928 + $0xf0] sm:$0xff]
    %v1960 = vld [vmem:[%s1928 + $0xf8] sm:$0xff]
    %s1961 = scalar_lea.vmem [#allocation2], 8
    %v1962 = vld [vmem:[%s1961] sm:$0xff]
    %s1963 = scalar_lea.vmem [#allocation3], 8
    %v1964 = vld [vmem:[%s1963] sm:$0xff]
    %v1965 = vld [vmem:[%s376] sm:$0xff]
    %v1966 = vld [vmem:[%s376 + $0x8] sm:$0xff]
    %v1967 = vld [vmem:[%s376 + $0x10] sm:$0xff]
    %v1968 = vld [vmem:[%s376 + $0x18] sm:$0xff]
    %v1969 = vpack.c.bf16 %v1962, %v1962
    %v2002 = vunpack.c.l.b16 %v1929
    %v2003 = vunpack.c.h.b16 %v1929
    %v2004 = vunpack.c.l.b16 %v1930
    %v2005 = vunpack.c.h.b16 %v1930
    %v2006 = vunpack.c.l.b16 %v1931
    %v2007 = vunpack.c.h.b16 %v1931
    %v2008 = vunpack.c.l.b16 %v1932
    %v2009 = vunpack.c.h.b16 %v1932
    %v2010 = vunpack.c.l.b16 %v1933
    %v2011 = vunpack.c.h.b16 %v1933
    %v2012 = vunpack.c.l.b16 %v1934
    %v2013 = vunpack.c.h.b16 %v1934
    %v2014 = vunpack.c.l.b16 %v1935
    %v2015 = vunpack.c.h.b16 %v1935
    %v2016 = vunpack.c.l.b16 %v1936
    %v2017 = vunpack.c.h.b16 %v1936
    %v2018 = vunpack.c.l.b16 %v1937
    %v2019 = vunpack.c.h.b16 %v1937
    %v2020 = vunpack.c.l.b16 %v1938
    %v2021 = vunpack.c.h.b16 %v1938
    %v2022 = vunpack.c.l.b16 %v1939
    %v2023 = vunpack.c.h.b16 %v1939
    %v2024 = vunpack.c.l.b16 %v1940
    %v2025 = vunpack.c.h.b16 %v1940
    %v2026 = vunpack.c.l.b16 %v1941
    %v2027 = vunpack.c.h.b16 %v1941
    %v2028 = vunpack.c.l.b16 %v1942
    %v2029 = vunpack.c.h.b16 %v1942
    %v2030 = vunpack.c.l.b16 %v1943
    %v2031 = vunpack.c.h.b16 %v1943
    %v2032 = vunpack.c.l.b16 %v1944
    %v2033 = vunpack.c.h.b16 %v1944
    %v2034 = vunpack.c.l.b16 %v1945
    %v2035 = vunpack.c.h.b16 %v1945
    %v2036 = vunpack.c.l.b16 %v1946
    %v2037 = vunpack.c.h.b16 %v1946
    %v2038 = vunpack.c.l.b16 %v1947
    %v2039 = vunpack.c.h.b16 %v1947
    %v2040 = vunpack.c.l.b16 %v1948
    %v2041 = vunpack.c.h.b16 %v1948
    %v2042 = vunpack.c.l.b16 %v1949
    %v2043 = vunpack.c.h.b16 %v1949
    %v2044 = vunpack.c.l.b16 %v1950
    %v2045 = vunpack.c.h.b16 %v1950
    %v2046 = vunpack.c.l.b16 %v1951
    %v2047 = vunpack.c.h.b16 %v1951
    %v2048 = vunpack.c.l.b16 %v1952
    %v2049 = vunpack.c.h.b16 %v1952
    %v2050 = vunpack.c.l.b16 %v1953
    %v2051 = vunpack.c.h.b16 %v1953
    %v2052 = vunpack.c.l.b16 %v1954
    %v2053 = vunpack.c.h.b16 %v1954
    %v2054 = vunpack.c.l.b16 %v1955
    %v2055 = vunpack.c.h.b16 %v1955
    %v2056 = vunpack.c.l.b16 %v1956
    %v2057 = vunpack.c.h.b16 %v1956
    %v2058 = vunpack.c.l.b16 %v1957
    %v2059 = vunpack.c.h.b16 %v1957
    %v2060 = vunpack.c.l.b16 %v1958
    %v2061 = vunpack.c.h.b16 %v1958
    %v2062 = vunpack.c.l.b16 %v1959
    %v2063 = vunpack.c.h.b16 %v1959
    %v2064 = vunpack.c.l.b16 %v1960
    %v2065 = vunpack.c.h.b16 %v1960
    %v2066 = vpack.c.b16 %v2006, %v2002
    %v2067 = vpack.c.b16 %v2007, %v2003
    %v2068 = vpack.c.b16 %v2008, %v2004
    %v2069 = vpack.c.b16 %v2009, %v2005
    %v2070 = vpack.c.b16 %v2014, %v2010
    %v2071 = vpack.c.b16 %v2015, %v2011
    %v2072 = vpack.c.b16 %v2016, %v2012
    %v2073 = vpack.c.b16 %v2017, %v2013
    %v2074 = vpack.c.b16 %v2022, %v2018
    %v2075 = vpack.c.b16 %v2023, %v2019
    %v2076 = vpack.c.b16 %v2024, %v2020
    %v2077 = vpack.c.b16 %v2025, %v2021
    %v2078 = vpack.c.b16 %v2030, %v2026
    %v2079 = vpack.c.b16 %v2031, %v2027
    %v2080 = vpack.c.b16 %v2032, %v2028
    %v2081 = vpack.c.b16 %v2033, %v2029
    %v2082 = vpack.c.b16 %v2038, %v2034
    %v2083 = vpack.c.b16 %v2039, %v2035
    %v2084 = vpack.c.b16 %v2040, %v2036
    %v2085 = vpack.c.b16 %v2041, %v2037
    %v2086 = vpack.c.b16 %v2046, %v2042
    %v2087 = vpack.c.b16 %v2047, %v2043
    %v2088 = vpack.c.b16 %v2048, %v2044
    %v2089 = vpack.c.b16 %v2049, %v2045
    %v2090 = vpack.c.b16 %v2054, %v2050
    %v2091 = vpack.c.b16 %v2055, %v2051
    %v2092 = vpack.c.b16 %v2056, %v2052
    %v2093 = vpack.c.b16 %v2057, %v2053
    %v2094 = vpack.c.b16 %v2062, %v2058
    %v2095 = vpack.c.b16 %v2063, %v2059
    %v2096 = vpack.c.b16 %v2064, %v2060
    %v2097 = vpack.c.b16 %v2065, %v2061
    %2130 = vmatprep.subr.bf16.mxu0 %v2095
    %2131 = vmatpush1.bf16.msra.mxu0 %v2094
    %2132 = vmatprep.subr.bf16.mxu0 %v2091
    %2133 = vmatpush1.bf16.msra.mxu0 %v2090
    %2134 = vmatprep.subr.bf16.mxu0 %v2087
    %2135 = vmatpush1.bf16.msra.mxu0 %v2086
    %2136 = vmatprep.subr.bf16.mxu0 %v2083
    %2137 = vmatpush1.bf16.msra.mxu0 %v2082
    %2138 = vmatprep.subr.bf16.mxu0 %v2079
    %2139 = vmatpush1.bf16.msra.mxu0 %v2078
    %2140 = vmatprep.subr.bf16.mxu0 %v2075
    %2141 = vmatpush1.bf16.msra.mxu0 %v2074
    %2142 = vmatprep.subr.bf16.mxu0 %v2071
    %2143 = vmatpush1.bf16.msra.mxu0 %v2070
    %2144 = vmatprep.subr.bf16.mxu0 %v2067
    %2145 = vmatpush1.bf16.msra.mxu0 %v2066
    %2146 = vmatprep.subr.bf16.mxu0 0
    %2147 = vmatpush2.bf16.msra.mxu0 0
    %2148 = vmatprep.subr.bf16.mxu0 0
    %2149 = vmatpush2.bf16.msra.mxu0 0
    %2150 = vmatprep.subr.bf16.mxu0 0
    %2151 = vmatpush2.bf16.msra.mxu0 0
    %2152 = vmatprep.subr.bf16.mxu0 0
    %2153 = vmatpush2.bf16.msra.mxu0 0
    %2154 = vmatprep.subr.bf16.mxu0 0
    %2155 = vmatpush2.bf16.msra.mxu0 0
    %2156 = vmatprep.subr.bf16.mxu0 0
    %2157 = vmatpush2.bf16.msra.mxu0 0
    %2158 = vmatprep.subr.bf16.mxu0 0
    %2159 = vmatpush2.bf16.msra.mxu0 0
    %2160 = vmatprep.subr.bf16.mxu0 0
    %2161 = vmatpush2.bf16.msra.mxu0 0
    %2162 = vmatprep.mubr.bf16.mxu0 0
    %2163 = vmatmul.mubr.bf16.gmra.mxu0 %v1969
    %v2164 = vpop.f32.mrf.mxu0
    %v2165 = vadd.f32 0.0, %v2164
    %v2166 = vpop.f32.mrf.mxu0
    %v2167 = vadd.f32 0.0, %v2166
    %v2168 = vpop.f32.mrf.mxu0
    %v2169 = vpop.f32.mrf.mxu0
    %2170 = vdwg.mxu0
    %2171 = vmatprep.subr.bf16.mxu0 %v2097
    %2172 = vmatpush1.bf16.msra.mxu0 %v2096
    %2173 = vmatprep.subr.bf16.mxu0 %v2093
    %2174 = vmatpush1.bf16.msra.mxu0 %v2092
    %2175 = vmatprep.subr.bf16.mxu0 %v2089
    %2176 = vmatpush1.bf16.msra.mxu0 %v2088
    %2177 = vmatprep.subr.bf16.mxu0 %v2085
    %2178 = vmatpush1.bf16.msra.mxu0 %v2084
    %2179 = vmatprep.subr.bf16.mxu0 %v2081
    %2180 = vmatpush1.bf16.msra.mxu0 %v2080
    %2181 = vmatprep.subr.bf16.mxu0 %v2077
    %2182 = vmatpush1.bf16.msra.mxu0 %v2076
    %2183 = vmatprep.subr.bf16.mxu0 %v2073
    %2184 = vmatpush1.bf16.msra.mxu0 %v2072
    %2185 = vmatprep.subr.bf16.mxu0 %v2069
    %2186 = vmatpush1.bf16.msra.mxu0 %v2068
    %2187 = vmatprep.subr.bf16.mxu0 0
    %2188 = vmatpush2.bf16.msra.mxu0 0
    %2189 = vmatprep.subr.bf16.mxu0 0
    %2190 = vmatpush2.bf16.msra.mxu0 0
    %2191 = vmatprep.subr.bf16.mxu0 0
    %2192 = vmatpush2.bf16.msra.mxu0 0
    %2193 = vmatprep.subr.bf16.mxu0 0
    %2194 = vmatpush2.bf16.msra.mxu0 0
    %2195 = vmatprep.subr.bf16.mxu0 0
    %2196 = vmatpush2.bf16.msra.mxu0 0
    %2197 = vmatprep.subr.bf16.mxu0 0
    %2198 = vmatpush2.bf16.msra.mxu0 0
    %2199 = vmatprep.subr.bf16.mxu0 0
    %2200 = vmatpush2.bf16.msra.mxu0 0
    %2201 = vmatprep.subr.bf16.mxu0 0
    %2202 = vmatpush2.bf16.msra.mxu0 0
    %2203 = vmatprep.mubr.bf16.mxu0 0
    %2204 = vmatmul.mubr.bf16.gmra.mxu0 %v1969
    %v2205 = vpop.f32.mrf.mxu0
    %v2206 = vadd.f32 0.0, %v2205
    %v2207 = vpop.f32.mrf.mxu0
    %v2208 = vadd.f32 0.0, %v2207
    %v2209 = vpop.f32.mrf.mxu0
    %v2210 = vpop.f32.mrf.mxu0
    %2211 = vdwg.mxu0
    %v2212 = vadd.f32 %v1965, %v2165
    %v2213 = vadd.f32 %v1966, %v2167
    %v2214 = vadd.f32 %v1967, %v2206
    %v2215 = vadd.f32 %v1968, %v2208
    %v2216 = vxor.u32 %v2212, 2147483648
    %v2217 = vmul.f32 %v2216, 1.442695
    %v2218 = vpow.pop %v2217
    %v2219 = vadd.f32 %v2218, 1.0
    %v2220 = vrcp.pop %v2219
    %v2221 = vmul.f32 1.0, %v2220
    %v2222 = vxor.u32 %v2213, 2147483648
    %v2223 = vmul.f32 %v2222, 1.442695
    %v2224 = vpow.pop %v2223
    %v2225 = vadd.f32 %v2224, 1.0
    %v2226 = vrcp.pop %v2225
    %v2227 = vmul.f32 1.0, %v2226
    %v2228 = vtanh.pop %v2214
    %v2229 = vxor.u32 %v2215, 2147483648
    %v2230 = vmul.f32 %v2229, 1.442695
    %v2231 = vpow.pop %v2230
    %v2232 = vadd.f32 %v2231, 1.0
    %v2233 = vrcp.pop %v2232
    %v2234 = vmul.f32 1.0, %v2233
    %v2235 = vmul.f32 %v2227, %v1964
    %v2236 = vmul.f32 %v2221, %v2228
    %v2237 = vadd.f32 %v2235, %v2236
    %v2238 = vtanh.pop %v2237
    %v2239 = vmul.f32 %v2234, %v2238
    %2240 = vst [vmem:[%s1961] sm:$0xff] %v2239
    %2241 = vst [vmem:[%s1963] sm:$0xff] %v2237
    %v2242 = vld [vmem:[%s1961] sm:$0xff]
    %v2243 = vld [vmem:[%s1963] sm:$0xff]
    %v2244 = vld [vmem:[%s659] sm:$0xff]
    %v2245 = vld [vmem:[%s659 + $0x8] sm:$0xff]
    %v2246 = vld [vmem:[%s659 + $0x10] sm:$0xff]
    %v2247 = vld [vmem:[%s659 + $0x18] sm:$0xff]
    %v2248 = vpack.c.bf16 %v2242, %v2242
    %2249 = vmatprep.subr.bf16.mxu0 %v2095
    %2250 = vmatpush1.bf16.msra.mxu0 %v2094
    %2251 = vmatprep.subr.bf16.mxu0 %v2091
    %2252 = vmatpush1.bf16.msra.mxu0 %v2090
    %2253 = vmatprep.subr.bf16.mxu0 %v2087
    %2254 = vmatpush1.bf16.msra.mxu0 %v2086
    %2255 = vmatprep.subr.bf16.mxu0 %v2083
    %2256 = vmatpush1.bf16.msra.mxu0 %v2082
    %2257 = vmatprep.subr.bf16.mxu0 %v2079
    %2258 = vmatpush1.bf16.msra.mxu0 %v2078
    %2259 = vmatprep.subr.bf16.mxu0 %v2075
    %2260 = vmatpush1.bf16.msra.mxu0 %v2074
    %2261 = vmatprep.subr.bf16.mxu0 %v2071
    %2262 = vmatpush1.bf16.msra.mxu0 %v2070
    %2263 = vmatprep.subr.bf16.mxu0 %v2067
    %2264 = vmatpush1.bf16.msra.mxu0 %v2066
    %2265 = vmatprep.subr.bf16.mxu0 0
    %2266 = vmatpush2.bf16.msra.mxu0 0
    %2267 = vmatprep.subr.bf16.mxu0 0
    %2268 = vmatpush2.bf16.msra.mxu0 0
    %2269 = vmatprep.subr.bf16.mxu0 0
    %2270 = vmatpush2.bf16.msra.mxu0 0
    %2271 = vmatprep.subr.bf16.mxu0 0
    %2272 = vmatpush2.bf16.msra.mxu0 0
    %2273 = vmatprep.subr.bf16.mxu0 0
    %2274 = vmatpush2.bf16.msra.mxu0 0
    %2275 = vmatprep.subr.bf16.mxu0 0
    %2276 = vmatpush2.bf16.msra.mxu0 0
    %2277 = vmatprep.subr.bf16.mxu0 0
    %2278 = vmatpush2.bf16.msra.mxu0 0
    %2279 = vmatprep.subr.bf16.mxu0 0
    %2280 = vmatpush2.bf16.msra.mxu0 0
    %2281 = vmatprep.mubr.bf16.mxu0 0
    %2282 = vmatmul.mubr.bf16.gmra.mxu0 %v2248
    %v2283 = vpop.f32.mrf.mxu0
    %v2284 = vadd.f32 0.0, %v2283
    %v2285 = vpop.f32.mrf.mxu0
    %v2286 = vadd.f32 0.0, %v2285
    %v2287 = vpop.f32.mrf.mxu0
    %v2288 = vpop.f32.mrf.mxu0
    %2289 = vdwg.mxu0
    %2290 = vmatprep.subr.bf16.mxu0 %v2097
    %2291 = vmatpush1.bf16.msra.mxu0 %v2096
    %2292 = vmatprep.subr.bf16.mxu0 %v2093
    %2293 = vmatpush1.bf16.msra.mxu0 %v2092
    %2294 = vmatprep.subr.bf16.mxu0 %v2089
    %2295 = vmatpush1.bf16.msra.mxu0 %v2088
    %2296 = vmatprep.subr.bf16.mxu0 %v2085
    %2297 = vmatpush1.bf16.msra.mxu0 %v2084
    %2298 = vmatprep.subr.bf16.mxu0 %v2081
    %2299 = vmatpush1.bf16.msra.mxu0 %v2080
    %2300 = vmatprep.subr.bf16.mxu0 %v2077
    %2301 = vmatpush1.bf16.msra.mxu0 %v2076
    %2302 = vmatprep.subr.bf16.mxu0 %v2073
    %2303 = vmatpush1.bf16.msra.mxu0 %v2072
    %2304 = vmatprep.subr.bf16.mxu0 %v2069
    %2305 = vmatpush1.bf16.msra.mxu0 %v2068
    %2306 = vmatprep.subr.bf16.mxu0 0
    %2307 = vmatpush2.bf16.msra.mxu0 0
    %2308 = vmatprep.subr.bf16.mxu0 0
    %2309 = vmatpush2.bf16.msra.mxu0 0
    %2310 = vmatprep.subr.bf16.mxu0 0
    %2311 = vmatpush2.bf16.msra.mxu0 0
    %2312 = vmatprep.subr.bf16.mxu0 0
    %2313 = vmatpush2.bf16.msra.mxu0 0
    %2314 = vmatprep.subr.bf16.mxu0 0
    %2315 = vmatpush2.bf16.msra.mxu0 0
    %2316 = vmatprep.subr.bf16.mxu0 0
    %2317 = vmatpush2.bf16.msra.mxu0 0
    %2318 = vmatprep.subr.bf16.mxu0 0
    %2319 = vmatpush2.bf16.msra.mxu0 0
    %2320 = vmatprep.subr.bf16.mxu0 0
    %2321 = vmatpush2.bf16.msra.mxu0 0
    %2322 = vmatprep.mubr.bf16.mxu0 0
    %2323 = vmatmul.mubr.bf16.gmra.mxu0 %v2248
    %v2324 = vpop.f32.mrf.mxu0
    %v2325 = vadd.f32 0.0, %v2324
    %v2326 = vpop.f32.mrf.mxu0
    %v2327 = vadd.f32 0.0, %v2326
    %v2328 = vpop.f32.mrf.mxu0
    %v2329 = vpop.f32.mrf.mxu0
    %2330 = vdwg.mxu0
    %v2331 = vadd.f32 %v2244, %v2284
    %v2332 = vadd.f32 %v2245, %v2286
    %v2333 = vadd.f32 %v2246, %v2325
    %v2334 = vadd.f32 %v2247, %v2327
    %v2335 = vxor.u32 %v2331, 2147483648
    %v2336 = vmul.f32 %v2335, 1.442695
    %v2337 = vpow.pop %v2336
    %v2338 = vadd.f32 %v2337, 1.0
    %v2339 = vrcp.pop %v2338
    %v2340 = vmul.f32 1.0, %v2339
    %v2341 = vxor.u32 %v2332, 2147483648
    %v2342 = vmul.f32 %v2341, 1.442695
    %v2343 = vpow.pop %v2342
    %v2344 = vadd.f32 %v2343, 1.0
    %v2345 = vrcp.pop %v2344
    %v2346 = vmul.f32 1.0, %v2345
    %v2347 = vtanh.pop %v2333
    %v2348 = vxor.u32 %v2334, 2147483648
    %v2349 = vmul.f32 %v2348, 1.442695
    %v2350 = vpow.pop %v2349
    %v2351 = vadd.f32 %v2350, 1.0
    %v2352 = vrcp.pop %v2351
    %v2353 = vmul.f32 1.0, %v2352
    %v2354 = vmul.f32 %v2346, %v2243
    %v2355 = vmul.f32 %v2340, %v2347
    %v2356 = vadd.f32 %v2354, %v2355
    %v2357 = vtanh.pop %v2356
    %v2358 = vmul.f32 %v2353, %v2357
    %2359 = vst [vmem:[%s1961] sm:$0xff] %v2358
    %2360 = vst [vmem:[%s1963] sm:$0xff] %v2356
    %v2361 = vld [vmem:[%s1961] sm:$0xff]
    %v2362 = vld [vmem:[%s1963] sm:$0xff]
    %v2363 = vld [vmem:[%s783] sm:$0xff]
    %v2364 = vld [vmem:[%s783 + $0x8] sm:$0xff]
    %v2365 = vld [vmem:[%s783 + $0x10] sm:$0xff]
    %v2366 = vld [vmem:[%s783 + $0x18] sm:$0xff]
    %v2367 = vpack.c.bf16 %v2361, %v2361
    %2368 = vmatprep.subr.bf16.mxu0 %v2095
    %2369 = vmatpush1.bf16.msra.mxu0 %v2094
    %2370 = vmatprep.subr.bf16.mxu0 %v2091
    %2371 = vmatpush1.bf16.msra.mxu0 %v2090
    %2372 = vmatprep.subr.bf16.mxu0 %v2087
    %2373 = vmatpush1.bf16.msra.mxu0 %v2086
    %2374 = vmatprep.subr.bf16.mxu0 %v2083
    %2375 = vmatpush1.bf16.msra.mxu0 %v2082
    %2376 = vmatprep.subr.bf16.mxu0 %v2079
    %2377 = vmatpush1.bf16.msra.mxu0 %v2078
    %2378 = vmatprep.subr.bf16.mxu0 %v2075
    %2379 = vmatpush1.bf16.msra.mxu0 %v2074
    %2380 = vmatprep.subr.bf16.mxu0 %v2071
    %2381 = vmatpush1.bf16.msra.mxu0 %v2070
    %2382 = vmatprep.subr.bf16.mxu0 %v2067
    %2383 = vmatpush1.bf16.msra.mxu0 %v2066
    %2384 = vmatprep.subr.bf16.mxu0 0
    %2385 = vmatpush2.bf16.msra.mxu0 0
    %2386 = vmatprep.subr.bf16.mxu0 0
    %2387 = vmatpush2.bf16.msra.mxu0 0
    %2388 = vmatprep.subr.bf16.mxu0 0
    %2389 = vmatpush2.bf16.msra.mxu0 0
    %2390 = vmatprep.subr.bf16.mxu0 0
    %2391 = vmatpush2.bf16.msra.mxu0 0
    %2392 = vmatprep.subr.bf16.mxu0 0
    %2393 = vmatpush2.bf16.msra.mxu0 0
    %2394 = vmatprep.subr.bf16.mxu0 0
    %2395 = vmatpush2.bf16.msra.mxu0 0
    %2396 = vmatprep.subr.bf16.mxu0 0
    %2397 = vmatpush2.bf16.msra.mxu0 0
    %2398 = vmatprep.subr.bf16.mxu0 0
    %2399 = vmatpush2.bf16.msra.mxu0 0
    %2400 = vmatprep.mubr.bf16.mxu0 0
    %2401 = vmatmul.mubr.bf16.gmra.mxu0 %v2367
    %v2402 = vpop.f32.mrf.mxu0
    %v2403 = vadd.f32 0.0, %v2402
    %v2404 = vpop.f32.mrf.mxu0
    %v2405 = vadd.f32 0.0, %v2404
    %v2406 = vpop.f32.mrf.mxu0
    %v2407 = vpop.f32.mrf.mxu0
    %2408 = vdwg.mxu0
    %2409 = vmatprep.subr.bf16.mxu0 %v2097
    %2410 = vmatpush1.bf16.msra.mxu0 %v2096
    %2411 = vmatprep.subr.bf16.mxu0 %v2093
    %2412 = vmatpush1.bf16.msra.mxu0 %v2092
    %2413 = vmatprep.subr.bf16.mxu0 %v2089
    %2414 = vmatpush1.bf16.msra.mxu0 %v2088
    %2415 = vmatprep.subr.bf16.mxu0 %v2085
    %2416 = vmatpush1.bf16.msra.mxu0 %v2084
    %2417 = vmatprep.subr.bf16.mxu0 %v2081
    %2418 = vmatpush1.bf16.msra.mxu0 %v2080
    %2419 = vmatprep.subr.bf16.mxu0 %v2077
    %2420 = vmatpush1.bf16.msra.mxu0 %v2076
    %2421 = vmatprep.subr.bf16.mxu0 %v2073
    %2422 = vmatpush1.bf16.msra.mxu0 %v2072
    %2423 = vmatprep.subr.bf16.mxu0 %v2069
    %2424 = vmatpush1.bf16.msra.mxu0 %v2068
    %2425 = vmatprep.subr.bf16.mxu0 0
    %2426 = vmatpush2.bf16.msra.mxu0 0
    %2427 = vmatprep.subr.bf16.mxu0 0
    %2428 = vmatpush2.bf16.msra.mxu0 0
    %2429 = vmatprep.subr.bf16.mxu0 0
    %2430 = vmatpush2.bf16.msra.mxu0 0
    %2431 = vmatprep.subr.bf16.mxu0 0
    %2432 = vmatpush2.bf16.msra.mxu0 0
    %2433 = vmatprep.subr.bf16.mxu0 0
    %2434 = vmatpush2.bf16.msra.mxu0 0
    %2435 = vmatprep.subr.bf16.mxu0 0
    %2436 = vmatpush2.bf16.msra.mxu0 0
    %2437 = vmatprep.subr.bf16.mxu0 0
    %2438 = vmatpush2.bf16.msra.mxu0 0
    %2439 = vmatprep.subr.bf16.mxu0 0
    %2440 = vmatpush2.bf16.msra.mxu0 0
    %2441 = vmatprep.mubr.bf16.mxu0 0
    %2442 = vmatmul.mubr.bf16.gmra.mxu0 %v2367
    %v2443 = vpop.f32.mrf.mxu0
    %v2444 = vadd.f32 0.0, %v2443
    %v2445 = vpop.f32.mrf.mxu0
    %v2446 = vadd.f32 0.0, %v2445
    %v2447 = vpop.f32.mrf.mxu0
    %v2448 = vpop.f32.mrf.mxu0
    %2449 = vdwg.mxu0
    %v2450 = vadd.f32 %v2363, %v2403
    %v2451 = vadd.f32 %v2364, %v2405
    %v2452 = vadd.f32 %v2365, %v2444
    %v2453 = vadd.f32 %v2366, %v2446
    %v2454 = vxor.u32 %v2450, 2147483648
    %v2455 = vmul.f32 %v2454, 1.442695
    %v2456 = vpow.pop %v2455
    %v2457 = vadd.f32 %v2456, 1.0
    %v2458 = vrcp.pop %v2457
    %v2459 = vmul.f32 1.0, %v2458
    %v2460 = vxor.u32 %v2451, 2147483648
    %v2461 = vmul.f32 %v2460, 1.442695
    %v2462 = vpow.pop %v2461
    %v2463 = vadd.f32 %v2462, 1.0
    %v2464 = vrcp.pop %v2463
    %v2465 = vmul.f32 1.0, %v2464
    %v2466 = vtanh.pop %v2452
    %v2467 = vxor.u32 %v2453, 2147483648
    %v2468 = vmul.f32 %v2467, 1.442695
    %v2469 = vpow.pop %v2468
    %v2470 = vadd.f32 %v2469, 1.0
    %v2471 = vrcp.pop %v2470
    %v2472 = vmul.f32 1.0, %v2471
    %v2473 = vmul.f32 %v2465, %v2362
    %v2474 = vmul.f32 %v2459, %v2466
    %v2475 = vadd.f32 %v2473, %v2474
    %v2476 = vtanh.pop %v2475
    %v2477 = vmul.f32 %v2472, %v2476
    %2478 = vst [vmem:[%s1961] sm:$0xff] %v2477
    %2479 = vst [vmem:[%s1963] sm:$0xff] %v2475
    %v2480 = vld [vmem:[%s1961] sm:$0xff]
    %v2481 = vld [vmem:[%s1963] sm:$0xff]
    %v2482 = vld [vmem:[%s907] sm:$0xff]
    %v2483 = vld [vmem:[%s907 + $0x8] sm:$0xff]
    %v2484 = vld [vmem:[%s907 + $0x10] sm:$0xff]
    %v2485 = vld [vmem:[%s907 + $0x18] sm:$0xff]
    %v2486 = vpack.c.bf16 %v2480, %v2480
    %2487 = vmatprep.subr.bf16.mxu0 %v2095
    %2488 = vmatpush1.bf16.msra.mxu0 %v2094
    %2489 = vmatprep.subr.bf16.mxu0 %v2091
    %2490 = vmatpush1.bf16.msra.mxu0 %v2090
    %2491 = vmatprep.subr.bf16.mxu0 %v2087
    %2492 = vmatpush1.bf16.msra.mxu0 %v2086
    %2493 = vmatprep.subr.bf16.mxu0 %v2083
    %2494 = vmatpush1.bf16.msra.mxu0 %v2082
    %2495 = vmatprep.subr.bf16.mxu0 %v2079
    %2496 = vmatpush1.bf16.msra.mxu0 %v2078
    %2497 = vmatprep.subr.bf16.mxu0 %v2075
    %2498 = vmatpush1.bf16.msra.mxu0 %v2074
    %2499 = vmatprep.subr.bf16.mxu0 %v2071
    %2500 = vmatpush1.bf16.msra.mxu0 %v2070
    %2501 = vmatprep.subr.bf16.mxu0 %v2067
    %2502 = vmatpush1.bf16.msra.mxu0 %v2066
    %2503 = vmatprep.subr.bf16.mxu0 0
    %2504 = vmatpush2.bf16.msra.mxu0 0
    %2505 = vmatprep.subr.bf16.mxu0 0
    %2506 = vmatpush2.bf16.msra.mxu0 0
    %2507 = vmatprep.subr.bf16.mxu0 0
    %2508 = vmatpush2.bf16.msra.mxu0 0
    %2509 = vmatprep.subr.bf16.mxu0 0
    %2510 = vmatpush2.bf16.msra.mxu0 0
    %2511 = vmatprep.subr.bf16.mxu0 0
    %2512 = vmatpush2.bf16.msra.mxu0 0
    %2513 = vmatprep.subr.bf16.mxu0 0
    %2514 = vmatpush2.bf16.msra.mxu0 0
    %2515 = vmatprep.subr.bf16.mxu0 0
    %2516 = vmatpush2.bf16.msra.mxu0 0
    %2517 = vmatprep.subr.bf16.mxu0 0
    %2518 = vmatpush2.bf16.msra.mxu0 0
    %2519 = vmatprep.mubr.bf16.mxu0 0
    %2520 = vmatmul.mubr.bf16.gmra.mxu0 %v2486
    %v2521 = vpop.f32.mrf.mxu0
    %v2522 = vadd.f32 0.0, %v2521
    %v2523 = vpop.f32.mrf.mxu0
    %v2524 = vadd.f32 0.0, %v2523
    %v2525 = vpop.f32.mrf.mxu0
    %v2526 = vpop.f32.mrf.mxu0
    %2527 = vdwg.mxu0
    %2528 = vmatprep.subr.bf16.mxu0 %v2097
    %2529 = vmatpush1.bf16.msra.mxu0 %v2096
    %2530 = vmatprep.subr.bf16.mxu0 %v2093
    %2531 = vmatpush1.bf16.msra.mxu0 %v2092
    %2532 = vmatprep.subr.bf16.mxu0 %v2089
    %2533 = vmatpush1.bf16.msra.mxu0 %v2088
    %2534 = vmatprep.subr.bf16.mxu0 %v2085
    %2535 = vmatpush1.bf16.msra.mxu0 %v2084
    %2536 = vmatprep.subr.bf16.mxu0 %v2081
    %2537 = vmatpush1.bf16.msra.mxu0 %v2080
    %2538 = vmatprep.subr.bf16.mxu0 %v2077
    %2539 = vmatpush1.bf16.msra.mxu0 %v2076
    %2540 = vmatprep.subr.bf16.mxu0 %v2073
    %2541 = vmatpush1.bf16.msra.mxu0 %v2072
    %2542 = vmatprep.subr.bf16.mxu0 %v2069
    %2543 = vmatpush1.bf16.msra.mxu0 %v2068
    %2544 = vmatprep.subr.bf16.mxu0 0
    %2545 = vmatpush2.bf16.msra.mxu0 0
    %2546 = vmatprep.subr.bf16.mxu0 0
    %2547 = vmatpush2.bf16.msra.mxu0 0
    %2548 = vmatprep.subr.bf16.mxu0 0
    %2549 = vmatpush2.bf16.msra.mxu0 0
    %2550 = vmatprep.subr.bf16.mxu0 0
    %2551 = vmatpush2.bf16.msra.mxu0 0
    %2552 = vmatprep.subr.bf16.mxu0 0
    %2553 = vmatpush2.bf16.msra.mxu0 0
    %2554 = vmatprep.subr.bf16.mxu0 0
    %2555 = vmatpush2.bf16.msra.mxu0 0
    %2556 = vmatprep.subr.bf16.mxu0 0
    %2557 = vmatpush2.bf16.msra.mxu0 0
    %2558 = vmatprep.subr.bf16.mxu0 0
    %2559 = vmatpush2.bf16.msra.mxu0 0
    %2560 = vmatprep.mubr.bf16.mxu0 0
    %2561 = vmatmul.mubr.bf16.gmra.mxu0 %v2486
    %v2562 = vpop.f32.mrf.mxu0
    %v2563 = vadd.f32 0.0, %v2562
    %v2564 = vpop.f32.mrf.mxu0
    %v2565 = vadd.f32 0.0, %v2564
    %v2566 = vpop.f32.mrf.mxu0
    %v2567 = vpop.f32.mrf.mxu0
    %2568 = vdwg.mxu0
    %v2569 = vadd.f32 %v2482, %v2522
    %v2570 = vadd.f32 %v2483, %v2524
    %v2571 = vadd.f32 %v2484, %v2563
    %v2572 = vadd.f32 %v2485, %v2565
    %v2573 = vxor.u32 %v2569, 2147483648
    %v2574 = vmul.f32 %v2573, 1.442695
    %v2575 = vpow.pop %v2574
    %v2576 = vadd.f32 %v2575, 1.0
    %v2577 = vrcp.pop %v2576
    %v2578 = vmul.f32 1.0, %v2577
    %v2579 = vxor.u32 %v2570, 2147483648
    %v2580 = vmul.f32 %v2579, 1.442695
    %v2581 = vpow.pop %v2580
    %v2582 = vadd.f32 %v2581, 1.0
    %v2583 = vrcp.pop %v2582
    %v2584 = vmul.f32 1.0, %v2583
    %v2585 = vtanh.pop %v2571
    %v2586 = vxor.u32 %v2572, 2147483648
    %v2587 = vmul.f32 %v2586, 1.442695
    %v2588 = vpow.pop %v2587
    %v2589 = vadd.f32 %v2588, 1.0
    %v2590 = vrcp.pop %v2589
    %v2591 = vmul.f32 1.0, %v2590
    %v2592 = vmul.f32 %v2584, %v2481
    %v2593 = vmul.f32 %v2578, %v2585
    %v2594 = vadd.f32 %v2592, %v2593
    %v2595 = vtanh.pop %v2594
    %v2596 = vmul.f32 %v2591, %v2595
    %2597 = vst [vmem:[%s1961] sm:$0xff] %v2596
    %2598 = vst [vmem:[%s1963] sm:$0xff] %v2594
    %v2599 = vld [vmem:[%s1961] sm:$0xff]
    %v2600 = vld [vmem:[%s1963] sm:$0xff]
    %v2601 = vld [vmem:[%s1031] sm:$0xff]
    %v2602 = vld [vmem:[%s1031 + $0x8] sm:$0xff]
    %v2603 = vld [vmem:[%s1031 + $0x10] sm:$0xff]
    %v2604 = vld [vmem:[%s1031 + $0x18] sm:$0xff]
    %v2605 = vpack.c.bf16 %v2599, %v2599
    %2606 = vmatprep.subr.bf16.mxu0 %v2095
    %2607 = vmatpush1.bf16.msra.mxu0 %v2094
    %2608 = vmatprep.subr.bf16.mxu0 %v2091
    %2609 = vmatpush1.bf16.msra.mxu0 %v2090
    %2610 = vmatprep.subr.bf16.mxu0 %v2087
    %2611 = vmatpush1.bf16.msra.mxu0 %v2086
    %2612 = vmatprep.subr.bf16.mxu0 %v2083
    %2613 = vmatpush1.bf16.msra.mxu0 %v2082
    %2614 = vmatprep.subr.bf16.mxu0 %v2079
    %2615 = vmatpush1.bf16.msra.mxu0 %v2078
    %2616 = vmatprep.subr.bf16.mxu0 %v2075
    %2617 = vmatpush1.bf16.msra.mxu0 %v2074
    %2618 = vmatprep.subr.bf16.mxu0 %v2071
    %2619 = vmatpush1.bf16.msra.mxu0 %v2070
    %2620 = vmatprep.subr.bf16.mxu0 %v2067
    %2621 = vmatpush1.bf16.msra.mxu0 %v2066
    %2622 = vmatprep.subr.bf16.mxu0 0
    %2623 = vmatpush2.bf16.msra.mxu0 0
    %2624 = vmatprep.subr.bf16.mxu0 0
    %2625 = vmatpush2.bf16.msra.mxu0 0
    %2626 = vmatprep.subr.bf16.mxu0 0
    %2627 = vmatpush2.bf16.msra.mxu0 0
    %2628 = vmatprep.subr.bf16.mxu0 0
    %2629 = vmatpush2.bf16.msra.mxu0 0
    %2630 = vmatprep.subr.bf16.mxu0 0
    %2631 = vmatpush2.bf16.msra.mxu0 0
    %2632 = vmatprep.subr.bf16.mxu0 0
    %2633 = vmatpush2.bf16.msra.mxu0 0
    %2634 = vmatprep.subr.bf16.mxu0 0
    %2635 = vmatpush2.bf16.msra.mxu0 0
    %2636 = vmatprep.subr.bf16.mxu0 0
    %2637 = vmatpush2.bf16.msra.mxu0 0
    %2638 = vmatprep.mubr.bf16.mxu0 0
    %2639 = vmatmul.mubr.bf16.gmra.mxu0 %v2605
    %v2640 = vpop.f32.mrf.mxu0
    %v2641 = vadd.f32 0.0, %v2640
    %v2642 = vpop.f32.mrf.mxu0
    %v2643 = vadd.f32 0.0, %v2642
    %v2644 = vpop.f32.mrf.mxu0
    %v2645 = vpop.f32.mrf.mxu0
    %2646 = vdwg.mxu0
    %2647 = vmatprep.subr.bf16.mxu0 %v2097
    %2648 = vmatpush1.bf16.msra.mxu0 %v2096
    %2649 = vmatprep.subr.bf16.mxu0 %v2093
    %2650 = vmatpush1.bf16.msra.mxu0 %v2092
    %2651 = vmatprep.subr.bf16.mxu0 %v2089
    %2652 = vmatpush1.bf16.msra.mxu0 %v2088
    %2653 = vmatprep.subr.bf16.mxu0 %v2085
    %2654 = vmatpush1.bf16.msra.mxu0 %v2084
    %2655 = vmatprep.subr.bf16.mxu0 %v2081
    %2656 = vmatpush1.bf16.msra.mxu0 %v2080
    %2657 = vmatprep.subr.bf16.mxu0 %v2077
    %2658 = vmatpush1.bf16.msra.mxu0 %v2076
    %2659 = vmatprep.subr.bf16.mxu0 %v2073
    %2660 = vmatpush1.bf16.msra.mxu0 %v2072
    %2661 = vmatprep.subr.bf16.mxu0 %v2069
    %2662 = vmatpush1.bf16.msra.mxu0 %v2068
    %2663 = vmatprep.subr.bf16.mxu0 0
    %2664 = vmatpush2.bf16.msra.mxu0 0
    %2665 = vmatprep.subr.bf16.mxu0 0
    %2666 = vmatpush2.bf16.msra.mxu0 0
    %2667 = vmatprep.subr.bf16.mxu0 0
    %2668 = vmatpush2.bf16.msra.mxu0 0
    %2669 = vmatprep.subr.bf16.mxu0 0
    %2670 = vmatpush2.bf16.msra.mxu0 0
    %2671 = vmatprep.subr.bf16.mxu0 0
    %2672 = vmatpush2.bf16.msra.mxu0 0
    %2673 = vmatprep.subr.bf16.mxu0 0
    %2674 = vmatpush2.bf16.msra.mxu0 0
    %2675 = vmatprep.subr.bf16.mxu0 0
    %2676 = vmatpush2.bf16.msra.mxu0 0
    %2677 = vmatprep.subr.bf16.mxu0 0
    %2678 = vmatpush2.bf16.msra.mxu0 0
    %2679 = vmatprep.mubr.bf16.mxu0 0
    %2680 = vmatmul.mubr.bf16.gmra.mxu0 %v2605
    %v2681 = vpop.f32.mrf.mxu0
    %v2682 = vadd.f32 0.0, %v2681
    %v2683 = vpop.f32.mrf.mxu0
    %v2684 = vadd.f32 0.0, %v2683
    %v2685 = vpop.f32.mrf.mxu0
    %v2686 = vpop.f32.mrf.mxu0
    %2687 = vdwg.mxu0
    %v2688 = vadd.f32 %v2601, %v2641
    %v2689 = vadd.f32 %v2602, %v2643
    %v2690 = vadd.f32 %v2603, %v2682
    %v2691 = vadd.f32 %v2604, %v2684
    %v2692 = vxor.u32 %v2688, 2147483648
    %v2693 = vmul.f32 %v2692, 1.442695
    %v2694 = vpow.pop %v2693
    %v2695 = vadd.f32 %v2694, 1.0
    %v2696 = vrcp.pop %v2695
    %v2697 = vmul.f32 1.0, %v2696
    %v2698 = vxor.u32 %v2689, 2147483648
    %v2699 = vmul.f32 %v2698, 1.442695
    %v2700 = vpow.pop %v2699
    %v2701 = vadd.f32 %v2700, 1.0
    %v2702 = vrcp.pop %v2701
    %v2703 = vmul.f32 1.0, %v2702
    %v2704 = vtanh.pop %v2690
    %v2705 = vxor.u32 %v2691, 2147483648
    %v2706 = vmul.f32 %v2705, 1.442695
    %v2707 = vpow.pop %v2706
    %v2708 = vadd.f32 %v2707, 1.0
    %v2709 = vrcp.pop %v2708
    %v2710 = vmul.f32 1.0, %v2709
    %v2711 = vmul.f32 %v2703, %v2600
    %v2712 = vmul.f32 %v2697, %v2704
    %v2713 = vadd.f32 %v2711, %v2712
    %v2714 = vtanh.pop %v2713
    %v2715 = vmul.f32 %v2710, %v2714
    %2716 = vst [vmem:[%s1961] sm:$0xff] %v2715
    %2717 = vst [vmem:[%s1963] sm:$0xff] %v2713
    %v2718 = vld [vmem:[%s1961] sm:$0xff]
    %v2719 = vld [vmem:[%s1963] sm:$0xff]
    %v2720 = vld [vmem:[%s1155] sm:$0xff]
    %v2721 = vld [vmem:[%s1155 + $0x8] sm:$0xff]
    %v2722 = vld [vmem:[%s1155 + $0x10] sm:$0xff]
    %v2723 = vld [vmem:[%s1155 + $0x18] sm:$0xff]
    %v2724 = vpack.c.bf16 %v2718, %v2718
    %2725 = vmatprep.subr.bf16.mxu0 %v2095
    %2726 = vmatpush1.bf16.msra.mxu0 %v2094
    %2727 = vmatprep.subr.bf16.mxu0 %v2091
    %2728 = vmatpush1.bf16.msra.mxu0 %v2090
    %2729 = vmatprep.subr.bf16.mxu0 %v2087
    %2730 = vmatpush1.bf16.msra.mxu0 %v2086
    %2731 = vmatprep.subr.bf16.mxu0 %v2083
    %2732 = vmatpush1.bf16.msra.mxu0 %v2082
    %2733 = vmatprep.subr.bf16.mxu0 %v2079
    %2734 = vmatpush1.bf16.msra.mxu0 %v2078
    %2735 = vmatprep.subr.bf16.mxu0 %v2075
    %2736 = vmatpush1.bf16.msra.mxu0 %v2074
    %2737 = vmatprep.subr.bf16.mxu0 %v2071
    %2738 = vmatpush1.bf16.msra.mxu0 %v2070
    %2739 = vmatprep.subr.bf16.mxu0 %v2067
    %2740 = vmatpush1.bf16.msra.mxu0 %v2066
    %2741 = vmatprep.subr.bf16.mxu0 0
    %2742 = vmatpush2.bf16.msra.mxu0 0
    %2743 = vmatprep.subr.bf16.mxu0 0
    %2744 = vmatpush2.bf16.msra.mxu0 0
    %2745 = vmatprep.subr.bf16.mxu0 0
    %2746 = vmatpush2.bf16.msra.mxu0 0
    %2747 = vmatprep.subr.bf16.mxu0 0
    %2748 = vmatpush2.bf16.msra.mxu0 0
    %2749 = vmatprep.subr.bf16.mxu0 0
    %2750 = vmatpush2.bf16.msra.mxu0 0
    %2751 = vmatprep.subr.bf16.mxu0 0
    %2752 = vmatpush2.bf16.msra.mxu0 0
    %2753 = vmatprep.subr.bf16.mxu0 0
    %2754 = vmatpush2.bf16.msra.mxu0 0
    %2755 = vmatprep.subr.bf16.mxu0 0
    %2756 = vmatpush2.bf16.msra.mxu0 0
    %2757 = vmatprep.mubr.bf16.mxu0 0
    %2758 = vmatmul.mubr.bf16.gmra.mxu0 %v2724
    %v2759 = vpop.f32.mrf.mxu0
    %v2760 = vadd.f32 0.0, %v2759
    %v2761 = vpop.f32.mrf.mxu0
    %v2762 = vadd.f32 0.0, %v2761
    %v2763 = vpop.f32.mrf.mxu0
    %v2764 = vpop.f32.mrf.mxu0
    %2765 = vdwg.mxu0
    %2766 = vmatprep.subr.bf16.mxu0 %v2097
    %2767 = vmatpush1.bf16.msra.mxu0 %v2096
    %2768 = vmatprep.subr.bf16.mxu0 %v2093
    %2769 = vmatpush1.bf16.msra.mxu0 %v2092
    %2770 = vmatprep.subr.bf16.mxu0 %v2089
    %2771 = vmatpush1.bf16.msra.mxu0 %v2088
    %2772 = vmatprep.subr.bf16.mxu0 %v2085
    %2773 = vmatpush1.bf16.msra.mxu0 %v2084
    %2774 = vmatprep.subr.bf16.mxu0 %v2081
    %2775 = vmatpush1.bf16.msra.mxu0 %v2080
    %2776 = vmatprep.subr.bf16.mxu0 %v2077
    %2777 = vmatpush1.bf16.msra.mxu0 %v2076
    %2778 = vmatprep.subr.bf16.mxu0 %v2073
    %2779 = vmatpush1.bf16.msra.mxu0 %v2072
    %2780 = vmatprep.subr.bf16.mxu0 %v2069
    %2781 = vmatpush1.bf16.msra.mxu0 %v2068
    %2782 = vmatprep.subr.bf16.mxu0 0
    %2783 = vmatpush2.bf16.msra.mxu0 0
    %2784 = vmatprep.subr.bf16.mxu0 0
    %2785 = vmatpush2.bf16.msra.mxu0 0
    %2786 = vmatprep.subr.bf16.mxu0 0
    %2787 = vmatpush2.bf16.msra.mxu0 0
    %2788 = vmatprep.subr.bf16.mxu0 0
    %2789 = vmatpush2.bf16.msra.mxu0 0
    %2790 = vmatprep.subr.bf16.mxu0 0
    %2791 = vmatpush2.bf16.msra.mxu0 0
    %2792 = vmatprep.subr.bf16.mxu0 0
    %2793 = vmatpush2.bf16.msra.mxu0 0
    %2794 = vmatprep.subr.bf16.mxu0 0
    %2795 = vmatpush2.bf16.msra.mxu0 0
    %2796 = vmatprep.subr.bf16.mxu0 0
    %2797 = vmatpush2.bf16.msra.mxu0 0
    %2798 = vmatprep.mubr.bf16.mxu0 0
    %2799 = vmatmul.mubr.bf16.gmra.mxu0 %v2724
    %v2800 = vpop.f32.mrf.mxu0
    %v2801 = vadd.f32 0.0, %v2800
    %v2802 = vpop.f32.mrf.mxu0
    %v2803 = vadd.f32 0.0, %v2802
    %v2804 = vpop.f32.mrf.mxu0
    %v2805 = vpop.f32.mrf.mxu0
    %2806 = vdwg.mxu0
    %v2807 = vadd.f32 %v2720, %v2760
    %v2808 = vadd.f32 %v2721, %v2762
    %v2809 = vadd.f32 %v2722, %v2801
    %v2810 = vadd.f32 %v2723, %v2803
    %v2811 = vxor.u32 %v2807, 2147483648
    %v2812 = vmul.f32 %v2811, 1.442695
    %v2813 = vpow.pop %v2812
    %v2814 = vadd.f32 %v2813, 1.0
    %v2815 = vrcp.pop %v2814
    %v2816 = vmul.f32 1.0, %v2815
    %v2817 = vxor.u32 %v2808, 2147483648
    %v2818 = vmul.f32 %v2817, 1.442695
    %v2819 = vpow.pop %v2818
    %v2820 = vadd.f32 %v2819, 1.0
    %v2821 = vrcp.pop %v2820
    %v2822 = vmul.f32 1.0, %v2821
    %v2823 = vtanh.pop %v2809
    %v2824 = vxor.u32 %v2810, 2147483648
    %v2825 = vmul.f32 %v2824, 1.442695
    %v2826 = vpow.pop %v2825
    %v2827 = vadd.f32 %v2826, 1.0
    %v2828 = vrcp.pop %v2827
    %v2829 = vmul.f32 1.0, %v2828
    %v2830 = vmul.f32 %v2822, %v2719
    %v2831 = vmul.f32 %v2816, %v2823
    %v2832 = vadd.f32 %v2830, %v2831
    %v2833 = vtanh.pop %v2832
    %v2834 = vmul.f32 %v2829, %v2833
    %2835 = vst [vmem:[%s1961] sm:$0xff] %v2834
    %2836 = vst [vmem:[%s1963] sm:$0xff] %v2832
    %v2837 = vld [vmem:[%s1961] sm:$0xff]
    %v2838 = vld [vmem:[%s1963] sm:$0xff]
    %v2839 = vld [vmem:[%s1279] sm:$0xff]
    %v2840 = vld [vmem:[%s1279 + $0x8] sm:$0xff]
    %v2841 = vld [vmem:[%s1279 + $0x10] sm:$0xff]
    %v2842 = vld [vmem:[%s1279 + $0x18] sm:$0xff]
    %v2843 = vpack.c.bf16 %v2837, %v2837
    %2844 = vmatprep.subr.bf16.mxu0 %v2095
    %2845 = vmatpush1.bf16.msra.mxu0 %v2094
    %2846 = vmatprep.subr.bf16.mxu0 %v2091
    %2847 = vmatpush1.bf16.msra.mxu0 %v2090
    %2848 = vmatprep.subr.bf16.mxu0 %v2087
    %2849 = vmatpush1.bf16.msra.mxu0 %v2086
    %2850 = vmatprep.subr.bf16.mxu0 %v2083
    %2851 = vmatpush1.bf16.msra.mxu0 %v2082
    %2852 = vmatprep.subr.bf16.mxu0 %v2079
    %2853 = vmatpush1.bf16.msra.mxu0 %v2078
    %2854 = vmatprep.subr.bf16.mxu0 %v2075
    %2855 = vmatpush1.bf16.msra.mxu0 %v2074
    %2856 = vmatprep.subr.bf16.mxu0 %v2071
    %2857 = vmatpush1.bf16.msra.mxu0 %v2070
    %2858 = vmatprep.subr.bf16.mxu0 %v2067
    %2859 = vmatpush1.bf16.msra.mxu0 %v2066
    %2860 = vmatprep.subr.bf16.mxu0 0
    %2861 = vmatpush2.bf16.msra.mxu0 0
    %2862 = vmatprep.subr.bf16.mxu0 0
    %2863 = vmatpush2.bf16.msra.mxu0 0
    %2864 = vmatprep.subr.bf16.mxu0 0
    %2865 = vmatpush2.bf16.msra.mxu0 0
    %2866 = vmatprep.subr.bf16.mxu0 0
    %2867 = vmatpush2.bf16.msra.mxu0 0
    %2868 = vmatprep.subr.bf16.mxu0 0
    %2869 = vmatpush2.bf16.msra.mxu0 0
    %2870 = vmatprep.subr.bf16.mxu0 0
    %2871 = vmatpush2.bf16.msra.mxu0 0
    %2872 = vmatprep.subr.bf16.mxu0 0
    %2873 = vmatpush2.bf16.msra.mxu0 0
    %2874 = vmatprep.subr.bf16.mxu0 0
    %2875 = vmatpush2.bf16.msra.mxu0 0
    %2876 = vmatprep.mubr.bf16.mxu0 0
    %2877 = vmatmul.mubr.bf16.gmra.mxu0 %v2843
    %v2878 = vpop.f32.mrf.mxu0
    %v2879 = vadd.f32 0.0, %v2878
    %v2880 = vpop.f32.mrf.mxu0
    %v2881 = vadd.f32 0.0, %v2880
    %v2882 = vpop.f32.mrf.mxu0
    %v2883 = vpop.f32.mrf.mxu0
    %2884 = vdwg.mxu0
    %2885 = vmatprep.subr.bf16.mxu0 %v2097
    %2886 = vmatpush1.bf16.msra.mxu0 %v2096
    %2887 = vmatprep.subr.bf16.mxu0 %v2093
    %2888 = vmatpush1.bf16.msra.mxu0 %v2092
    %2889 = vmatprep.subr.bf16.mxu0 %v2089
    %2890 = vmatpush1.bf16.msra.mxu0 %v2088
    %2891 = vmatprep.subr.bf16.mxu0 %v2085
    %2892 = vmatpush1.bf16.msra.mxu0 %v2084
    %2893 = vmatprep.subr.bf16.mxu0 %v2081
    %2894 = vmatpush1.bf16.msra.mxu0 %v2080
    %2895 = vmatprep.subr.bf16.mxu0 %v2077
    %2896 = vmatpush1.bf16.msra.mxu0 %v2076
    %2897 = vmatprep.subr.bf16.mxu0 %v2073
    %2898 = vmatpush1.bf16.msra.mxu0 %v2072
    %2899 = vmatprep.subr.bf16.mxu0 %v2069
    %2900 = vmatpush1.bf16.msra.mxu0 %v2068
    %2901 = vmatprep.subr.bf16.mxu0 0
    %2902 = vmatpush2.bf16.msra.mxu0 0
    %2903 = vmatprep.subr.bf16.mxu0 0
    %2904 = vmatpush2.bf16.msra.mxu0 0
    %2905 = vmatprep.subr.bf16.mxu0 0
    %2906 = vmatpush2.bf16.msra.mxu0 0
    %2907 = vmatprep.subr.bf16.mxu0 0
    %2908 = vmatpush2.bf16.msra.mxu0 0
    %2909 = vmatprep.subr.bf16.mxu0 0
    %2910 = vmatpush2.bf16.msra.mxu0 0
    %2911 = vmatprep.subr.bf16.mxu0 0
    %2912 = vmatpush2.bf16.msra.mxu0 0
    %2913 = vmatprep.subr.bf16.mxu0 0
    %2914 = vmatpush2.bf16.msra.mxu0 0
    %2915 = vmatprep.subr.bf16.mxu0 0
    %2916 = vmatpush2.bf16.msra.mxu0 0
    %2917 = vmatprep.mubr.bf16.mxu0 0
    %2918 = vmatmul.mubr.bf16.gmra.mxu0 %v2843
    %v2919 = vpop.f32.mrf.mxu0
    %v2920 = vadd.f32 0.0, %v2919
    %v2921 = vpop.f32.mrf.mxu0
    %v2922 = vadd.f32 0.0, %v2921
    %v2923 = vpop.f32.mrf.mxu0
    %v2924 = vpop.f32.mrf.mxu0
    %2925 = vdwg.mxu0
    %v2926 = vadd.f32 %v2839, %v2879
    %v2927 = vadd.f32 %v2840, %v2881
    %v2928 = vadd.f32 %v2841, %v2920
    %v2929 = vadd.f32 %v2842, %v2922
    %v2930 = vxor.u32 %v2926, 2147483648
    %v2931 = vmul.f32 %v2930, 1.442695
    %v2932 = vpow.pop %v2931
    %v2933 = vadd.f32 %v2932, 1.0
    %v2934 = vrcp.pop %v2933
    %v2935 = vmul.f32 1.0, %v2934
    %v2936 = vxor.u32 %v2927, 2147483648
    %v2937 = vmul.f32 %v2936, 1.442695
    %v2938 = vpow.pop %v2937
    %v2939 = vadd.f32 %v2938, 1.0
    %v2940 = vrcp.pop %v2939
    %v2941 = vmul.f32 1.0, %v2940
    %v2942 = vtanh.pop %v2928
    %v2943 = vxor.u32 %v2929, 2147483648
    %v2944 = vmul.f32 %v2943, 1.442695
    %v2945 = vpow.pop %v2944
    %v2946 = vadd.f32 %v2945, 1.0
    %v2947 = vrcp.pop %v2946
    %v2948 = vmul.f32 1.0, %v2947
    %v2949 = vmul.f32 %v2941, %v2838
    %v2950 = vmul.f32 %v2935, %v2942
    %v2951 = vadd.f32 %v2949, %v2950
    %v2952 = vtanh.pop %v2951
    %v2953 = vmul.f32 %v2948, %v2952
    %2954 = vst [vmem:[%s1961] sm:$0xff] %v2953
    %2955 = vst [vmem:[%s1963] sm:$0xff] %v2951
    %v2956 = vld [vmem:[%s1961] sm:$0xff]
    %v2957 = vld [vmem:[%s1963] sm:$0xff]
    %v2958 = vld [vmem:[%s1403] sm:$0xff]
    %v2959 = vld [vmem:[%s1403 + $0x8] sm:$0xff]
    %v2960 = vld [vmem:[%s1403 + $0x10] sm:$0xff]
    %v2961 = vld [vmem:[%s1403 + $0x18] sm:$0xff]
    %v2962 = vpack.c.bf16 %v2956, %v2956
    %2963 = vmatprep.subr.bf16.mxu0 %v2095
    %2964 = vmatpush1.bf16.msra.mxu0 %v2094
    %2965 = vmatprep.subr.bf16.mxu0 %v2091
    %2966 = vmatpush1.bf16.msra.mxu0 %v2090
    %2967 = vmatprep.subr.bf16.mxu0 %v2087
    %2968 = vmatpush1.bf16.msra.mxu0 %v2086
    %2969 = vmatprep.subr.bf16.mxu0 %v2083
    %2970 = vmatpush1.bf16.msra.mxu0 %v2082
    %2971 = vmatprep.subr.bf16.mxu0 %v2079
    %2972 = vmatpush1.bf16.msra.mxu0 %v2078
    %2973 = vmatprep.subr.bf16.mxu0 %v2075
    %2974 = vmatpush1.bf16.msra.mxu0 %v2074
    %2975 = vmatprep.subr.bf16.mxu0 %v2071
    %2976 = vmatpush1.bf16.msra.mxu0 %v2070
    %2977 = vmatprep.subr.bf16.mxu0 %v2067
    %2978 = vmatpush1.bf16.msra.mxu0 %v2066
    %2979 = vmatprep.subr.bf16.mxu0 0
    %2980 = vmatpush2.bf16.msra.mxu0 0
    %2981 = vmatprep.subr.bf16.mxu0 0
    %2982 = vmatpush2.bf16.msra.mxu0 0
    %2983 = vmatprep.subr.bf16.mxu0 0
    %2984 = vmatpush2.bf16.msra.mxu0 0
    %2985 = vmatprep.subr.bf16.mxu0 0
    %2986 = vmatpush2.bf16.msra.mxu0 0
    %2987 = vmatprep.subr.bf16.mxu0 0
    %2988 = vmatpush2.bf16.msra.mxu0 0
    %2989 = vmatprep.subr.bf16.mxu0 0
    %2990 = vmatpush2.bf16.msra.mxu0 0
    %2991 = vmatprep.subr.bf16.mxu0 0
    %2992 = vmatpush2.bf16.msra.mxu0 0
    %2993 = vmatprep.subr.bf16.mxu0 0
    %2994 = vmatpush2.bf16.msra.mxu0 0
    %2995 = vmatprep.mubr.bf16.mxu0 0
    %2996 = vmatmul.mubr.bf16.gmra.mxu0 %v2962
    %v2997 = vpop.f32.mrf.mxu0
    %v2998 = vadd.f32 0.0, %v2997
    %v2999 = vpop.f32.mrf.mxu0
    %v3000 = vadd.f32 0.0, %v2999
    %v3001 = vpop.f32.mrf.mxu0
    %v3002 = vpop.f32.mrf.mxu0
    %3003 = vdwg.mxu0
    %3004 = vmatprep.subr.bf16.mxu0 %v2097
    %3005 = vmatpush1.bf16.msra.mxu0 %v2096
    %3006 = vmatprep.subr.bf16.mxu0 %v2093
    %3007 = vmatpush1.bf16.msra.mxu0 %v2092
    %3008 = vmatprep.subr.bf16.mxu0 %v2089
    %3009 = vmatpush1.bf16.msra.mxu0 %v2088
    %3010 = vmatprep.subr.bf16.mxu0 %v2085
    %3011 = vmatpush1.bf16.msra.mxu0 %v2084
    %3012 = vmatprep.subr.bf16.mxu0 %v2081
    %3013 = vmatpush1.bf16.msra.mxu0 %v2080
    %3014 = vmatprep.subr.bf16.mxu0 %v2077
    %3015 = vmatpush1.bf16.msra.mxu0 %v2076
    %3016 = vmatprep.subr.bf16.mxu0 %v2073
    %3017 = vmatpush1.bf16.msra.mxu0 %v2072
    %3018 = vmatprep.subr.bf16.mxu0 %v2069
    %3019 = vmatpush1.bf16.msra.mxu0 %v2068
    %3020 = vmatprep.subr.bf16.mxu0 0
    %3021 = vmatpush2.bf16.msra.mxu0 0
    %3022 = vmatprep.subr.bf16.mxu0 0
    %3023 = vmatpush2.bf16.msra.mxu0 0
    %3024 = vmatprep.subr.bf16.mxu0 0
    %3025 = vmatpush2.bf16.msra.mxu0 0
    %3026 = vmatprep.subr.bf16.mxu0 0
    %3027 = vmatpush2.bf16.msra.mxu0 0
    %3028 = vmatprep.subr.bf16.mxu0 0
    %3029 = vmatpush2.bf16.msra.mxu0 0
    %3030 = vmatprep.subr.bf16.mxu0 0
    %3031 = vmatpush2.bf16.msra.mxu0 0
    %3032 = vmatprep.subr.bf16.mxu0 0
    %3033 = vmatpush2.bf16.msra.mxu0 0
    %3034 = vmatprep.subr.bf16.mxu0 0
    %3035 = vmatpush2.bf16.msra.mxu0 0
    %3036 = vmatprep.mubr.bf16.mxu0 0
    %3037 = vmatmul.mubr.bf16.gmra.mxu0 %v2962
    %v3038 = vpop.f32.mrf.mxu0
    %v3039 = vadd.f32 0.0, %v3038
    %v3040 = vpop.f32.mrf.mxu0
    %v3041 = vadd.f32 0.0, %v3040
    %v3042 = vpop.f32.mrf.mxu0
    %v3043 = vpop.f32.mrf.mxu0
    %3044 = vdwg.mxu0
    %v3045 = vadd.f32 %v2958, %v2998
    %v3046 = vadd.f32 %v2959, %v3000
    %v3047 = vadd.f32 %v2960, %v3039
    %v3048 = vadd.f32 %v2961, %v3041
    %v3049 = vxor.u32 %v3045, 2147483648
    %v3050 = vmul.f32 %v3049, 1.442695
    %v3051 = vpow.pop %v3050
    %v3052 = vadd.f32 %v3051, 1.0
    %v3053 = vrcp.pop %v3052
    %v3054 = vmul.f32 1.0, %v3053
    %v3055 = vxor.u32 %v3046, 2147483648
    %v3056 = vmul.f32 %v3055, 1.442695
    %v3057 = vpow.pop %v3056
    %v3058 = vadd.f32 %v3057, 1.0
    %v3059 = vrcp.pop %v3058
    %v3060 = vmul.f32 1.0, %v3059
    %v3061 = vtanh.pop %v3047
    %v3062 = vxor.u32 %v3048, 2147483648
    %v3063 = vmul.f32 %v3062, 1.442695
    %v3064 = vpow.pop %v3063
    %v3065 = vadd.f32 %v3064, 1.0
    %v3066 = vrcp.pop %v3065
    %v3067 = vmul.f32 1.0, %v3066
    %v3068 = vmul.f32 %v3060, %v2957
    %v3069 = vmul.f32 %v3054, %v3061
    %v3070 = vadd.f32 %v3068, %v3069
    %v3071 = vtanh.pop %v3070
    %v3072 = vmul.f32 %v3067, %v3071
    %3073 = vst [vmem:[%s1961] sm:$0xff] %v3072
    %3074 = vst [vmem:[%s1963] sm:$0xff] %v3070
    // Predicated region
    $region42: #{tpu_custom_call.1} parent=1 // pred_check
      %p3075 = pneg %p59
    $region43: #{tpu_custom_call.1} parent=1 // pred_check_branch
      %3077 = sbr.rel (%p3075) target = $region45
    $region44: #{tpu_custom_call.1} parent=1 // pred_region
      %v3078 = vld [vmem:[%s1961] sm:$0xff]
      %3079 = vst [vmem:[#allocation11] sm:$0xff] %v3078
      %v3080 = vpack.c.bf16 %v3078, %v3078
      %v3081 = vld [vmem:[%s5] sm:$0xf]
      %v3082 = vld [vmem:[%s5 + $0x4] sm:$0xf]
      %v3083 = vld [vmem:[%s5 + $0x8] sm:$0xf]
      %v3084 = vld [vmem:[%s5 + $0xc] sm:$0xf]
      %v3085 = vld [vmem:[%s5 + $0x10] sm:$0xf]
      %v3086 = vld [vmem:[%s5 + $0x14] sm:$0xf]
      %v3087 = vld [vmem:[%s5 + $0x18] sm:$0xf]
      %v3088 = vld [vmem:[%s5 + $0x1c] sm:$0xf]
      %v3089 = vld [vmem:[%s5 + $0x20] sm:$0xf]
      %v3090 = vld [vmem:[%s5 + $0x24] sm:$0xf]
      %v3091 = vld [vmem:[%s5 + $0x28] sm:$0xf]
      %v3092 = vld [vmem:[%s5 + $0x2c] sm:$0xf]
      %v3093 = vld [vmem:[%s5 + $0x30] sm:$0xf]
      %v3094 = vld [vmem:[%s5 + $0x34] sm:$0xf]
      %v3095 = vld [vmem:[%s5 + $0x38] sm:$0xf]
      %v3096 = vld [vmem:[%s5 + $0x3c] sm:$0xf]
      %v3097 = vld [vmem:[%s6] sm:$0x1]
      %v3099 = vlaneseq
      %v3100 = vshrl.u32 %v3099, 7
      %v3101 = vsub.s32 0, %v3100
      %v3102 = vrot.slane %v3097, %v3101
      %v3120 = vunpack.c.l.b16 %v3081
      %v3121 = vunpack.c.l.b16 %v3082
      %v3122 = vunpack.c.l.b16 %v3083
      %v3123 = vunpack.c.l.b16 %v3084
      %v3124 = vunpack.c.l.b16 %v3085
      %v3125 = vunpack.c.l.b16 %v3086
      %v3126 = vunpack.c.l.b16 %v3087
      %v3127 = vunpack.c.l.b16 %v3088
      %v3128 = vunpack.c.l.b16 %v3089
      %v3129 = vunpack.c.l.b16 %v3090
      %v3130 = vunpack.c.l.b16 %v3091
      %v3131 = vunpack.c.l.b16 %v3092
      %v3132 = vunpack.c.l.b16 %v3093
      %v3133 = vunpack.c.l.b16 %v3094
      %v3134 = vunpack.c.l.b16 %v3095
      %v3135 = vunpack.c.l.b16 %v3096
      %v3136 = vpack.c.b16 %v3121, %v3120
      %v3137 = vpack.c.b16 %v3123, %v3122
      %v3138 = vpack.c.b16 %v3125, %v3124
      %v3139 = vpack.c.b16 %v3127, %v3126
      %v3140 = vpack.c.b16 %v3129, %v3128
      %v3141 = vpack.c.b16 %v3131, %v3130
      %v3142 = vpack.c.b16 %v3133, %v3132
      %v3143 = vpack.c.b16 %v3135, %v3134
      %3152 = vmatprep.subr.bf16.mxu0 0
      %3153 = vmatpush1.bf16.msra.mxu0 %v3143
      %3154 = vmatprep.subr.bf16.mxu0 0
      %3155 = vmatpush1.bf16.msra.mxu0 %v3142
      %3156 = vmatprep.subr.bf16.mxu0 0
      %3157 = vmatpush1.bf16.msra.mxu0 %v3141
      %3158 = vmatprep.subr.bf16.mxu0 0
      %3159 = vmatpush1.bf16.msra.mxu0 %v3140
      %3160 = vmatprep.subr.bf16.mxu0 0
      %3161 = vmatpush1.bf16.msra.mxu0 %v3139
      %3162 = vmatprep.subr.bf16.mxu0 0
      %3163 = vmatpush1.bf16.msra.mxu0 %v3138
      %3164 = vmatprep.subr.bf16.mxu0 0
      %3165 = vmatpush1.bf16.msra.mxu0 %v3137
      %3166 = vmatprep.subr.bf16.mxu0 0
      %3167 = vmatpush1.bf16.msra.mxu0 %v3136
      %3168 = vmatprep.subr.bf16.mxu0 0
      %3169 = vmatpush2.bf16.msra.mxu0 0
      %3170 = vmatprep.subr.bf16.mxu0 0
      %3171 = vmatpush2.bf16.msra.mxu0 0
      %3172 = vmatprep.subr.bf16.mxu0 0
      %3173 = vmatpush2.bf16.msra.mxu0 0
      %3174 = vmatprep.subr.bf16.mxu0 0
      %3175 = vmatpush2.bf16.msra.mxu0 0
      %3176 = vmatprep.subr.bf16.mxu0 0
      %3177 = vmatpush2.bf16.msra.mxu0 0
      %3178 = vmatprep.subr.bf16.mxu0 0
      %3179 = vmatpush2.bf16.msra.mxu0 0
      %3180 = vmatprep.subr.bf16.mxu0 0
      %3181 = vmatpush2.bf16.msra.mxu0 0
      %3182 = vmatprep.subr.bf16.mxu0 0
      %3183 = vmatpush2.bf16.msra.mxu0 0
      %3184 = vmatprep.mubr.bf16.mxu0 0
      %3185 = vmatmul.mubr.bf16.gmra.mxu0 %v3080
      %v3186 = vpop.f32.mrf.mxu0
      %v3187 = vadd.f32 %v3102, %v3186
      %v3188 = vpop.f32.mrf.mxu0
      %v3189 = vpop.f32.mrf.mxu0
      %v3190 = vpop.f32.mrf.mxu0
      %3191 = vdwg.mxu0
      %vm3192 = vcmask 130048
      %3193 = vst.msk [vmem:[#allocation12] sm:$0xff] %vm3192, %v3187
    $region45: #{tpu_custom_call.1} parent=1 // pred_fallthru
      _
    // Predicated region
    $region46: #{tpu_custom_call.1} parent=1 // pred_check
      _
    $region47: #{tpu_custom_call.1} parent=1 // pred_check_branch
      %3195 = sbr.rel (0) target = $region49
    $region48: #{tpu_custom_call.1} parent=1 // pred_region
      %s3197 = ssub.s32 128, 128
      %3198 = vsyncadd [#allocation8], %s3197
      %s3200 = sshll.u32 [#allocation11], 4
      %s3201 = int_to_ptr.vmem [resolvable:$true] %s3200
      %3203 = dma.vmem_to_hbm [thread:$0]  %s3201, 128, %s7, [#allocation8]
    $region49: #{tpu_custom_call.1} parent=1 // pred_fallthru
      _
    // Predicated region
    $region50: #{tpu_custom_call.1} parent=1 // pred_check
      _
    $region51: #{tpu_custom_call.1} parent=1 // pred_check_branch
      %3205 = sbr.rel (0) target = $region53
    $region52: #{tpu_custom_call.1} parent=1 // pred_region
      %s3207 = ssub.s32 128, 128
      %3208 = vsyncadd [#allocation13], %s3207
      %s3210 = sshll.u32 [#allocation12], 4
      %s3211 = int_to_ptr.vmem [resolvable:$true] %s3210
      %3213 = dma.vmem_to_hbm [thread:$0]  %s3211, 128, %s8, [#allocation13]
    $region53: #{tpu_custom_call.1} parent=1 // pred_fallthru
      _
    // Predicated region
    $region54: #{tpu_custom_call.1} parent=1 // pred_check
      _
    $region55: #{tpu_custom_call.1} parent=1 // pred_check_branch
      %3215 = sbr.rel (0) target = $region57
    $region56: #{tpu_custom_call.1} parent=1 // pred_region
      %3216 = dma.done [#allocation8], 128
    $region57: #{tpu_custom_call.1} parent=1 // pred_fallthru
      _
    // Predicated region
    $region58: #{tpu_custom_call.1} parent=1 // pred_check
      _
    $region59: #{tpu_custom_call.1} parent=1 // pred_check_branch
      %3218 = sbr.rel (0) target = $region61
    $region60: #{tpu_custom_call.1} parent=1 // pred_region
      %3219 = dma.done [#allocation13], 128
    $region61: #{tpu_custom_call.1} parent=1 // pred_fallthru
      _
    %3220 = vsyncpa [#allocation7], 1
    %3221 = vsyncpa [#allocation10], 1
    %3222 = vsyncpa [#allocation8], 1
    %3223 = vsyncpa [#allocation13], 1

</llo_original>
